<compile_context>
chip_gen: v7x
topology: tpu7x:2x2x1
jax: 0.10.0
libtpu: 0.0.40
codegen_flags: <defaults>
</compile_context>

<pallas_src>
import numpy as np
import jax
import jax.numpy as jnp
from jax.experimental import pallas as pl
from jax.experimental.pallas import tpu as pltpu

CNN_CHANNELS = 32
HIDDEN = 128
# TODO(synk): env.single_action_space.nvec is env-dependent; use a synthetic MultiDiscrete.
ATN_DIM = [4, 4, 2]
A_TOTAL = sum(ATN_DIM)
HEAD_PAD = 128                          # lane-dense fused head output width
OBS_DIM = 2 * 11 * 11 + 5 + 2 * 6 * 6   # 319

# lane-dense input slab layout (all segments 128-aligned)
LOC_W = 256      # local 2x11x11 flattened (242 real lanes + 14 zero)
GLB_W = 128      # global 2x6x6 flattened  ( 72 real lanes + 56 zero)
ONE_W = 128      # 1d obs                  (  5 real lanes + 123 zero)
SLAB_W = LOC_W + GLB_W + ONE_W   # 512


# ----------------------------------------------------------------------------- kernel
def terraform_kernel(x_ref,
                     wl1_ref, bl1_ref, wl2_ref, bl2_ref,
                     wg1_ref, bg1_ref, wg2_ref, bg2_ref,
                     wpl_ref, wpg_ref, wp1_ref, bp_ref,
                     wh_ref, bh_ref,
                     out_ref):
    f32 = jnp.float32
    bf16 = jnp.bfloat16

    def mm(a, w):
        return jnp.dot(a, w, preferred_element_type=f32)

    x = x_ref[...]                               # (TB, 512) bf16, one DMA stream
    xl = x[:, 0:LOC_W]                           # (TB, 256) raw local obs (+zero pad)
    xg = x[:, LOC_W:LOC_W + GLB_W]               # (TB, 128) raw global obs (+zero pad)
    x1 = x[:, LOC_W + GLB_W:SLAB_W]              # (TB, 128) raw 1d obs (+zero pad)

    # ---- local net: Conv2d(2->C,5,s=3) on 11x11 -> 3x3, ReLU,
    #                 Conv2d(C->C,3,s=1) on 3x3  -> 1x1, ReLU, Flatten
    # conv1 is a dense conv-as-matmul weight applied to the raw obs slab.
    l1 = jnp.maximum(mm(xl, wl1_ref[...]) + bl1_ref[...], 0.0).astype(bf16)   # (TB, 288)
    hl = jnp.maximum(mm(l1, wl2_ref[...]) + bl2_ref[...], 0.0).astype(bf16)   # (TB, 32)

    # ---- global net: Conv2d(2->C,3) on 6x6 -> 4x4, ReLU,
    #                  Conv2d(C->C,3) on 4x4 -> 2x2, ReLU, Flatten
    g1 = jnp.maximum(mm(xg, wg1_ref[...]) + bg1_ref[...], 0.0).astype(bf16)   # (TB, 512)
    gf = jnp.maximum(mm(g1, wg2_ref[...]) + bg2_ref[...], 0.0).astype(bf16)   # (TB, 128)

    # ---- proj: Linear(C + 4C + H -> H) + ReLU, as 3 split matmuls (no concat).
    #      The activation-free Linear(5,H) "1d net" is folded into wp1 (host-side).
    p = mm(hl, wpl_ref[...]) + mm(gf, wpg_ref[...]) + mm(x1, wp1_ref[...]) + bp_ref[...]
    proj = jnp.maximum(p, 0.0).astype(bf16)                                   # (TB, 128)

    # ---- fused actor + value heads -> one lane-dense (TB, 128) output
    out_ref[...] = (mm(proj, wh_ref[...]) + bh_ref[...]).astype(out_ref.dtype)


# ----------------------------------------------------------------------------- host glue
def _pick_batch_tile(B):
    """Grid >= 4 tiles when the batch allows it (v7x megacore pipelining, even
    split across both TCs); otherwise a single padded tile (v6e/v5e small-B)."""
    if B >= 1024:
        return 256
    if B >= 512:
        return 128
    return max(8, -(-B // 8) * 8)        # one tile covering the padded batch


def terraform_forward(observations, kernel_params, *, batch_tile=None):
    B = observations.shape[0]
    # NOTE: obs values are small ints in this env; bf16 represents them exactly.
    obs = observations.astype(jnp.bfloat16)
    local = obs[:, :242]                  # flattened 2x11x11
    one_d = obs[:, 242:247]               # 1d features
    glb = obs[:, 247:OBS_DIM]             # flattened 2x6x6

    def padw(a, w):
        return jnp.pad(a, ((0, 0), (0, w - a.shape[1])))

    # one lane-dense, 128-aligned slab; matching weight rows are zero-padded
    slab = jnp.concatenate(
        [padw(local, LOC_W), padw(glb, GLB_W), padw(one_d, ONE_W)], axis=1)

    TB = int(batch_tile) if batch_tile is not None else _pick_batch_tile(B)
    Bp = ((B + TB - 1) // TB) * TB
    if Bp != B:                           # pad batch so the grid divides evenly
        slab = jnp.pad(slab, ((0, Bp - B), (0, 0)))
    grid = (Bp // TB,)

    in_specs = [pl.BlockSpec((TB, SLAB_W), lambda i: (i, 0))] + [
        pl.BlockSpec(w.shape, lambda i: (0, 0)) for w in kernel_params]
    out_specs = pl.BlockSpec((TB, HEAD_PAD), lambda i: (i, 0))
    out_shape = jax.ShapeDtypeStruct((Bp, HEAD_PAD), jnp.float32)

    out = pl.pallas_call(
        terraform_kernel,
        grid=grid,
        in_specs=in_specs,
        out_specs=out_specs,
        out_shape=out_shape,
        compiler_params=pltpu.CompilerParams(dimension_semantics=("parallel",)),
    )(slab, *kernel_params)

    out = out[:B]
    logits = out[:, :A_TOTAL]
    value = out[:, A_TOTAL:A_TOTAL + 1]

    # torch.split(action, self.atn_dim, dim=1)
    splits = [int(s) for s in np.cumsum(ATN_DIM)[:-1]]
    actions = tuple(jnp.split(logits, splits, axis=1))
    return actions, value


# ----------------------------------------------------------------------------- params
def init_params(key):
    """Deterministic synthetic parameters.  pufferlib's layer_init (orthogonal)
    is replaced with scaled normals; shapes/semantics match the PyTorch module."""
    C, H, A = CNN_CHANNELS, HIDDEN, A_TOTAL
    ks = jax.random.split(key, 16)

    def rnd(k, shape, scale):
        return scale * jax.random.normal(k, shape, dtype=jnp.float32)

    # PyTorch-layout params (Conv2d: OIHW, Linear: (out_features, in_features)).
    wl1 = rnd(ks[0], (C, 2, 5, 5), 0.10);  bl1 = rnd(ks[1], (C,), 0.05)
    wl2 = rnd(ks[2], (C, C, 3, 3), 0.06);  bl2 = rnd(ks[3], (C,), 0.05)
    wg1 = rnd(ks[4], (C, 2, 3, 3), 0.10);  bg1 = rnd(ks[5], (C,), 0.05)
    wg2 = rnd(ks[6], (C, C, 3, 3), 0.06);  bg2 = rnd(ks[7], (C,), 0.05)
    w1d = rnd(ks[8], (H, 5), 0.10);        b1d = rnd(ks[9], (H,), 0.05)
    wp = rnd(ks[10], (H, 5 * C + H), 0.06); bp = rnd(ks[11], (H,), 0.05)
    wa = rnd(ks[12], (A, H), 0.01);        ba = jnp.zeros((A,), jnp.float32)
    wv = rnd(ks[14], (1, H), 0.10);        bv = jnp.zeros((1,), jnp.float32)
    pt = (wl1, bl1, wl2, bl2, wg1, bg1, wg2, bg2, w1d, b1d, wp, bp, wa, ba, wv, bv)

    # --- build fused, kernel-layout weights on the host (numpy) ---
    wl1_n, wl2_n, wg1_n, wg2_n = map(np.asarray, (wl1, wl2, wg1, wg2))
    w1d_n, wp_n, wa_n, wv_n = map(np.asarray, (w1d, wp, wa, wv))
    bl1_n, bl2_n, bg1_n, bg2_n = map(np.asarray, (bl1, bl2, bg1, bg2))
    b1d_n, bp_n, ba_n, bv_n = map(np.asarray, (b1d, bp, ba, bv))

    # local conv1 as a dense conv-as-matmul matrix over the raw flattened
    # 2x11x11 obs (row index = c*121 + y*11 + x); 9 output positions, pos-major.
    k_wl1 = np.zeros((LOC_W, 9 * C), np.float32)
    for oy in range(3):
        for ox in range(3):
            p = oy * 3 + ox
            for c in range(2):
                for ky in range(5):
                    for kx in range(5):
                        row = c * 121 + (oy * 3 + ky) * 11 + (ox * 3 + kx)
                        k_wl1[row, p * C:(p + 1) * C] = wl1_n[:, c, ky, kx]
    k_bl1 = np.tile(bl1_n, 9).reshape(1, 9 * C)

    # local conv2: rows in (patch, cin) order to match conv1 output lanes
    k_wl2 = np.transpose(wl2_n, (2, 3, 1, 0)).reshape(9 * C, C)   # (288, 32)
    k_bl2 = bl2_n.reshape(1, C)

    # global conv1 dense matrix over the raw flattened 2x6x6 obs
    # (row index = c*36 + y*6 + x); 16 output positions, pos-major.
    k_wg1 = np.zeros((GLB_W, 16 * C), np.float32)
    for oy in range(4):
        for ox in range(4):
            p = oy * 4 + ox
            for c in range(2):
                for ky in range(3):
                    for kx in range(3):
                        row = c * 36 + (oy + ky) * 6 + (ox + kx)
                        k_wg1[row, p * C:(p + 1) * C] = wg1_n[:, c, ky, kx]
    k_bg1 = np.tile(bg1_n, 16).reshape(1, 16 * C)

    # global conv2 as ONE matmul: 4 output positions stacked along lanes.
    k_wg2 = np.zeros((16 * C, 4 * C), np.float32)                 # (512, 128)
    for oy in range(2):
        for ox in range(2):
            q = oy * 2 + ox
            for ky in range(3):
                for kx in range(3):
                    s = (oy + ky) * 4 + (ox + kx)                 # source pos on 4x4 map
                    k_wg2[s * C:(s + 1) * C, q * C:(q + 1) * C] = wg2_n[:, :, ky, kx].T
    k_bg2 = np.tile(bg2_n, 4).reshape(1, 4 * C)

    # proj split into [local | global | 1d] pieces (avoids an in-kernel concat).
    k_wp_l = wp_n[:, 0:C].T                                       # (32, 128)
    # kernel global features are position-major (q*C + c) while torch Flatten of
    # (B, C, 2, 2) is channel-major (c*4 + q) -> permute the proj-weight rows.
    perm_g = np.array([C + c * 4 + q for q in range(4) for c in range(C)])
    k_wp_g = wp_n[:, perm_g].T                                    # (128, 128)
    # fold the activation-free Linear(5,H) into the proj 1d piece (exact):
    #   (obs1d @ w1d.T + b1d) @ wp_1.T  ==  obs1d @ (w1d.T @ wp_1.T) + b1d @ wp_1.T
    wp_1 = wp_n[:, 5 * C:]                                        # (H, H)
    k_wp_1 = np.zeros((ONE_W, H), np.float32)
    k_wp_1[:5, :] = w1d_n.T @ wp_1.T                              # (5, 128)
    k_bp = (bp_n + b1d_n @ wp_1.T).reshape(1, H)

    # fused actor + value head, zero-padded to HEAD_PAD lanes
    k_wh = np.zeros((H, HEAD_PAD), np.float32)
    k_wh[:, :A] = wa_n.T
    k_wh[:, A:A + 1] = wv_n.T
    k_bh = np.zeros((1, HEAD_PAD), np.float32)
    k_bh[0, :A] = ba_n
    k_bh[0, A:A + 1] = bv_n

    # matmul weights in bf16 (operands), biases in f32 (added post-accumulation)
    def as_w(x):
        return jnp.asarray(x, dtype=jnp.bfloat16)

    def as_b(x):
        return jnp.asarray(x, dtype=jnp.float32)

    kernel_params = (as_w(k_wl1), as_b(k_bl1), as_w(k_wl2), as_b(k_bl2),
                     as_w(k_wg1), as_b(k_bg1), as_w(k_wg2), as_b(k_bg2),
                     as_w(k_wp_l), as_w(k_wp_g), as_w(k_wp_1), as_b(k_bp),
                     as_w(k_wh), as_b(k_bh))
    return kernel_params, pt


# ----------------------------------------------------------------------------- reference
def torch_style_reference(obs, pt):
    """Pure-JAX re-implementation of the PyTorch forward (NCHW convs, f32)."""
    (wl1, bl1, wl2, bl2, wg1, bg1, wg2, bg2,
     w1d, b1d, wp, bp, wa, ba, wv, bv) = pt
    B = obs.shape[0]
    x = obs.astype(jnp.float32)
    obs2d = x[:, :242].reshape(B, 2, 11, 11)
    obs1d = x[:, 242:247]
    loc2d = x[:, 247:].reshape(B, 2, 6, 6)
    hi = jax.lax.Precision.HIGHEST

    def conv(inp, w, b, s):
        y = jax.lax.conv_general_dilated(
            inp, w, (s, s), 'VALID',
            dimension_numbers=('NCHW', 'OIHW', 'NCHW'), precision=hi)
        return y + b[None, :, None, None]

    h = jax.nn.relu(conv(obs2d, wl1, bl1, 3))
    h = jax.nn.relu(conv(h, wl2, bl2, 1))
    hl = h.reshape(B, -1)
    g = jax.nn.relu(conv(loc2d, wg1, bg1, 1))
    g = jax.nn.relu(conv(g, wg2, bg2, 1))
    hg = g.reshape(B, -1)
    h1 = jnp.dot(obs1d, w1d.T, precision=hi) + b1d
    hidden = jnp.concatenate([hl, hg, h1], axis=1)
    proj = jax.nn.relu(jnp.dot(hidden, wp.T, precision=hi) + bp)
    logits = jnp.dot(proj, wa.T, precision=hi) + ba
    value = jnp.dot(proj, wv.T, precision=hi) + bv
    return logits, value


# ----------------------------------------------------------------------------- main
if __name__ == "__main__":
    key = jax.random.PRNGKey(0)
    kp, ko = jax.random.split(key)
    B = 512  # default tile 128 -> grid = 4 (even, >= 4: good for v7x megacore)
    observations = jax.random.randint(ko, (B, OBS_DIM), 0, 5).astype(jnp.float32)

    kernel_params, pt_params = init_params(kp)

    fwd = jax.jit(lambda o: terraform_forward(o, kernel_params))
    actions, value = fwd(observations)
    actions = tuple(jax.block_until_ready(a) for a in actions)
    value = jax.block_until_ready(value)

    # correctness check against a pure-JAX f32 reference of the PyTorch forward.
    # bf16 operands with f32 accumulation -> ~1% typical / <~3% worst-case
    # relative error, so use a 3% relative tolerance (layout bugs would be O(1)).
    ref_logits, ref_value = torch_style_reference(observations, pt_params)
    got_logits = jnp.concatenate(actions, axis=1)

    def check(name, a, b):
        err = float(jnp.max(jnp.abs(a - b)))
        scale = float(jnp.max(jnp.abs(b))) + 1e-6
        if err > 3e-2 * scale + 3e-3:
            raise AssertionError(f"{name} mismatch: max abs err {err} (scale {scale})")

    check("logits", got_logits, ref_logits)
    check("value", value, ref_value)
    assert len(actions) == len(ATN_DIM)
    assert all(a.shape == (B, n) for a, n in zip(actions, ATN_DIM))
    assert value.shape == (B, 1)

    print("KERNEL_OK")
</pallas_src>

<mosaic_0001>
module attributes {stable_mosaic.version = 11 : i64} {
  func.func @terraform_kernel(%arg0: i32, %arg1: memref<128x512xbf16, #tpu.memory_space<vmem>>, %arg2: memref<256x288xbf16, #tpu.memory_space<vmem>>, %arg3: memref<1x288xf32, #tpu.memory_space<vmem>>, %arg4: memref<288x32xbf16, #tpu.memory_space<vmem>>, %arg5: memref<1x32xf32, #tpu.memory_space<vmem>>, %arg6: memref<128x512xbf16, #tpu.memory_space<vmem>>, %arg7: memref<1x512xf32, #tpu.memory_space<vmem>>, %arg8: memref<512x128xbf16, #tpu.memory_space<vmem>>, %arg9: memref<1x128xf32, #tpu.memory_space<vmem>>, %arg10: memref<32x128xbf16, #tpu.memory_space<vmem>>, %arg11: memref<128x128xbf16, #tpu.memory_space<vmem>>, %arg12: memref<128x128xbf16, #tpu.memory_space<vmem>>, %arg13: memref<1x128xf32, #tpu.memory_space<vmem>>, %arg14: memref<128x128xbf16, #tpu.memory_space<vmem>>, %arg15: memref<1x128xf32, #tpu.memory_space<vmem>>, %arg16: memref<128x128xf32, #tpu.memory_space<vmem>>) attributes {dimension_semantics = [#tpu.dimension_semantics<parallel>], iteration_bounds = array<i64: 4>, scalar_prefetch = 0 : i64, scratch_operands = 0 : i64, tpu.core_type = #tpu.core_type<tc>, window_params = [{transform_indices = @transform_0, window_bounds = array<i64: 128, 512>}, {pipeline_mode = #tpu.pipeline_mode<synchronous>, transform_indices = @transform_1, window_bounds = array<i64: 256, 288>}, {pipeline_mode = #tpu.pipeline_mode<synchronous>, transform_indices = @transform_2, window_bounds = array<i64: 1, 288>}, {pipeline_mode = #tpu.pipeline_mode<synchronous>, transform_indices = @transform_3, window_bounds = array<i64: 288, 32>}, {pipeline_mode = #tpu.pipeline_mode<synchronous>, transform_indices = @transform_4, window_bounds = array<i64: 1, 32>}, {pipeline_mode = #tpu.pipeline_mode<synchronous>, transform_indices = @transform_5, window_bounds = array<i64: 128, 512>}, {pipeline_mode = #tpu.pipeline_mode<synchronous>, transform_indices = @transform_6, window_bounds = array<i64: 1, 512>}, {pipeline_mode = #tpu.pipeline_mode<synchronous>, transform_indices = @transform_7, window_bounds = array<i64: 512, 128>}, {pipeline_mode = #tpu.pipeline_mode<synchronous>, transform_indices = @transform_8, window_bounds = array<i64: 1, 128>}, {pipeline_mode = #tpu.pipeline_mode<synchronous>, transform_indices = @transform_9, window_bounds = array<i64: 32, 128>}, {pipeline_mode = #tpu.pipeline_mode<synchronous>, transform_indices = @transform_10, window_bounds = array<i64: 128, 128>}, {pipeline_mode = #tpu.pipeline_mode<synchronous>, transform_indices = @transform_11, window_bounds = array<i64: 128, 128>}, {pipeline_mode = #tpu.pipeline_mode<synchronous>, transform_indices = @transform_12, window_bounds = array<i64: 1, 128>}, {pipeline_mode = #tpu.pipeline_mode<synchronous>, transform_indices = @transform_13, window_bounds = array<i64: 128, 128>}, {pipeline_mode = #tpu.pipeline_mode<synchronous>, transform_indices = @transform_14, window_bounds = array<i64: 1, 128>}, {transform_indices = @transform_15, window_bounds = array<i64: 128, 128>}]} {
    %c0 = arith.constant 0 : index
    %c0_0 = arith.constant 0 : index
    %0 = vector.load %arg1[%c0, %c0_0] : memref<128x512xbf16, #tpu.memory_space<vmem>>, vector<128x512xbf16>
    %1 = vector.extract_strided_slice %0 {offsets = [0, 0], sizes = [128, 256], strides = [1, 1]} : vector<128x512xbf16> to vector<128x256xbf16>
    %2 = vector.extract_strided_slice %0 {offsets = [0, 256], sizes = [128, 128], strides = [1, 1]} : vector<128x512xbf16> to vector<128x128xbf16>
    %3 = vector.extract_strided_slice %0 {offsets = [0, 384], sizes = [128, 128], strides = [1, 1]} : vector<128x512xbf16> to vector<128x128xbf16>
    %c0_1 = arith.constant 0 : index
    %c0_2 = arith.constant 0 : index
    %4 = vector.load %arg2[%c0_1, %c0_2] : memref<256x288xbf16, #tpu.memory_space<vmem>>, vector<256x288xbf16>
    %cst = arith.constant dense<0.000000e+00> : vector<128x288xf32>
    %5 = tpu.matmul %1, %4, %cst {dimension_numbers = #tpu.dot_dimension_numbers<[1], [0], [0], [1], [0, 0, 1, 1], [], []>} : vector<128x256xbf16>, vector<256x288xbf16>, vector<128x288xf32> -> vector<128x288xf32>
    %c0_3 = arith.constant 0 : index
    %c0_4 = arith.constant 0 : index
    %6 = vector.load %arg3[%c0_3, %c0_4] : memref<1x288xf32, #tpu.memory_space<vmem>>, vector<1x288xf32>
    %7 = vector.broadcast %6 : vector<1x288xf32> to vector<128x288xf32>
    %8 = arith.addf %5, %7 : vector<128x288xf32>
    %cst_5 = arith.constant 0.000000e+00 : f32
    %9 = vector.broadcast %cst_5 : f32 to vector<128x288xf32>
    %10 = arith.maximumf %8, %9 : vector<128x288xf32>
    %11 = arith.truncf %10 : vector<128x288xf32> to vector<128x288xbf16>
    %c0_6 = arith.constant 0 : index
    %c0_7 = arith.constant 0 : index
    %12 = vector.load %arg4[%c0_6, %c0_7] : memref<288x32xbf16, #tpu.memory_space<vmem>>, vector<288x32xbf16>
    %cst_8 = arith.constant dense<0.000000e+00> : vector<128x32xf32>
    %13 = tpu.matmul %11, %12, %cst_8 {dimension_numbers = #tpu.dot_dimension_numbers<[1], [0], [0], [1], [0, 0, 1, 1], [], []>} : vector<128x288xbf16>, vector<288x32xbf16>, vector<128x32xf32> -> vector<128x32xf32>
    %c0_9 = arith.constant 0 : index
    %c0_10 = arith.constant 0 : index
    %14 = vector.load %arg5[%c0_9, %c0_10] : memref<1x32xf32, #tpu.memory_space<vmem>>, vector<1x32xf32>
    %15 = vector.broadcast %14 : vector<1x32xf32> to vector<128x32xf32>
    %16 = arith.addf %13, %15 : vector<128x32xf32>
    %cst_11 = arith.constant 0.000000e+00 : f32
    %17 = vector.broadcast %cst_11 : f32 to vector<128x32xf32>
    %18 = arith.maximumf %16, %17 : vector<128x32xf32>
    %19 = arith.truncf %18 : vector<128x32xf32> to vector<128x32xbf16>
    %c0_12 = arith.constant 0 : index
    %c0_13 = arith.constant 0 : index
    %20 = vector.load %arg6[%c0_12, %c0_13] : memref<128x512xbf16, #tpu.memory_space<vmem>>, vector<128x512xbf16>
    %cst_14 = arith.constant dense<0.000000e+00> : vector<128x512xf32>
    %21 = tpu.matmul %2, %20, %cst_14 {dimension_numbers = #tpu.dot_dimension_numbers<[1], [0], [0], [1], [0, 0, 1, 1], [], []>} : vector<128x128xbf16>, vector<128x512xbf16>, vector<128x512xf32> -> vector<128x512xf32>
    %c0_15 = arith.constant 0 : index
    %c0_16 = arith.constant 0 : index
    %22 = vector.load %arg7[%c0_15, %c0_16] : memref<1x512xf32, #tpu.memory_space<vmem>>, vector<1x512xf32>
    %23 = vector.broadcast %22 : vector<1x512xf32> to vector<128x512xf32>
    %24 = arith.addf %21, %23 : vector<128x512xf32>
    %cst_17 = arith.constant 0.000000e+00 : f32
    %25 = vector.broadcast %cst_17 : f32 to vector<128x512xf32>
    %26 = arith.maximumf %24, %25 : vector<128x512xf32>
    %27 = arith.truncf %26 : vector<128x512xf32> to vector<128x512xbf16>
    %c0_18 = arith.constant 0 : index
    %c0_19 = arith.constant 0 : index
    %28 = vector.load %arg8[%c0_18, %c0_19] : memref<512x128xbf16, #tpu.memory_space<vmem>>, vector<512x128xbf16>
    %cst_20 = arith.constant dense<0.000000e+00> : vector<128x128xf32>
    %29 = tpu.matmul %27, %28, %cst_20 {dimension_numbers = #tpu.dot_dimension_numbers<[1], [0], [0], [1], [0, 0, 1, 1], [], []>} : vector<128x512xbf16>, vector<512x128xbf16>, vector<128x128xf32> -> vector<128x128xf32>
    %c0_21 = arith.constant 0 : index
    %c0_22 = arith.constant 0 : index
    %30 = vector.load %arg9[%c0_21, %c0_22] : memref<1x128xf32, #tpu.memory_space<vmem>>, vector<1x128xf32>
    %31 = vector.broadcast %30 : vector<1x128xf32> to vector<128x128xf32>
    %32 = arith.addf %29, %31 : vector<128x128xf32>
    %cst_23 = arith.constant 0.000000e+00 : f32
    %33 = vector.broadcast %cst_23 : f32 to vector<128x128xf32>
    %34 = arith.maximumf %32, %33 : vector<128x128xf32>
    %35 = arith.truncf %34 : vector<128x128xf32> to vector<128x128xbf16>
    %c0_24 = arith.constant 0 : index
    %c0_25 = arith.constant 0 : index
    %36 = vector.load %arg10[%c0_24, %c0_25] : memref<32x128xbf16, #tpu.memory_space<vmem>>, vector<32x128xbf16>
    %cst_26 = arith.constant dense<0.000000e+00> : vector<128x128xf32>
    %37 = tpu.matmul %19, %36, %cst_26 {dimension_numbers = #tpu.dot_dimension_numbers<[1], [0], [0], [1], [0, 0, 1, 1], [], []>} : vector<128x32xbf16>, vector<32x128xbf16>, vector<128x128xf32> -> vector<128x128xf32>
    %c0_27 = arith.constant 0 : index
    %c0_28 = arith.constant 0 : index
    %38 = vector.load %arg11[%c0_27, %c0_28] : memref<128x128xbf16, #tpu.memory_space<vmem>>, vector<128x128xbf16>
    %cst_29 = arith.constant dense<0.000000e+00> : vector<128x128xf32>
    %39 = tpu.matmul %35, %38, %cst_29 {dimension_numbers = #tpu.dot_dimension_numbers<[1], [0], [0], [1], [0, 0, 1, 1], [], []>} : vector<128x128xbf16>, vector<128x128xbf16>, vector<128x128xf32> -> vector<128x128xf32>
    %40 = arith.addf %37, %39 : vector<128x128xf32>
    %c0_30 = arith.constant 0 : index
    %c0_31 = arith.constant 0 : index
    %41 = vector.load %arg12[%c0_30, %c0_31] : memref<128x128xbf16, #tpu.memory_space<vmem>>, vector<128x128xbf16>
    %cst_32 = arith.constant dense<0.000000e+00> : vector<128x128xf32>
    %42 = tpu.matmul %3, %41, %cst_32 {dimension_numbers = #tpu.dot_dimension_numbers<[1], [0], [0], [1], [0, 0, 1, 1], [], []>} : vector<128x128xbf16>, vector<128x128xbf16>, vector<128x128xf32> -> vector<128x128xf32>
    %43 = arith.addf %40, %42 : vector<128x128xf32>
    %c0_33 = arith.constant 0 : index
    %c0_34 = arith.constant 0 : index
    %44 = vector.load %arg13[%c0_33, %c0_34] : memref<1x128xf32, #tpu.memory_space<vmem>>, vector<1x128xf32>
    %45 = vector.broadcast %44 : vector<1x128xf32> to vector<128x128xf32>
    %46 = arith.addf %43, %45 : vector<128x128xf32>
    %cst_35 = arith.constant 0.000000e+00 : f32
    %47 = vector.broadcast %cst_35 : f32 to vector<128x128xf32>
    %48 = arith.maximumf %46, %47 : vector<128x128xf32>
    %49 = arith.truncf %48 : vector<128x128xf32> to vector<128x128xbf16>
    %c0_36 = arith.constant 0 : index
    %c0_37 = arith.constant 0 : index
    %50 = vector.load %arg14[%c0_36, %c0_37] : memref<128x128xbf16, #tpu.memory_space<vmem>>, vector<128x128xbf16>
    %cst_38 = arith.constant dense<0.000000e+00> : vector<128x128xf32>
    %51 = tpu.matmul %49, %50, %cst_38 {dimension_numbers = #tpu.dot_dimension_numbers<[1], [0], [0], [1], [0, 0, 1, 1], [], []>} : vector<128x128xbf16>, vector<128x128xbf16>, vector<128x128xf32> -> vector<128x128xf32>
    %c0_39 = arith.constant 0 : index
    %c0_40 = arith.constant 0 : index
    %52 = vector.load %arg15[%c0_39, %c0_40] : memref<1x128xf32, #tpu.memory_space<vmem>>, vector<1x128xf32>
    %53 = vector.broadcast %52 : vector<1x128xf32> to vector<128x128xf32>
    %54 = arith.addf %51, %53 : vector<128x128xf32>
    %c0_41 = arith.constant 0 : index
    %c0_42 = arith.constant 0 : index
    %55 = vector.load %arg16[%c0_41, %c0_42] : memref<128x128xf32, #tpu.memory_space<vmem>>, vector<128x128xf32>
    tpu.vector_store %arg16[%c0_41, %c0_42], %54 {strides = array<i32>} : memref<128x128xf32, #tpu.memory_space<vmem>>, vector<128x128xf32>,
    return
  }
  func.func @transform_0(%arg0: i32) -> (i32, i32) {
    %c0_i32 = arith.constant 0 : i32
    %c0_i32_0 = arith.constant 0 : i32
    return %arg0, %c0_i32 : i32, i32
  }
  func.func @transform_1(%arg0: i32) -> (i32, i32) {
    %c0_i32 = arith.constant 0 : i32
    %c0_i32_0 = arith.constant 0 : i32
    %c0_i32_1 = arith.constant 0 : i32
    return %c0_i32, %c0_i32_0 : i32, i32
  }
  func.func @transform_2(%arg0: i32) -> (i32, i32) {
    %c0_i32 = arith.constant 0 : i32
    %c0_i32_0 = arith.constant 0 : i32
    %c0_i32_1 = arith.constant 0 : i32
    return %c0_i32, %c0_i32_0 : i32, i32
  }
  func.func @transform_3(%arg0: i32) -> (i32, i32) {
    %c0_i32 = arith.constant 0 : i32
    %c0_i32_0 = arith.constant 0 : i32
    %c0_i32_1 = arith.constant 0 : i32
    return %c0_i32, %c0_i32_0 : i32, i32
  }
  func.func @transform_4(%arg0: i32) -> (i32, i32) {
    %c0_i32 = arith.constant 0 : i32
    %c0_i32_0 = arith.constant 0 : i32
    %c0_i32_1 = arith.constant 0 : i32
    return %c0_i32, %c0_i32_0 : i32, i32
  }
  func.func @transform_5(%arg0: i32) -> (i32, i32) {
    %c0_i32 = arith.constant 0 : i32
    %c0_i32_0 = arith.constant 0 : i32
    %c0_i32_1 = arith.constant 0 : i32
    return %c0_i32, %c0_i32_0 : i32, i32
  }
  func.func @transform_6(%arg0: i32) -> (i32, i32) {
    %c0_i32 = arith.constant 0 : i32
    %c0_i32_0 = arith.constant 0 : i32
    %c0_i32_1 = arith.constant 0 : i32
    return %c0_i32, %c0_i32_0 : i32, i32
  }
  func.func @transform_7(%arg0: i32) -> (i32, i32) {
    %c0_i32 = arith.constant 0 : i32
    %c0_i32_0 = arith.constant 0 : i32
    %c0_i32_1 = arith.constant 0 : i32
    return %c0_i32, %c0_i32_0 : i32, i32
  }
  func.func @transform_8(%arg0: i32) -> (i32, i32) {
    %c0_i32 = arith.constant 0 : i32
    %c0_i32_0 = arith.constant 0 : i32
    %c0_i32_1 = arith.constant 0 : i32
    return %c0_i32, %c0_i32_0 : i32, i32
  }
  func.func @transform_9(%arg0: i32) -> (i32, i32) {
    %c0_i32 = arith.constant 0 : i32
    %c0_i32_0 = arith.constant 0 : i32
    %c0_i32_1 = arith.constant 0 : i32
    return %c0_i32, %c0_i32_0 : i32, i32
  }
  func.func @transform_10(%arg0: i32) -> (i32, i32) {
    %c0_i32 = arith.constant 0 : i32
    %c0_i32_0 = arith.constant 0 : i32
    %c0_i32_1 = arith.constant 0 : i32
    return %c0_i32, %c0_i32_0 : i32, i32
  }
  func.func @transform_11(%arg0: i32) -> (i32, i32) {
    %c0_i32 = arith.constant 0 : i32
    %c0_i32_0 = arith.constant 0 : i32
    %c0_i32_1 = arith.constant 0 : i32
    return %c0_i32, %c0_i32_0 : i32, i32
  }
  func.func @transform_12(%arg0: i32) -> (i32, i32) {
    %c0_i32 = arith.constant 0 : i32
    %c0_i32_0 = arith.constant 0 : i32
    %c0_i32_1 = arith.constant 0 : i32
    return %c0_i32, %c0_i32_0 : i32, i32
  }
  func.func @transform_13(%arg0: i32) -> (i32, i32) {
    %c0_i32 = arith.constant 0 : i32
    %c0_i32_0 = arith.constant 0 : i32
    %c0_i32_1 = arith.constant 0 : i32
    return %c0_i32, %c0_i32_0 : i32, i32
  }
  func.func @transform_14(%arg0: i32) -> (i32, i32) {
    %c0_i32 = arith.constant 0 : i32
    %c0_i32_0 = arith.constant 0 : i32
    %c0_i32_1 = arith.constant 0 : i32
    return %c0_i32, %c0_i32_0 : i32, i32
  }
  func.func @transform_15(%arg0: i32) -> (i32, i32) {
    %c0_i32 = arith.constant 0 : i32
    %c0_i32_0 = arith.constant 0 : i32
    return %arg0, %c0_i32 : i32, i32
  }
}

</mosaic_0001>

<llo_original>
// kernel: split.2
$region0: #{split.2}
  #allocation0 [shape = 'u32[2048]{0}', space=vmem, size = 0x2000, scoped, tag = 'scoped memory for split.2']
  #allocation1 [shape = 'u32[2048]{0}', space=vmem, size = 0x2000, scoped, tag = 'scoped memory for split.2']
  #allocation2 [shape = 'u32[2048]{0}', space=vmem, size = 0x2000, scoped, tag = 'scoped memory for split.2']
  #allocation3 [shape = 'u32[2048]{0}', space=vmem, size = 0x2000, scoped, tag = 'scoped memory for split.2']
  #allocation4 [shape = 'u32[2048]{0}', space=vmem, size = 0x2000, scoped, tag = 'scoped memory for split.2']
  #allocation5 [shape = 's32[1]{0}', space=sflag, size = 0x4, scoped, tag = 'scoped memory for split.2']
  %s0 = inlined_call_operand.vmem [shape: f32[512,128], index: 0, kind: input, shape index: {}]
  %s1 = inlined_call_operand.vmem [shape: f32[512,2], index: 1, kind: output, shape index: {}]
  %v2 = vld [vmem:[%s0] sm:$0xff]
  %v3 = vlaneseq
  %v4 = vand.u32 %v3, 127
  %vm5 = vcmp.lt.s32.totalorder %v4, 8
  %v6 = vsel %vm5, 0, %v2
  %7 = vrot.lane.b32.xlu0 %v6, 120
  %v8 = vpop.permute.xlu0 %7
  %9 = vst [vmem:[%s1] sm:$0xff] %v8
  %s10 = scalar_lea.vmem %s0, 8
  %v11 = vld [vmem:[%s10] sm:$0xff]
  %v12 = vlaneseq
  %v13 = vand.u32 %v12, 127
  %vm14 = vcmp.lt.s32.totalorder %v13, 8
  %v15 = vsel %vm14, 0, %v11
  %16 = vrot.lane.b32.xlu0 %v15, 120
  %v17 = vpop.permute.xlu0 %16
  %s18 = scalar_lea.vmem %s1, 8
  %19 = vst [vmem:[%s18] sm:$0xff] %v17
  %s20 = scalar_lea.vmem %s0, 16
  %v21 = vld [vmem:[%s20] sm:$0xff]
  %v22 = vlaneseq
  %v23 = vand.u32 %v22, 127
  %vm24 = vcmp.lt.s32.totalorder %v23, 8
  %v25 = vsel %vm24, 0, %v21
  %26 = vrot.lane.b32.xlu0 %v25, 120
  %v27 = vpop.permute.xlu0 %26
  %s28 = scalar_lea.vmem %s1, 16
  %29 = vst [vmem:[%s28] sm:$0xff] %v27
  %s30 = scalar_lea.vmem %s0, 24
  %v31 = vld [vmem:[%s30] sm:$0xff]
  %v32 = vlaneseq
  %v33 = vand.u32 %v32, 127
  %vm34 = vcmp.lt.s32.totalorder %v33, 8
  %v35 = vsel %vm34, 0, %v31
  %36 = vrot.lane.b32.xlu0 %v35, 120
  %v37 = vpop.permute.xlu0 %36
  %s38 = scalar_lea.vmem %s1, 24
  %39 = vst [vmem:[%s38] sm:$0xff] %v37
  %s40 = scalar_lea.vmem %s0, 32
  %v41 = vld [vmem:[%s40] sm:$0xff]
  %v42 = vlaneseq
  %v43 = vand.u32 %v42, 127
  %vm44 = vcmp.lt.s32.totalorder %v43, 8
  %v45 = vsel %vm44, 0, %v41
  %46 = vrot.lane.b32.xlu0 %v45, 120
  %v47 = vpop.permute.xlu0 %46
  %s48 = scalar_lea.vmem %s1, 32
  %49 = vst [vmem:[%s48] sm:$0xff] %v47
  %s50 = scalar_lea.vmem %s0, 40
  %v51 = vld [vmem:[%s50] sm:$0xff]
  %v52 = vlaneseq
  %v53 = vand.u32 %v52, 127
  %vm54 = vcmp.lt.s32.totalorder %v53, 8
  %v55 = vsel %vm54, 0, %v51
  %56 = vrot.lane.b32.xlu0 %v55, 120
  %v57 = vpop.permute.xlu0 %56
  %s58 = scalar_lea.vmem %s1, 40
  %59 = vst [vmem:[%s58] sm:$0xff] %v57
  %s60 = scalar_lea.vmem %s0, 48
  %v61 = vld [vmem:[%s60] sm:$0xff]
  %v62 = vlaneseq
  %v63 = vand.u32 %v62, 127
  %vm64 = vcmp.lt.s32.totalorder %v63, 8
  %v65 = vsel %vm64, 0, %v61
  %66 = vrot.lane.b32.xlu0 %v65, 120
  %v67 = vpop.permute.xlu0 %66
  %s68 = scalar_lea.vmem %s1, 48
  %69 = vst [vmem:[%s68] sm:$0xff] %v67
  %s70 = scalar_lea.vmem %s0, 56
  %v71 = vld [vmem:[%s70] sm:$0xff]
  %v72 = vlaneseq
  %v73 = vand.u32 %v72, 127
  %vm74 = vcmp.lt.s32.totalorder %v73, 8
  %v75 = vsel %vm74, 0, %v71
  %76 = vrot.lane.b32.xlu0 %v75, 120
  %v77 = vpop.permute.xlu0 %76
  %s78 = scalar_lea.vmem %s1, 56
  %79 = vst [vmem:[%s78] sm:$0xff] %v77
  %s80 = scalar_lea.vmem %s0, 64
  %v81 = vld [vmem:[%s80] sm:$0xff]
  %v82 = vlaneseq
  %v83 = vand.u32 %v82, 127
  %vm84 = vcmp.lt.s32.totalorder %v83, 8
  %v85 = vsel %vm84, 0, %v81
  %86 = vrot.lane.b32.xlu0 %v85, 120
  %v87 = vpop.permute.xlu0 %86
  %s88 = scalar_lea.vmem %s1, 64
  %89 = vst [vmem:[%s88] sm:$0xff] %v87
  %s90 = scalar_lea.vmem %s0, 72
  %v91 = vld [vmem:[%s90] sm:$0xff]
  %v92 = vlaneseq
  %v93 = vand.u32 %v92, 127
  %vm94 = vcmp.lt.s32.totalorder %v93, 8
  %v95 = vsel %vm94, 0, %v91
  %96 = vrot.lane.b32.xlu0 %v95, 120
  %v97 = vpop.permute.xlu0 %96
  %s98 = scalar_lea.vmem %s1, 72
  %99 = vst [vmem:[%s98] sm:$0xff] %v97
  %s100 = scalar_lea.vmem %s0, 80
  %v101 = vld [vmem:[%s100] sm:$0xff]
  %v102 = vlaneseq
  %v103 = vand.u32 %v102, 127
  %vm104 = vcmp.lt.s32.totalorder %v103, 8
  %v105 = vsel %vm104, 0, %v101
  %106 = vrot.lane.b32.xlu0 %v105, 120
  %v107 = vpop.permute.xlu0 %106
  %s108 = scalar_lea.vmem %s1, 80
  %109 = vst [vmem:[%s108] sm:$0xff] %v107
  %s110 = scalar_lea.vmem %s0, 88
  %v111 = vld [vmem:[%s110] sm:$0xff]
  %v112 = vlaneseq
  %v113 = vand.u32 %v112, 127
  %vm114 = vcmp.lt.s32.totalorder %v113, 8
  %v115 = vsel %vm114, 0, %v111
  %116 = vrot.lane.b32.xlu0 %v115, 120
  %v117 = vpop.permute.xlu0 %116
  %s118 = scalar_lea.vmem %s1, 88
  %119 = vst [vmem:[%s118] sm:$0xff] %v117
  %s120 = scalar_lea.vmem %s0, 96
  %v121 = vld [vmem:[%s120] sm:$0xff]
  %v122 = vlaneseq
  %v123 = vand.u32 %v122, 127
  %vm124 = vcmp.lt.s32.totalorder %v123, 8
  %v125 = vsel %vm124, 0, %v121
  %126 = vrot.lane.b32.xlu0 %v125, 120
  %v127 = vpop.permute.xlu0 %126
  %s128 = scalar_lea.vmem %s1, 96
  %129 = vst [vmem:[%s128] sm:$0xff] %v127
  %s130 = scalar_lea.vmem %s0, 104
  %v131 = vld [vmem:[%s130] sm:$0xff]
  %v132 = vlaneseq
  %v133 = vand.u32 %v132, 127
  %vm134 = vcmp.lt.s32.totalorder %v133, 8
  %v135 = vsel %vm134, 0, %v131
  %136 = vrot.lane.b32.xlu0 %v135, 120
  %v137 = vpop.permute.xlu0 %136
  %s138 = scalar_lea.vmem %s1, 104
  %139 = vst [vmem:[%s138] sm:$0xff] %v137
  %s140 = scalar_lea.vmem %s0, 112
  %v141 = vld [vmem:[%s140] sm:$0xff]
  %v142 = vlaneseq
  %v143 = vand.u32 %v142, 127
  %vm144 = vcmp.lt.s32.totalorder %v143, 8
  %v145 = vsel %vm144, 0, %v141
  %146 = vrot.lane.b32.xlu0 %v145, 120
  %v147 = vpop.permute.xlu0 %146
  %s148 = scalar_lea.vmem %s1, 112
  %149 = vst [vmem:[%s148] sm:$0xff] %v147
  %s150 = scalar_lea.vmem %s0, 120
  %v151 = vld [vmem:[%s150] sm:$0xff]
  %v152 = vlaneseq
  %v153 = vand.u32 %v152, 127
  %vm154 = vcmp.lt.s32.totalorder %v153, 8
  %v155 = vsel %vm154, 0, %v151
  %156 = vrot.lane.b32.xlu0 %v155, 120
  %v157 = vpop.permute.xlu0 %156
  %s158 = scalar_lea.vmem %s1, 120
  %159 = vst [vmem:[%s158] sm:$0xff] %v157
  %s160 = scalar_lea.vmem %s0, 128
  %v161 = vld [vmem:[%s160] sm:$0xff]
  %v162 = vlaneseq
  %v163 = vand.u32 %v162, 127
  %vm164 = vcmp.lt.s32.totalorder %v163, 8
  %v165 = vsel %vm164, 0, %v161
  %166 = vrot.lane.b32.xlu0 %v165, 120
  %v167 = vpop.permute.xlu0 %166
  %s168 = scalar_lea.vmem %s1, 128
  %169 = vst [vmem:[%s168] sm:$0xff] %v167
  %s170 = scalar_lea.vmem %s0, 136
  %v171 = vld [vmem:[%s170] sm:$0xff]
  %v172 = vlaneseq
  %v173 = vand.u32 %v172, 127
  %vm174 = vcmp.lt.s32.totalorder %v173, 8
  %v175 = vsel %vm174, 0, %v171
  %176 = vrot.lane.b32.xlu0 %v175, 120
  %v177 = vpop.permute.xlu0 %176
  %s178 = scalar_lea.vmem %s1, 136
  %179 = vst [vmem:[%s178] sm:$0xff] %v177
  %s180 = scalar_lea.vmem %s0, 144
  %v181 = vld [vmem:[%s180] sm:$0xff]
  %v182 = vlaneseq
  %v183 = vand.u32 %v182, 127
  %vm184 = vcmp.lt.s32.totalorder %v183, 8
  %v185 = vsel %vm184, 0, %v181
  %186 = vrot.lane.b32.xlu0 %v185, 120
  %v187 = vpop.permute.xlu0 %186
  %s188 = scalar_lea.vmem %s1, 144
  %189 = vst [vmem:[%s188] sm:$0xff] %v187
  %s190 = scalar_lea.vmem %s0, 152
  %v191 = vld [vmem:[%s190] sm:$0xff]
  %v192 = vlaneseq
  %v193 = vand.u32 %v192, 127
  %vm194 = vcmp.lt.s32.totalorder %v193, 8
  %v195 = vsel %vm194, 0, %v191
  %196 = vrot.lane.b32.xlu0 %v195, 120
  %v197 = vpop.permute.xlu0 %196
  %s198 = scalar_lea.vmem %s1, 152
  %199 = vst [vmem:[%s198] sm:$0xff] %v197
  %s200 = scalar_lea.vmem %s0, 160
  %v201 = vld [vmem:[%s200] sm:$0xff]
  %v202 = vlaneseq
  %v203 = vand.u32 %v202, 127
  %vm204 = vcmp.lt.s32.totalorder %v203, 8
  %v205 = vsel %vm204, 0, %v201
  %206 = vrot.lane.b32.xlu0 %v205, 120
  %v207 = vpop.permute.xlu0 %206
  %s208 = scalar_lea.vmem %s1, 160
  %209 = vst [vmem:[%s208] sm:$0xff] %v207
  %s210 = scalar_lea.vmem %s0, 168
  %v211 = vld [vmem:[%s210] sm:$0xff]
  %v212 = vlaneseq
  %v213 = vand.u32 %v212, 127
  %vm214 = vcmp.lt.s32.totalorder %v213, 8
  %v215 = vsel %vm214, 0, %v211
  %216 = vrot.lane.b32.xlu0 %v215, 120
  %v217 = vpop.permute.xlu0 %216
  %s218 = scalar_lea.vmem %s1, 168
  %219 = vst [vmem:[%s218] sm:$0xff] %v217
  %s220 = scalar_lea.vmem %s0, 176
  %v221 = vld [vmem:[%s220] sm:$0xff]
  %v222 = vlaneseq
  %v223 = vand.u32 %v222, 127
  %vm224 = vcmp.lt.s32.totalorder %v223, 8
  %v225 = vsel %vm224, 0, %v221
  %226 = vrot.lane.b32.xlu0 %v225, 120
  %v227 = vpop.permute.xlu0 %226
  %s228 = scalar_lea.vmem %s1, 176
  %229 = vst [vmem:[%s228] sm:$0xff] %v227
  %s230 = scalar_lea.vmem %s0, 184
  %v231 = vld [vmem:[%s230] sm:$0xff]
  %v232 = vlaneseq
  %v233 = vand.u32 %v232, 127
  %vm234 = vcmp.lt.s32.totalorder %v233, 8
  %v235 = vsel %vm234, 0, %v231
  %236 = vrot.lane.b32.xlu0 %v235, 120
  %v237 = vpop.permute.xlu0 %236
  %s238 = scalar_lea.vmem %s1, 184
  %239 = vst [vmem:[%s238] sm:$0xff] %v237
  %s240 = scalar_lea.vmem %s0, 192
  %v241 = vld [vmem:[%s240] sm:$0xff]
  %v242 = vlaneseq
  %v243 = vand.u32 %v242, 127
  %vm244 = vcmp.lt.s32.totalorder %v243, 8
  %v245 = vsel %vm244, 0, %v241
  %246 = vrot.lane.b32.xlu0 %v245, 120
  %v247 = vpop.permute.xlu0 %246
  %s248 = scalar_lea.vmem %s1, 192
  %249 = vst [vmem:[%s248] sm:$0xff] %v247
  %s250 = scalar_lea.vmem %s0, 200
  %v251 = vld [vmem:[%s250] sm:$0xff]
  %v252 = vlaneseq
  %v253 = vand.u32 %v252, 127
  %vm254 = vcmp.lt.s32.totalorder %v253, 8
  %v255 = vsel %vm254, 0, %v251
  %256 = vrot.lane.b32.xlu0 %v255, 120
  %v257 = vpop.permute.xlu0 %256
  %s258 = scalar_lea.vmem %s1, 200
  %259 = vst [vmem:[%s258] sm:$0xff] %v257
  %s260 = scalar_lea.vmem %s0, 208
  %v261 = vld [vmem:[%s260] sm:$0xff]
  %v262 = vlaneseq
  %v263 = vand.u32 %v262, 127
  %vm264 = vcmp.lt.s32.totalorder %v263, 8
  %v265 = vsel %vm264, 0, %v261
  %266 = vrot.lane.b32.xlu0 %v265, 120
  %v267 = vpop.permute.xlu0 %266
  %s268 = scalar_lea.vmem %s1, 208
  %269 = vst [vmem:[%s268] sm:$0xff] %v267
  %s270 = scalar_lea.vmem %s0, 216
  %v271 = vld [vmem:[%s270] sm:$0xff]
  %v272 = vlaneseq
  %v273 = vand.u32 %v272, 127
  %vm274 = vcmp.lt.s32.totalorder %v273, 8
  %v275 = vsel %vm274, 0, %v271
  %276 = vrot.lane.b32.xlu0 %v275, 120
  %v277 = vpop.permute.xlu0 %276
  %s278 = scalar_lea.vmem %s1, 216
  %279 = vst [vmem:[%s278] sm:$0xff] %v277
  %s280 = scalar_lea.vmem %s0, 224
  %v281 = vld [vmem:[%s280] sm:$0xff]
  %v282 = vlaneseq
  %v283 = vand.u32 %v282, 127
  %vm284 = vcmp.lt.s32.totalorder %v283, 8
  %v285 = vsel %vm284, 0, %v281
  %286 = vrot.lane.b32.xlu0 %v285, 120
  %v287 = vpop.permute.xlu0 %286
  %s288 = scalar_lea.vmem %s1, 224
  %289 = vst [vmem:[%s288] sm:$0xff] %v287
  %s290 = scalar_lea.vmem %s0, 232
  %v291 = vld [vmem:[%s290] sm:$0xff]
  %v292 = vlaneseq
  %v293 = vand.u32 %v292, 127
  %vm294 = vcmp.lt.s32.totalorder %v293, 8
  %v295 = vsel %vm294, 0, %v291
  %296 = vrot.lane.b32.xlu0 %v295, 120
  %v297 = vpop.permute.xlu0 %296
  %s298 = scalar_lea.vmem %s1, 232
  %299 = vst [vmem:[%s298] sm:$0xff] %v297
  %s300 = scalar_lea.vmem %s0, 240
  %v301 = vld [vmem:[%s300] sm:$0xff]
  %v302 = vlaneseq
  %v303 = vand.u32 %v302, 127
  %vm304 = vcmp.lt.s32.totalorder %v303, 8
  %v305 = vsel %vm304, 0, %v301
  %306 = vrot.lane.b32.xlu0 %v305, 120
  %v307 = vpop.permute.xlu0 %306
  %s308 = scalar_lea.vmem %s1, 240
  %309 = vst [vmem:[%s308] sm:$0xff] %v307
  %s310 = scalar_lea.vmem %s0, 248
  %v311 = vld [vmem:[%s310] sm:$0xff]
  %v312 = vlaneseq
  %v313 = vand.u32 %v312, 127
  %vm314 = vcmp.lt.s32.totalorder %v313, 8
  %v315 = vsel %vm314, 0, %v311
  %316 = vrot.lane.b32.xlu0 %v315, 120
  %v317 = vpop.permute.xlu0 %316
  %s318 = scalar_lea.vmem %s1, 248
  %319 = vst [vmem:[%s318] sm:$0xff] %v317
  %s320 = scalar_lea.vmem %s0, 256
  %v321 = vld [vmem:[%s320] sm:$0xff]
  %v322 = vlaneseq
  %v323 = vand.u32 %v322, 127
  %vm324 = vcmp.lt.s32.totalorder %v323, 8
  %v325 = vsel %vm324, 0, %v321
  %326 = vrot.lane.b32.xlu0 %v325, 120
  %v327 = vpop.permute.xlu0 %326
  %s328 = scalar_lea.vmem %s1, 256
  %329 = vst [vmem:[%s328] sm:$0xff] %v327
  %s330 = scalar_lea.vmem %s0, 264
  %v331 = vld [vmem:[%s330] sm:$0xff]
  %v332 = vlaneseq
  %v333 = vand.u32 %v332, 127
  %vm334 = vcmp.lt.s32.totalorder %v333, 8
  %v335 = vsel %vm334, 0, %v331
  %336 = vrot.lane.b32.xlu0 %v335, 120
  %v337 = vpop.permute.xlu0 %336
  %s338 = scalar_lea.vmem %s1, 264
  %339 = vst [vmem:[%s338] sm:$0xff] %v337
  %s340 = scalar_lea.vmem %s0, 272
  %v341 = vld [vmem:[%s340] sm:$0xff]
  %v342 = vlaneseq
  %v343 = vand.u32 %v342, 127
  %vm344 = vcmp.lt.s32.totalorder %v343, 8
  %v345 = vsel %vm344, 0, %v341
  %346 = vrot.lane.b32.xlu0 %v345, 120
  %v347 = vpop.permute.xlu0 %346
  %s348 = scalar_lea.vmem %s1, 272
  %349 = vst [vmem:[%s348] sm:$0xff] %v347
  %s350 = scalar_lea.vmem %s0, 280
  %v351 = vld [vmem:[%s350] sm:$0xff]
  %v352 = vlaneseq
  %v353 = vand.u32 %v352, 127
  %vm354 = vcmp.lt.s32.totalorder %v353, 8
  %v355 = vsel %vm354, 0, %v351
  %356 = vrot.lane.b32.xlu0 %v355, 120
  %v357 = vpop.permute.xlu0 %356
  %s358 = scalar_lea.vmem %s1, 280
  %359 = vst [vmem:[%s358] sm:$0xff] %v357
  %s360 = scalar_lea.vmem %s0, 288
  %v361 = vld [vmem:[%s360] sm:$0xff]
  %v362 = vlaneseq
  %v363 = vand.u32 %v362, 127
  %vm364 = vcmp.lt.s32.totalorder %v363, 8
  %v365 = vsel %vm364, 0, %v361
  %366 = vrot.lane.b32.xlu0 %v365, 120
  %v367 = vpop.permute.xlu0 %366
  %s368 = scalar_lea.vmem %s1, 288
  %369 = vst [vmem:[%s368] sm:$0xff] %v367
  %s370 = scalar_lea.vmem %s0, 296
  %v371 = vld [vmem:[%s370] sm:$0xff]
  %v372 = vlaneseq
  %v373 = vand.u32 %v372, 127
  %vm374 = vcmp.lt.s32.totalorder %v373, 8
  %v375 = vsel %vm374, 0, %v371
  %376 = vrot.lane.b32.xlu0 %v375, 120
  %v377 = vpop.permute.xlu0 %376
  %s378 = scalar_lea.vmem %s1, 296
  %379 = vst [vmem:[%s378] sm:$0xff] %v377
  %s380 = scalar_lea.vmem %s0, 304
  %v381 = vld [vmem:[%s380] sm:$0xff]
  %v382 = vlaneseq
  %v383 = vand.u32 %v382, 127
  %vm384 = vcmp.lt.s32.totalorder %v383, 8
  %v385 = vsel %vm384, 0, %v381
  %386 = vrot.lane.b32.xlu0 %v385, 120
  %v387 = vpop.permute.xlu0 %386
  %s388 = scalar_lea.vmem %s1, 304
  %389 = vst [vmem:[%s388] sm:$0xff] %v387
  %s390 = scalar_lea.vmem %s0, 312
  %v391 = vld [vmem:[%s390] sm:$0xff]
  %v392 = vlaneseq
  %v393 = vand.u32 %v392, 127
  %vm394 = vcmp.lt.s32.totalorder %v393, 8
  %v395 = vsel %vm394, 0, %v391
  %396 = vrot.lane.b32.xlu0 %v395, 120
  %v397 = vpop.permute.xlu0 %396
  %s398 = scalar_lea.vmem %s1, 312
  %399 = vst [vmem:[%s398] sm:$0xff] %v397
  %s400 = scalar_lea.vmem %s0, 320
  %v401 = vld [vmem:[%s400] sm:$0xff]
  %v402 = vlaneseq
  %v403 = vand.u32 %v402, 127
  %vm404 = vcmp.lt.s32.totalorder %v403, 8
  %v405 = vsel %vm404, 0, %v401
  %406 = vrot.lane.b32.xlu0 %v405, 120
  %v407 = vpop.permute.xlu0 %406
  %s408 = scalar_lea.vmem %s1, 320
  %409 = vst [vmem:[%s408] sm:$0xff] %v407
  %s410 = scalar_lea.vmem %s0, 328
  %v411 = vld [vmem:[%s410] sm:$0xff]
  %v412 = vlaneseq
  %v413 = vand.u32 %v412, 127
  %vm414 = vcmp.lt.s32.totalorder %v413, 8
  %v415 = vsel %vm414, 0, %v411
  %416 = vrot.lane.b32.xlu0 %v415, 120
  %v417 = vpop.permute.xlu0 %416
  %s418 = scalar_lea.vmem %s1, 328
  %419 = vst [vmem:[%s418] sm:$0xff] %v417
  %s420 = scalar_lea.vmem %s0, 336
  %v421 = vld [vmem:[%s420] sm:$0xff]
  %v422 = vlaneseq
  %v423 = vand.u32 %v422, 127
  %vm424 = vcmp.lt.s32.totalorder %v423, 8
  %v425 = vsel %vm424, 0, %v421
  %426 = vrot.lane.b32.xlu0 %v425, 120
  %v427 = vpop.permute.xlu0 %426
  %s428 = scalar_lea.vmem %s1, 336
  %429 = vst [vmem:[%s428] sm:$0xff] %v427
  %s430 = scalar_lea.vmem %s0, 344
  %v431 = vld [vmem:[%s430] sm:$0xff]
  %v432 = vlaneseq
  %v433 = vand.u32 %v432, 127
  %vm434 = vcmp.lt.s32.totalorder %v433, 8
  %v435 = vsel %vm434, 0, %v431
  %436 = vrot.lane.b32.xlu0 %v435, 120
  %v437 = vpop.permute.xlu0 %436
  %s438 = scalar_lea.vmem %s1, 344
  %439 = vst [vmem:[%s438] sm:$0xff] %v437
  %s440 = scalar_lea.vmem %s0, 352
  %v441 = vld [vmem:[%s440] sm:$0xff]
  %v442 = vlaneseq
  %v443 = vand.u32 %v442, 127
  %vm444 = vcmp.lt.s32.totalorder %v443, 8
  %v445 = vsel %vm444, 0, %v441
  %446 = vrot.lane.b32.xlu0 %v445, 120
  %v447 = vpop.permute.xlu0 %446
  %s448 = scalar_lea.vmem %s1, 352
  %449 = vst [vmem:[%s448] sm:$0xff] %v447
  %s450 = scalar_lea.vmem %s0, 360
  %v451 = vld [vmem:[%s450] sm:$0xff]
  %v452 = vlaneseq
  %v453 = vand.u32 %v452, 127
  %vm454 = vcmp.lt.s32.totalorder %v453, 8
  %v455 = vsel %vm454, 0, %v451
  %456 = vrot.lane.b32.xlu0 %v455, 120
  %v457 = vpop.permute.xlu0 %456
  %s458 = scalar_lea.vmem %s1, 360
  %459 = vst [vmem:[%s458] sm:$0xff] %v457
  %s460 = scalar_lea.vmem %s0, 368
  %v461 = vld [vmem:[%s460] sm:$0xff]
  %v462 = vlaneseq
  %v463 = vand.u32 %v462, 127
  %vm464 = vcmp.lt.s32.totalorder %v463, 8
  %v465 = vsel %vm464, 0, %v461
  %466 = vrot.lane.b32.xlu0 %v465, 120
  %v467 = vpop.permute.xlu0 %466
  %s468 = scalar_lea.vmem %s1, 368
  %469 = vst [vmem:[%s468] sm:$0xff] %v467
  %s470 = scalar_lea.vmem %s0, 376
  %v471 = vld [vmem:[%s470] sm:$0xff]
  %v472 = vlaneseq
  %v473 = vand.u32 %v472, 127
  %vm474 = vcmp.lt.s32.totalorder %v473, 8
  %v475 = vsel %vm474, 0, %v471
  %476 = vrot.lane.b32.xlu0 %v475, 120
  %v477 = vpop.permute.xlu0 %476
  %s478 = scalar_lea.vmem %s1, 376
  %479 = vst [vmem:[%s478] sm:$0xff] %v477
  %s480 = scalar_lea.vmem %s0, 384
  %v481 = vld [vmem:[%s480] sm:$0xff]
  %v482 = vlaneseq
  %v483 = vand.u32 %v482, 127
  %vm484 = vcmp.lt.s32.totalorder %v483, 8
  %v485 = vsel %vm484, 0, %v481
  %486 = vrot.lane.b32.xlu0 %v485, 120
  %v487 = vpop.permute.xlu0 %486
  %s488 = scalar_lea.vmem %s1, 384
  %489 = vst [vmem:[%s488] sm:$0xff] %v487
  %s490 = scalar_lea.vmem %s0, 392
  %v491 = vld [vmem:[%s490] sm:$0xff]
  %v492 = vlaneseq
  %v493 = vand.u32 %v492, 127
  %vm494 = vcmp.lt.s32.totalorder %v493, 8
  %v495 = vsel %vm494, 0, %v491
  %496 = vrot.lane.b32.xlu0 %v495, 120
  %v497 = vpop.permute.xlu0 %496
  %s498 = scalar_lea.vmem %s1, 392
  %499 = vst [vmem:[%s498] sm:$0xff] %v497
  %s500 = scalar_lea.vmem %s0, 400
  %v501 = vld [vmem:[%s500] sm:$0xff]
  %v502 = vlaneseq
  %v503 = vand.u32 %v502, 127
  %vm504 = vcmp.lt.s32.totalorder %v503, 8
  %v505 = vsel %vm504, 0, %v501
  %506 = vrot.lane.b32.xlu0 %v505, 120
  %v507 = vpop.permute.xlu0 %506
  %s508 = scalar_lea.vmem %s1, 400
  %509 = vst [vmem:[%s508] sm:$0xff] %v507
  %s510 = scalar_lea.vmem %s0, 408
  %v511 = vld [vmem:[%s510] sm:$0xff]
  %v512 = vlaneseq
  %v513 = vand.u32 %v512, 127
  %vm514 = vcmp.lt.s32.totalorder %v513, 8
  %v515 = vsel %vm514, 0, %v511
  %516 = vrot.lane.b32.xlu0 %v515, 120
  %v517 = vpop.permute.xlu0 %516
  %s518 = scalar_lea.vmem %s1, 408
  %519 = vst [vmem:[%s518] sm:$0xff] %v517
  %s520 = scalar_lea.vmem %s0, 416
  %v521 = vld [vmem:[%s520] sm:$0xff]
  %v522 = vlaneseq
  %v523 = vand.u32 %v522, 127
  %vm524 = vcmp.lt.s32.totalorder %v523, 8
  %v525 = vsel %vm524, 0, %v521
  %526 = vrot.lane.b32.xlu0 %v525, 120
  %v527 = vpop.permute.xlu0 %526
  %s528 = scalar_lea.vmem %s1, 416
  %529 = vst [vmem:[%s528] sm:$0xff] %v527
  %s530 = scalar_lea.vmem %s0, 424
  %v531 = vld [vmem:[%s530] sm:$0xff]
  %v532 = vlaneseq
  %v533 = vand.u32 %v532, 127
  %vm534 = vcmp.lt.s32.totalorder %v533, 8
  %v535 = vsel %vm534, 0, %v531
  %536 = vrot.lane.b32.xlu0 %v535, 120
  %v537 = vpop.permute.xlu0 %536
  %s538 = scalar_lea.vmem %s1, 424
  %539 = vst [vmem:[%s538] sm:$0xff] %v537
  %s540 = scalar_lea.vmem %s0, 432
  %v541 = vld [vmem:[%s540] sm:$0xff]
  %v542 = vlaneseq
  %v543 = vand.u32 %v542, 127
  %vm544 = vcmp.lt.s32.totalorder %v543, 8
  %v545 = vsel %vm544, 0, %v541
  %546 = vrot.lane.b32.xlu0 %v545, 120
  %v547 = vpop.permute.xlu0 %546
  %s548 = scalar_lea.vmem %s1, 432
  %549 = vst [vmem:[%s548] sm:$0xff] %v547
  %s550 = scalar_lea.vmem %s0, 440
  %v551 = vld [vmem:[%s550] sm:$0xff]
  %v552 = vlaneseq
  %v553 = vand.u32 %v552, 127
  %vm554 = vcmp.lt.s32.totalorder %v553, 8
  %v555 = vsel %vm554, 0, %v551
  %556 = vrot.lane.b32.xlu0 %v555, 120
  %v557 = vpop.permute.xlu0 %556
  %s558 = scalar_lea.vmem %s1, 440
  %559 = vst [vmem:[%s558] sm:$0xff] %v557
  %s560 = scalar_lea.vmem %s0, 448
  %v561 = vld [vmem:[%s560] sm:$0xff]
  %v562 = vlaneseq
  %v563 = vand.u32 %v562, 127
  %vm564 = vcmp.lt.s32.totalorder %v563, 8
  %v565 = vsel %vm564, 0, %v561
  %566 = vrot.lane.b32.xlu0 %v565, 120
  %v567 = vpop.permute.xlu0 %566
  %s568 = scalar_lea.vmem %s1, 448
  %569 = vst [vmem:[%s568] sm:$0xff] %v567
  %s570 = scalar_lea.vmem %s0, 456
  %v571 = vld [vmem:[%s570] sm:$0xff]
  %v572 = vlaneseq
  %v573 = vand.u32 %v572, 127
  %vm574 = vcmp.lt.s32.totalorder %v573, 8
  %v575 = vsel %vm574, 0, %v571
  %576 = vrot.lane.b32.xlu0 %v575, 120
  %v577 = vpop.permute.xlu0 %576
  %s578 = scalar_lea.vmem %s1, 456
  %579 = vst [vmem:[%s578] sm:$0xff] %v577
  %s580 = scalar_lea.vmem %s0, 464
  %v581 = vld [vmem:[%s580] sm:$0xff]
  %v582 = vlaneseq
  %v583 = vand.u32 %v582, 127
  %vm584 = vcmp.lt.s32.totalorder %v583, 8
  %v585 = vsel %vm584, 0, %v581
  %586 = vrot.lane.b32.xlu0 %v585, 120
  %v587 = vpop.permute.xlu0 %586
  %s588 = scalar_lea.vmem %s1, 464
  %589 = vst [vmem:[%s588] sm:$0xff] %v587
  %s590 = scalar_lea.vmem %s0, 472
  %v591 = vld [vmem:[%s590] sm:$0xff]
  %v592 = vlaneseq
  %v593 = vand.u32 %v592, 127
  %vm594 = vcmp.lt.s32.totalorder %v593, 8
  %v595 = vsel %vm594, 0, %v591
  %596 = vrot.lane.b32.xlu0 %v595, 120
  %v597 = vpop.permute.xlu0 %596
  %s598 = scalar_lea.vmem %s1, 472
  %599 = vst [vmem:[%s598] sm:$0xff] %v597
  %s600 = scalar_lea.vmem %s0, 480
  %v601 = vld [vmem:[%s600] sm:$0xff]
  %v602 = vlaneseq
  %v603 = vand.u32 %v602, 127
  %vm604 = vcmp.lt.s32.totalorder %v603, 8
  %v605 = vsel %vm604, 0, %v601
  %606 = vrot.lane.b32.xlu0 %v605, 120
  %v607 = vpop.permute.xlu0 %606
  %s608 = scalar_lea.vmem %s1, 480
  %609 = vst [vmem:[%s608] sm:$0xff] %v607
  %s610 = scalar_lea.vmem %s0, 488
  %v611 = vld [vmem:[%s610] sm:$0xff]
  %v612 = vlaneseq
  %v613 = vand.u32 %v612, 127
  %vm614 = vcmp.lt.s32.totalorder %v613, 8
  %v615 = vsel %vm614, 0, %v611
  %616 = vrot.lane.b32.xlu0 %v615, 120
  %v617 = vpop.permute.xlu0 %616
  %s618 = scalar_lea.vmem %s1, 488
  %619 = vst [vmem:[%s618] sm:$0xff] %v617
  %s620 = scalar_lea.vmem %s0, 496
  %v621 = vld [vmem:[%s620] sm:$0xff]
  %v622 = vlaneseq
  %v623 = vand.u32 %v622, 127
  %vm624 = vcmp.lt.s32.totalorder %v623, 8
  %v625 = vsel %vm624, 0, %v621
  %626 = vrot.lane.b32.xlu0 %v625, 120
  %v627 = vpop.permute.xlu0 %626
  %s628 = scalar_lea.vmem %s1, 496
  %629 = vst [vmem:[%s628] sm:$0xff] %v627
  %s630 = scalar_lea.vmem %s0, 504
  %v631 = vld [vmem:[%s630] sm:$0xff]
  %v632 = vlaneseq
  %v633 = vand.u32 %v632, 127
  %vm634 = vcmp.lt.s32.totalorder %v633, 8
  %v635 = vsel %vm634, 0, %v631
  %636 = vrot.lane.b32.xlu0 %v635, 120
  %v637 = vpop.permute.xlu0 %636
  %s638 = scalar_lea.vmem %s1, 504
  %639 = vst [vmem:[%s638] sm:$0xff] %v637

// kernel: _lambda_.1
$region0: #{_lambda_.1}
  #allocation0 [shape = 'u32[]', space=smem, size = 0x4, offset = 0x4, fixed_abs, tag = 'smem constant byte address 0x4 - core index']
  #allocation1 [shape = 'u32[144,128]{1,0:T(1,128)}', space=vmem, size = 0x12000, scoped, tag = 'internal scratch']
  %s0 = inlined_call_operand.vmem [shape: bf16[512,512], index: 0, kind: input, shape index: {}]
  %s1 = inlined_call_operand.vmem [shape: bf16[256,288], index: 1, kind: input, shape index: {}]
  %s2 = inlined_call_operand.vmem [shape: f32[1,288], index: 2, kind: input, shape index: {}]
  %s3 = inlined_call_operand.vmem [shape: bf16[288,32], index: 3, kind: input, shape index: {}]
  %s4 = inlined_call_operand.vmem [shape: f32[1,32], index: 4, kind: input, shape index: {}]
  %s5 = inlined_call_operand.vmem [shape: bf16[128,512], index: 5, kind: input, shape index: {}]
  %s6 = inlined_call_operand.vmem [shape: f32[1,512], index: 6, kind: input, shape index: {}]
  %s7 = inlined_call_operand.vmem [shape: bf16[512,128], index: 7, kind: input, shape index: {}]
  %s8 = inlined_call_operand.vmem [shape: f32[1,128], index: 8, kind: input, shape index: {}]
  %s9 = inlined_call_operand.vmem [shape: bf16[32,128], index: 9, kind: input, shape index: {}]
  %s10 = inlined_call_operand.vmem [shape: bf16[128,128], index: 10, kind: input, shape index: {}]
  %s11 = inlined_call_operand.vmem [shape: bf16[128,128], index: 11, kind: input, shape index: {}]
  %s12 = inlined_call_operand.vmem [shape: f32[1,128], index: 12, kind: input, shape index: {}]
  %s13 = inlined_call_operand.vmem [shape: bf16[128,128], index: 13, kind: input, shape index: {}]
  %s14 = inlined_call_operand.vmem [shape: f32[1,128], index: 14, kind: input, shape index: {}]
  %s15 = inlined_call_operand.vmem [shape: f32[512,128], index: 15, kind: output, shape index: {}]
  %s16 = sld [smem:[#allocation0]]
  $region93: #{_lambda_.1} parent=0
    _
  %s18 = ssub.s32 1, %s16
  %s19 = scalar_select 0, %s18, %s16
  loop: start=0, step=1, limit=6
  $region2: #{_lambda_.1} parent=0 // loop_pre_header
    _
  $region3: #{_lambda_.1} parent=0 // loop_header
    %s21 = sphi 0, %s25
    %p22 = scmp.ge.s32.totalorder %s21, 6
    %s31 = sphi 0, %s33
    %s34 = sphi 0, %s31
    %s35 = sphi 0, %s34
    %s51 = sphi 0, %s35
    %s55 = sphi 0, %s55
    %s57 = sphi 0, %s55
    %s58 = sphi 0, %s57
    %s72 = sphi 0, %s58
    %s76 = sphi 0, %s76
    %s78 = sphi 0, %s76
    %s79 = sphi 0, %s78
    %s93 = sphi 0, %s79
    %s97 = sphi 0, %s97
    %s99 = sphi 0, %s97
    %s100 = sphi 0, %s99
    %s114 = sphi 0, %s100
    %s118 = sphi 0, %s118
    %s120 = sphi 0, %s118
    %s121 = sphi 0, %s120
    %s135 = sphi 0, %s121
    %s139 = sphi 0, %s139
    %s141 = sphi 0, %s139
    %s142 = sphi 0, %s141
    %s156 = sphi 0, %s142
    %s160 = sphi 0, %s160
    %s162 = sphi 0, %s160
    %s163 = sphi 0, %s162
    %s177 = sphi 0, %s163
    %s181 = sphi 0, %s181
    %s183 = sphi 0, %s181
    %s184 = sphi 0, %s183
    %s198 = sphi 0, %s184
    %s202 = sphi 0, %s202
    %s204 = sphi 0, %s202
    %s205 = sphi 0, %s204
    %s219 = sphi 0, %s205
    %s223 = sphi 0, %s223
    %s225 = sphi 0, %s223
    %s226 = sphi 0, %s225
    %s240 = sphi 0, %s226
    %s244 = sphi 0, %s244
    %s246 = sphi 0, %s244
    %s247 = sphi 0, %s246
    %s261 = sphi 0, %s247
    %s265 = sphi 0, %s265
    %s267 = sphi 0, %s265
    %s268 = sphi 0, %s267
    %s282 = sphi 0, %s268
    %s286 = sphi 0, %s286
    %s288 = sphi 0, %s286
    %s289 = sphi 0, %s288
    %s303 = sphi 0, %s289
    %s307 = sphi 0, %s307
    %s309 = sphi 0, %s307
    %s310 = sphi 0, %s309
    %s324 = sphi 0, %s310
    %s328 = sphi 0, %s328
    %s330 = sphi 0, %s328
    %s331 = sphi 0, %s330
    %s345 = sphi 0, %s331
    %s351 = sphi 0, %s353
    %s354 = sphi 0, %s351
    %s355 = sphi 0, %s354
    %s371 = sphi 0, %s355
  $region4: #{_lambda_.1} parent=0 // loop_header_branch
    %24 = sbr.rel (%p22) target = $region8
  $region5: #{_lambda_.1} parent=0 // loop_body
    %s26 = ssub.s32 %s21, 1
    %s27 = ssub.s32 %s21, 2
    %s28 = sadd.s32 %s21, 1
    %s29 = ssub.s32 %s21, %s28
    %p30 = scmp.eq.s32.totalorder %s29, 0
    %s32 = sadd.s32 %s31, 1
    %s33 = scalar_select %p30, %s31, %s32
    %p36 = pneg %p30
    %p37 = scmp.eq.s32.totalorder %s21, 3
    %p38 = por %p36, %p37
    %p39 = scmp.ne.s32.totalorder %s31, %s34
    %p40 = scmp.eq.s32.totalorder %s21, 0
    %p41 = por %p39, %p40
    %p42 = scmp.ne.s32.totalorder %s31, %s34
    %p43 = scmp.eq.s32.totalorder %s26, 3
    %p44 = por %p42, %p43
    %p45 = scmp.ne.s32.totalorder %s34, %s35
    %p46 = scmp.eq.s32.totalorder %s26, 0
    %p47 = por %p45, %p46
    %p48 = scmp.ne.s32.totalorder %s34, %s35
    %p49 = scmp.eq.s32.totalorder %s27, 3
    %p50 = por %p48, %p49
    %p52 = scmp.ne.s32.totalorder %s35, %s51
    %p53 = scmp.eq.s32.totalorder %s27, 0
    %p54 = por %p52, %p53
    %s56 = sadd.s32 %s55, 1
    %p59 = scmp.eq.s32.totalorder %s21, 3
    %p60 = scmp.ne.s32.totalorder %s55, %s57
    %p61 = scmp.eq.s32.totalorder %s21, 0
    %p62 = por %p60, %p61
    %p63 = scmp.ne.s32.totalorder %s55, %s57
    %p64 = scmp.eq.s32.totalorder %s26, 3
    %p65 = por %p63, %p64
    %p66 = scmp.ne.s32.totalorder %s57, %s58
    %p67 = scmp.eq.s32.totalorder %s26, 0
    %p68 = por %p66, %p67
    %p69 = scmp.ne.s32.totalorder %s57, %s58
    %p70 = scmp.eq.s32.totalorder %s27, 3
    %p71 = por %p69, %p70
    %p73 = scmp.ne.s32.totalorder %s58, %s72
    %p74 = scmp.eq.s32.totalorder %s27, 0
    %p75 = por %p73, %p74
    %s77 = sadd.s32 %s76, 1
    %p80 = scmp.eq.s32.totalorder %s21, 3
    %p81 = scmp.ne.s32.totalorder %s76, %s78
    %p82 = scmp.eq.s32.totalorder %s21, 0
    %p83 = por %p81, %p82
    %p84 = scmp.ne.s32.totalorder %s76, %s78
    %p85 = scmp.eq.s32.totalorder %s26, 3
    %p86 = por %p84, %p85
    %p87 = scmp.ne.s32.totalorder %s78, %s79
    %p88 = scmp.eq.s32.totalorder %s26, 0
    %p89 = por %p87, %p88
    %p90 = scmp.ne.s32.totalorder %s78, %s79
    %p91 = scmp.eq.s32.totalorder %s27, 3
    %p92 = por %p90, %p91
    %p94 = scmp.ne.s32.totalorder %s79, %s93
    %p95 = scmp.eq.s32.totalorder %s27, 0
    %p96 = por %p94, %p95
    %s98 = sadd.s32 %s97, 1
    %p101 = scmp.eq.s32.totalorder %s21, 3
    %p102 = scmp.ne.s32.totalorder %s97, %s99
    %p103 = scmp.eq.s32.totalorder %s21, 0
    %p104 = por %p102, %p103
    %p105 = scmp.ne.s32.totalorder %s97, %s99
    %p106 = scmp.eq.s32.totalorder %s26, 3
    %p107 = por %p105, %p106
    %p108 = scmp.ne.s32.totalorder %s99, %s100
    %p109 = scmp.eq.s32.totalorder %s26, 0
    %p110 = por %p108, %p109
    %p111 = scmp.ne.s32.totalorder %s99, %s100
    %p112 = scmp.eq.s32.totalorder %s27, 3
    %p113 = por %p111, %p112
    %p115 = scmp.ne.s32.totalorder %s100, %s114
    %p116 = scmp.eq.s32.totalorder %s27, 0
    %p117 = por %p115, %p116
    %s119 = sadd.s32 %s118, 1
    %p122 = scmp.eq.s32.totalorder %s21, 3
    %p123 = scmp.ne.s32.totalorder %s118, %s120
    %p124 = scmp.eq.s32.totalorder %s21, 0
    %p125 = por %p123, %p124
    %p126 = scmp.ne.s32.totalorder %s118, %s120
    %p127 = scmp.eq.s32.totalorder %s26, 3
    %p128 = por %p126, %p127
    %p129 = scmp.ne.s32.totalorder %s120, %s121
    %p130 = scmp.eq.s32.totalorder %s26, 0
    %p131 = por %p129, %p130
    %p132 = scmp.ne.s32.totalorder %s120, %s121
    %p133 = scmp.eq.s32.totalorder %s27, 3
    %p134 = por %p132, %p133
    %p136 = scmp.ne.s32.totalorder %s121, %s135
    %p137 = scmp.eq.s32.totalorder %s27, 0
    %p138 = por %p136, %p137
    %s140 = sadd.s32 %s139, 1
    %p143 = scmp.eq.s32.totalorder %s21, 3
    %p144 = scmp.ne.s32.totalorder %s139, %s141
    %p145 = scmp.eq.s32.totalorder %s21, 0
    %p146 = por %p144, %p145
    %p147 = scmp.ne.s32.totalorder %s139, %s141
    %p148 = scmp.eq.s32.totalorder %s26, 3
    %p149 = por %p147, %p148
    %p150 = scmp.ne.s32.totalorder %s141, %s142
    %p151 = scmp.eq.s32.totalorder %s26, 0
    %p152 = por %p150, %p151
    %p153 = scmp.ne.s32.totalorder %s141, %s142
    %p154 = scmp.eq.s32.totalorder %s27, 3
    %p155 = por %p153, %p154
    %p157 = scmp.ne.s32.totalorder %s142, %s156
    %p158 = scmp.eq.s32.totalorder %s27, 0
    %p159 = por %p157, %p158
    %s161 = sadd.s32 %s160, 1
    %p164 = scmp.eq.s32.totalorder %s21, 3
    %p165 = scmp.ne.s32.totalorder %s160, %s162
    %p166 = scmp.eq.s32.totalorder %s21, 0
    %p167 = por %p165, %p166
    %p168 = scmp.ne.s32.totalorder %s160, %s162
    %p169 = scmp.eq.s32.totalorder %s26, 3
    %p170 = por %p168, %p169
    %p171 = scmp.ne.s32.totalorder %s162, %s163
    %p172 = scmp.eq.s32.totalorder %s26, 0
    %p173 = por %p171, %p172
    %p174 = scmp.ne.s32.totalorder %s162, %s163
    %p175 = scmp.eq.s32.totalorder %s27, 3
    %p176 = por %p174, %p175
    %p178 = scmp.ne.s32.totalorder %s163, %s177
    %p179 = scmp.eq.s32.totalorder %s27, 0
    %p180 = por %p178, %p179
    %s182 = sadd.s32 %s181, 1
    %p185 = scmp.eq.s32.totalorder %s21, 3
    %p186 = scmp.ne.s32.totalorder %s181, %s183
    %p187 = scmp.eq.s32.totalorder %s21, 0
    %p188 = por %p186, %p187
    %p189 = scmp.ne.s32.totalorder %s181, %s183
    %p190 = scmp.eq.s32.totalorder %s26, 3
    %p191 = por %p189, %p190
    %p192 = scmp.ne.s32.totalorder %s183, %s184
    %p193 = scmp.eq.s32.totalorder %s26, 0
    %p194 = por %p192, %p193
    %p195 = scmp.ne.s32.totalorder %s183, %s184
    %p196 = scmp.eq.s32.totalorder %s27, 3
    %p197 = por %p195, %p196
    %p199 = scmp.ne.s32.totalorder %s184, %s198
    %p200 = scmp.eq.s32.totalorder %s27, 0
    %p201 = por %p199, %p200
    %s203 = sadd.s32 %s202, 1
    %p206 = scmp.eq.s32.totalorder %s21, 3
    %p207 = scmp.ne.s32.totalorder %s202, %s204
    %p208 = scmp.eq.s32.totalorder %s21, 0
    %p209 = por %p207, %p208
    %p210 = scmp.ne.s32.totalorder %s202, %s204
    %p211 = scmp.eq.s32.totalorder %s26, 3
    %p212 = por %p210, %p211
    %p213 = scmp.ne.s32.totalorder %s204, %s205
    %p214 = scmp.eq.s32.totalorder %s26, 0
    %p215 = por %p213, %p214
    %p216 = scmp.ne.s32.totalorder %s204, %s205
    %p217 = scmp.eq.s32.totalorder %s27, 3
    %p218 = por %p216, %p217
    %p220 = scmp.ne.s32.totalorder %s205, %s219
    %p221 = scmp.eq.s32.totalorder %s27, 0
    %p222 = por %p220, %p221
    %s224 = sadd.s32 %s223, 1
    %p227 = scmp.eq.s32.totalorder %s21, 3
    %p228 = scmp.ne.s32.totalorder %s223, %s225
    %p229 = scmp.eq.s32.totalorder %s21, 0
    %p230 = por %p228, %p229
    %p231 = scmp.ne.s32.totalorder %s223, %s225
    %p232 = scmp.eq.s32.totalorder %s26, 3
    %p233 = por %p231, %p232
    %p234 = scmp.ne.s32.totalorder %s225, %s226
    %p235 = scmp.eq.s32.totalorder %s26, 0
    %p236 = por %p234, %p235
    %p237 = scmp.ne.s32.totalorder %s225, %s226
    %p238 = scmp.eq.s32.totalorder %s27, 3
    %p239 = por %p237, %p238
    %p241 = scmp.ne.s32.totalorder %s226, %s240
    %p242 = scmp.eq.s32.totalorder %s27, 0
    %p243 = por %p241, %p242
    %s245 = sadd.s32 %s244, 1
    %p248 = scmp.eq.s32.totalorder %s21, 3
    %p249 = scmp.ne.s32.totalorder %s244, %s246
    %p250 = scmp.eq.s32.totalorder %s21, 0
    %p251 = por %p249, %p250
    %p252 = scmp.ne.s32.totalorder %s244, %s246
    %p253 = scmp.eq.s32.totalorder %s26, 3
    %p254 = por %p252, %p253
    %p255 = scmp.ne.s32.totalorder %s246, %s247
    %p256 = scmp.eq.s32.totalorder %s26, 0
    %p257 = por %p255, %p256
    %p258 = scmp.ne.s32.totalorder %s246, %s247
    %p259 = scmp.eq.s32.totalorder %s27, 3
    %p260 = por %p258, %p259
    %p262 = scmp.ne.s32.totalorder %s247, %s261
    %p263 = scmp.eq.s32.totalorder %s27, 0
    %p264 = por %p262, %p263
    %s266 = sadd.s32 %s265, 1
    %p269 = scmp.eq.s32.totalorder %s21, 3
    %p270 = scmp.ne.s32.totalorder %s265, %s267
    %p271 = scmp.eq.s32.totalorder %s21, 0
    %p272 = por %p270, %p271
    %p273 = scmp.ne.s32.totalorder %s265, %s267
    %p274 = scmp.eq.s32.totalorder %s26, 3
    %p275 = por %p273, %p274
    %p276 = scmp.ne.s32.totalorder %s267, %s268
    %p277 = scmp.eq.s32.totalorder %s26, 0
    %p278 = por %p276, %p277
    %p279 = scmp.ne.s32.totalorder %s267, %s268
    %p280 = scmp.eq.s32.totalorder %s27, 3
    %p281 = por %p279, %p280
    %p283 = scmp.ne.s32.totalorder %s268, %s282
    %p284 = scmp.eq.s32.totalorder %s27, 0
    %p285 = por %p283, %p284
    %s287 = sadd.s32 %s286, 1
    %p290 = scmp.eq.s32.totalorder %s21, 3
    %p291 = scmp.ne.s32.totalorder %s286, %s288
    %p292 = scmp.eq.s32.totalorder %s21, 0
    %p293 = por %p291, %p292
    %p294 = scmp.ne.s32.totalorder %s286, %s288
    %p295 = scmp.eq.s32.totalorder %s26, 3
    %p296 = por %p294, %p295
    %p297 = scmp.ne.s32.totalorder %s288, %s289
    %p298 = scmp.eq.s32.totalorder %s26, 0
    %p299 = por %p297, %p298
    %p300 = scmp.ne.s32.totalorder %s288, %s289
    %p301 = scmp.eq.s32.totalorder %s27, 3
    %p302 = por %p300, %p301
    %p304 = scmp.ne.s32.totalorder %s289, %s303
    %p305 = scmp.eq.s32.totalorder %s27, 0
    %p306 = por %p304, %p305
    %s308 = sadd.s32 %s307, 1
    %p311 = scmp.eq.s32.totalorder %s21, 3
    %p312 = scmp.ne.s32.totalorder %s307, %s309
    %p313 = scmp.eq.s32.totalorder %s21, 0
    %p314 = por %p312, %p313
    %p315 = scmp.ne.s32.totalorder %s307, %s309
    %p316 = scmp.eq.s32.totalorder %s26, 3
    %p317 = por %p315, %p316
    %p318 = scmp.ne.s32.totalorder %s309, %s310
    %p319 = scmp.eq.s32.totalorder %s26, 0
    %p320 = por %p318, %p319
    %p321 = scmp.ne.s32.totalorder %s309, %s310
    %p322 = scmp.eq.s32.totalorder %s27, 3
    %p323 = por %p321, %p322
    %p325 = scmp.ne.s32.totalorder %s310, %s324
    %p326 = scmp.eq.s32.totalorder %s27, 0
    %p327 = por %p325, %p326
    %s329 = sadd.s32 %s328, 1
    %p332 = scmp.eq.s32.totalorder %s21, 3
    %p333 = scmp.ne.s32.totalorder %s328, %s330
    %p334 = scmp.eq.s32.totalorder %s21, 0
    %p335 = por %p333, %p334
    %p336 = scmp.ne.s32.totalorder %s328, %s330
    %p337 = scmp.eq.s32.totalorder %s26, 3
    %p338 = por %p336, %p337
    %p339 = scmp.ne.s32.totalorder %s330, %s331
    %p340 = scmp.eq.s32.totalorder %s26, 0
    %p341 = por %p339, %p340
    %p342 = scmp.ne.s32.totalorder %s330, %s331
    %p343 = scmp.eq.s32.totalorder %s27, 3
    %p344 = por %p342, %p343
    %p346 = scmp.ne.s32.totalorder %s331, %s345
    %p347 = scmp.eq.s32.totalorder %s27, 0
    %p348 = por %p346, %p347
    %s349 = ssub.s32 %s21, %s28
    %p350 = scmp.eq.s32.totalorder %s349, 0
    %s352 = sadd.s32 %s351, 1
    %s353 = scalar_select %p350, %s351, %s352
    %p356 = pneg %p350
    %p357 = scmp.eq.s32.totalorder %s21, 3
    %p358 = por %p356, %p357
    %p359 = scmp.ne.s32.totalorder %s351, %s354
    %p360 = scmp.eq.s32.totalorder %s21, 0
    %p361 = por %p359, %p360
    %p362 = scmp.ne.s32.totalorder %s351, %s354
    %p363 = scmp.eq.s32.totalorder %s26, 3
    %p364 = por %p362, %p363
    %p365 = scmp.ne.s32.totalorder %s354, %s355
    %p366 = scmp.eq.s32.totalorder %s26, 0
    %p367 = por %p365, %p366
    %p368 = scmp.ne.s32.totalorder %s354, %s355
    %p369 = scmp.eq.s32.totalorder %s27, 3
    %p370 = por %p368, %p369
    %p372 = scmp.ne.s32.totalorder %s355, %s371
    %p373 = scmp.eq.s32.totalorder %s27, 0
    %p374 = por %p372, %p373
    %p375 = scmp.le.s32.totalorder 1, %s21
    %p376 = scmp.lt.s32.totalorder %s21, 5
    %p377 = pnand %p375, %p376
    %p378 = pneg %p377
    // Predicated region
    $region9: #{_lambda_.1} parent=5 // pred_check
      _
    $region10: #{_lambda_.1} parent=5 // pred_check_branch
      %380 = sbr.rel (%p377) target = $region12
    $region11: #{_lambda_.1} parent=5 // pred_region
      %s381 = ssub.s32 %s21, 1
      // Predicated region
      $region13: #{_lambda_.1} parent=11 // pred_check
        %p382 = pneg %p68
      $region14: #{_lambda_.1} parent=11 // pred_check_branch
        %384 = sbr.rel (%p382) target = $region16
      $region15: #{_lambda_.1} parent=11 // pred_region
        _
      $region16: #{_lambda_.1} parent=11 // pred_fallthru
        _
      // Predicated region
      $region17: #{_lambda_.1} parent=11 // pred_check
        %p385 = pneg %p89
      $region18: #{_lambda_.1} parent=11 // pred_check_branch
        %387 = sbr.rel (%p385) target = $region20
      $region19: #{_lambda_.1} parent=11 // pred_region
        _
      $region20: #{_lambda_.1} parent=11 // pred_fallthru
        _
      // Predicated region
      $region21: #{_lambda_.1} parent=11 // pred_check
        %p388 = pneg %p110
      $region22: #{_lambda_.1} parent=11 // pred_check_branch
        %390 = sbr.rel (%p388) target = $region24
      $region23: #{_lambda_.1} parent=11 // pred_region
        _
      $region24: #{_lambda_.1} parent=11 // pred_fallthru
        _
      // Predicated region
      $region25: #{_lambda_.1} parent=11 // pred_check
        %p391 = pneg %p131
      $region26: #{_lambda_.1} parent=11 // pred_check_branch
        %393 = sbr.rel (%p391) target = $region28
      $region27: #{_lambda_.1} parent=11 // pred_region
        _
      $region28: #{_lambda_.1} parent=11 // pred_fallthru
        _
      // Predicated region
      $region29: #{_lambda_.1} parent=11 // pred_check
        %p394 = pneg %p152
      $region30: #{_lambda_.1} parent=11 // pred_check_branch
        %396 = sbr.rel (%p394) target = $region32
      $region31: #{_lambda_.1} parent=11 // pred_region
        _
      $region32: #{_lambda_.1} parent=11 // pred_fallthru
        _
      // Predicated region
      $region33: #{_lambda_.1} parent=11 // pred_check
        %p397 = pneg %p173
      $region34: #{_lambda_.1} parent=11 // pred_check_branch
        %399 = sbr.rel (%p397) target = $region36
      $region35: #{_lambda_.1} parent=11 // pred_region
        _
      $region36: #{_lambda_.1} parent=11 // pred_fallthru
        _
      // Predicated region
      $region37: #{_lambda_.1} parent=11 // pred_check
        %p400 = pneg %p194
      $region38: #{_lambda_.1} parent=11 // pred_check_branch
        %402 = sbr.rel (%p400) target = $region40
      $region39: #{_lambda_.1} parent=11 // pred_region
        _
      $region40: #{_lambda_.1} parent=11 // pred_fallthru
        _
      // Predicated region
      $region41: #{_lambda_.1} parent=11 // pred_check
        %p403 = pneg %p215
      $region42: #{_lambda_.1} parent=11 // pred_check_branch
        %405 = sbr.rel (%p403) target = $region44
      $region43: #{_lambda_.1} parent=11 // pred_region
        _
      $region44: #{_lambda_.1} parent=11 // pred_fallthru
        _
      // Predicated region
      $region45: #{_lambda_.1} parent=11 // pred_check
        %p406 = pneg %p236
      $region46: #{_lambda_.1} parent=11 // pred_check_branch
        %408 = sbr.rel (%p406) target = $region48
      $region47: #{_lambda_.1} parent=11 // pred_region
        _
      $region48: #{_lambda_.1} parent=11 // pred_fallthru
        _
      // Predicated region
      $region49: #{_lambda_.1} parent=11 // pred_check
        %p409 = pneg %p257
      $region50: #{_lambda_.1} parent=11 // pred_check_branch
        %411 = sbr.rel (%p409) target = $region52
      $region51: #{_lambda_.1} parent=11 // pred_region
        _
      $region52: #{_lambda_.1} parent=11 // pred_fallthru
        _
      // Predicated region
      $region53: #{_lambda_.1} parent=11 // pred_check
        %p412 = pneg %p278
      $region54: #{_lambda_.1} parent=11 // pred_check_branch
        %414 = sbr.rel (%p412) target = $region56
      $region55: #{_lambda_.1} parent=11 // pred_region
        _
      $region56: #{_lambda_.1} parent=11 // pred_fallthru
        _
      // Predicated region
      $region57: #{_lambda_.1} parent=11 // pred_check
        %p415 = pneg %p299
      $region58: #{_lambda_.1} parent=11 // pred_check_branch
        %417 = sbr.rel (%p415) target = $region60
      $region59: #{_lambda_.1} parent=11 // pred_region
        _
      $region60: #{_lambda_.1} parent=11 // pred_fallthru
        _
      // Predicated region
      $region61: #{_lambda_.1} parent=11 // pred_check
        %p418 = pneg %p320
      $region62: #{_lambda_.1} parent=11 // pred_check_branch
        %420 = sbr.rel (%p418) target = $region64
      $region63: #{_lambda_.1} parent=11 // pred_region
        _
      $region64: #{_lambda_.1} parent=11 // pred_fallthru
        _
      // Predicated region
      $region65: #{_lambda_.1} parent=11 // pred_check
        %p421 = pneg %p341
      $region66: #{_lambda_.1} parent=11 // pred_check_branch
        %423 = sbr.rel (%p421) target = $region68
      $region67: #{_lambda_.1} parent=11 // pred_region
        _
      $region68: #{_lambda_.1} parent=11 // pred_fallthru
        _
    $region12: #{_lambda_.1} parent=5 // pred_fallthru
      _
    %p424 = scmp.lt.s32.totalorder %s21, 4
    // Predicated region
    $region69: #{_lambda_.1} parent=5 // pred_check
      %p425 = pneg %p424
    $region70: #{_lambda_.1} parent=5 // pred_check_branch
      %427 = sbr.rel (%p425) target = $region72
    $region71: #{_lambda_.1} parent=5 // pred_region
      // Predicated region
      $region73: #{_lambda_.1} parent=71 // pred_check
        %p428 = pneg %p41
      $region74: #{_lambda_.1} parent=71 // pred_check_branch
        %430 = sbr.rel (%p428) target = $region76
      $region75: #{_lambda_.1} parent=71 // pred_region
        %s431 = smul.u32 16, %s21
        %p432 = scmp.lt.s32.totalorder %s431, 63
        %s433 = scalar_select %p432, %s431, 63
        %s434 = smul.addr %s433, 4
        %s435 = smul.addr %s434, 4
        %s436 = scalar_lea.vmem %s0, %s435
        %s437 = smul.u32 16, %s21
      $region76: #{_lambda_.1} parent=71 // pred_fallthru
        _
    $region72: #{_lambda_.1} parent=5 // pred_fallthru
      _
    %p438 = scmp.le.s32.totalorder 1, %s21
    %p439 = scmp.lt.s32.totalorder %s21, 5
    %p440 = pnand %p438, %p439
    %p441 = pneg %p440
    // Predicated region
    $region77: #{_lambda_.1} parent=5 // pred_check
      _
    $region78: #{_lambda_.1} parent=5 // pred_check_branch
      %443 = sbr.rel (%p440) target = $region80
    $region79: #{_lambda_.1} parent=5 // pred_region
      %s444 = ssub.s32 %s21, 1
      %s445 = smul.u32 16, %s26
      %p446 = scmp.lt.s32.totalorder %s445, 63
      %s447 = scalar_select %p446, %s445, 63
      %s448 = smul.addr %s447, 4
      %s449 = smul.addr %s448, 4
      %s450 = scalar_lea.vmem %s0, %s449
      %p451 = pneg %p47
      %p452 = pneg %p44
      %p453 = pneg %p68
      %p454 = pneg %p65
      %p455 = pneg %p89
      %p456 = pneg %p86
      %p457 = pneg %p110
      %p458 = pneg %p107
      %p459 = pneg %p131
      %p460 = pneg %p128
      %p461 = pneg %p152
      %p462 = pneg %p149
      %p463 = pneg %p173
      %p464 = pneg %p170
      %p465 = pneg %p194
      %p466 = pneg %p191
      %p467 = pneg %p215
      %p468 = pneg %p212
      %p469 = pneg %p236
      %p470 = pneg %p233
      %p471 = pneg %p257
      %p472 = pneg %p254
      %p473 = pneg %p278
      %p474 = pneg %p275
      %p475 = pneg %p299
      %p476 = pneg %p296
      %p477 = pneg %p320
      %p478 = pneg %p317
      %p479 = pneg %p341
      %p480 = pneg %p338
      %p481 = pneg %p367
      %p482 = pneg %p364
      %s483 = smul.u32 16, %s26
      %p484 = scmp.lt.s32.totalorder %s483, 63
      %s485 = scalar_select %p484, %s483, 63
      %s486 = smul.addr %s485, 8
      %s487 = scalar_lea.vmem %s15, %s486
      %s488 = smul.u32 16, %s26
      %p489 = scmp.lt.s32.totalorder %s488, 63
      %s490 = scalar_select %p489, %s488, 63
      %s491 = smul.addr %s490, 4
      %s492 = smul.addr %s491, 4
      %s493 = scalar_lea.vmem %s0, %s492
      %s494 = smul.u32 16, %s26
      %s495 = smul.u32 16, %s26
      %p496 = scmp.lt.s32.totalorder %s495, 63
      %s497 = scalar_select %p496, %s495, 63
      %s498 = smul.addr %s497, 8
      %s499 = scalar_lea.vmem %s15, %s498
      %s500 = smul.u32 16, %s26
      %v502 = vld [vmem:[%s493] sm:$0xff]
      %v503 = vld [vmem:[%s493 + $0x8] sm:$0xff]
      %v504 = vld [vmem:[%s493 + $0x10] sm:$0xff]
      %v505 = vld [vmem:[%s493 + $0x18] sm:$0xff]
      %v506 = vld [vmem:[%s493 + $0x20] sm:$0xff]
      %v507 = vld [vmem:[%s493 + $0x28] sm:$0xff]
      %v508 = vld [vmem:[%s493 + $0x30] sm:$0xff]
      %v509 = vld [vmem:[%s493 + $0x38] sm:$0xff]
      %v510 = vld [vmem:[%s493 + $0x40] sm:$0xff]
      %v511 = vld [vmem:[%s493 + $0x48] sm:$0xff]
      %v512 = vld [vmem:[%s493 + $0x50] sm:$0xff]
      %v513 = vld [vmem:[%s493 + $0x58] sm:$0xff]
      %v514 = vld [vmem:[%s493 + $0x60] sm:$0xff]
      %v515 = vld [vmem:[%s493 + $0x68] sm:$0xff]
      %v516 = vld [vmem:[%s493 + $0x70] sm:$0xff]
      %v517 = vld [vmem:[%s493 + $0x78] sm:$0xff]
      %v518 = vld [vmem:[%s493 + $0x80] sm:$0xff]
      %v519 = vld [vmem:[%s493 + $0x88] sm:$0xff]
      %v520 = vld [vmem:[%s493 + $0x90] sm:$0xff]
      %v521 = vld [vmem:[%s493 + $0x98] sm:$0xff]
      %v522 = vld [vmem:[%s493 + $0xa0] sm:$0xff]
      %v523 = vld [vmem:[%s493 + $0xa8] sm:$0xff]
      %v524 = vld [vmem:[%s493 + $0xb0] sm:$0xff]
      %v525 = vld [vmem:[%s493 + $0xb8] sm:$0xff]
      %v526 = vld [vmem:[%s493 + $0xc0] sm:$0xff]
      %v527 = vld [vmem:[%s493 + $0xc8] sm:$0xff]
      %v528 = vld [vmem:[%s493 + $0xd0] sm:$0xff]
      %v529 = vld [vmem:[%s493 + $0xd8] sm:$0xff]
      %v530 = vld [vmem:[%s493 + $0xe0] sm:$0xff]
      %v531 = vld [vmem:[%s493 + $0xe8] sm:$0xff]
      %v532 = vld [vmem:[%s493 + $0xf0] sm:$0xff]
      %v533 = vld [vmem:[%s493 + $0xf8] sm:$0xff]
      %v534 = vld [vmem:[%s1] sm:$0xff]
      %v535 = vld [vmem:[%s1 + $0x8] sm:$0xf]
      %v536 = vld [vmem:[%s1 + $0xc] sm:$0xff]
      %v537 = vld [vmem:[%s1 + $0x14] sm:$0xf]
      %v538 = vld [vmem:[%s1 + $0x18] sm:$0xff]
      %v539 = vld [vmem:[%s1 + $0x20] sm:$0xf]
      %v540 = vld [vmem:[%s1 + $0x24] sm:$0xff]
      %v541 = vld [vmem:[%s1 + $0x2c] sm:$0xf]
      %v542 = vld [vmem:[%s1 + $0x30] sm:$0xff]
      %v543 = vld [vmem:[%s1 + $0x38] sm:$0xf]
      %v544 = vld [vmem:[%s1 + $0x3c] sm:$0xff]
      %v545 = vld [vmem:[%s1 + $0x44] sm:$0xf]
      %v546 = vld [vmem:[%s1 + $0x48] sm:$0xff]
      %v547 = vld [vmem:[%s1 + $0x50] sm:$0xf]
      %v548 = vld [vmem:[%s1 + $0x54] sm:$0xff]
      %v549 = vld [vmem:[%s1 + $0x5c] sm:$0xf]
      %v550 = vld [vmem:[%s1 + $0x60] sm:$0xff]
      %v551 = vld [vmem:[%s1 + $0x68] sm:$0xf]
      %v552 = vld [vmem:[%s1 + $0x6c] sm:$0xff]
      %v553 = vld [vmem:[%s1 + $0x74] sm:$0xf]
      %v554 = vld [vmem:[%s1 + $0x78] sm:$0xff]
      %v555 = vld [vmem:[%s1 + $0x80] sm:$0xf]
      %v556 = vld [vmem:[%s1 + $0x84] sm:$0xff]
      %v557 = vld [vmem:[%s1 + $0x8c] sm:$0xf]
      %v558 = vld [vmem:[%s1 + $0x90] sm:$0xff]
      %v559 = vld [vmem:[%s1 + $0x98] sm:$0xf]
      %v560 = vld [vmem:[%s1 + $0x9c] sm:$0xff]
      %v561 = vld [vmem:[%s1 + $0xa4] sm:$0xf]
      %v562 = vld [vmem:[%s1 + $0xa8] sm:$0xff]
      %v563 = vld [vmem:[%s1 + $0xb0] sm:$0xf]
      %v564 = vld [vmem:[%s1 + $0xb4] sm:$0xff]
      %v565 = vld [vmem:[%s1 + $0xbc] sm:$0xf]
      %v566 = vld [vmem:[%s1 + $0xc0] sm:$0xff]
      %v567 = vld [vmem:[%s1 + $0xc8] sm:$0xf]
      %v568 = vld [vmem:[%s1 + $0xcc] sm:$0xff]
      %v569 = vld [vmem:[%s1 + $0xd4] sm:$0xf]
      %v570 = vld [vmem:[%s1 + $0xd8] sm:$0xff]
      %v571 = vld [vmem:[%s1 + $0xe0] sm:$0xf]
      %v572 = vld [vmem:[%s1 + $0xe4] sm:$0xff]
      %v573 = vld [vmem:[%s1 + $0xec] sm:$0xf]
      %v574 = vld [vmem:[%s1 + $0xf0] sm:$0xff]
      %v575 = vld [vmem:[%s1 + $0xf8] sm:$0xf]
      %v576 = vld [vmem:[%s1 + $0xfc] sm:$0xff]
      %v577 = vld [vmem:[%s1 + $0x104] sm:$0xf]
      %v578 = vld [vmem:[%s1 + $0x108] sm:$0xff]
      %v579 = vld [vmem:[%s1 + $0x110] sm:$0xf]
      %v580 = vld [vmem:[%s1 + $0x114] sm:$0xff]
      %v581 = vld [vmem:[%s1 + $0x11c] sm:$0xf]
      %v582 = vld [vmem:[%s1 + $0x120] sm:$0xff]
      %v583 = vld [vmem:[%s1 + $0x128] sm:$0xf]
      %v584 = vld [vmem:[%s1 + $0x12c] sm:$0xff]
      %v585 = vld [vmem:[%s1 + $0x134] sm:$0xf]
      %v586 = vld [vmem:[%s1 + $0x138] sm:$0xff]
      %v587 = vld [vmem:[%s1 + $0x140] sm:$0xf]
      %v588 = vld [vmem:[%s1 + $0x144] sm:$0xff]
      %v589 = vld [vmem:[%s1 + $0x14c] sm:$0xf]
      %v590 = vld [vmem:[%s1 + $0x150] sm:$0xff]
      %v591 = vld [vmem:[%s1 + $0x158] sm:$0xf]
      %v592 = vld [vmem:[%s1 + $0x15c] sm:$0xff]
      %v593 = vld [vmem:[%s1 + $0x164] sm:$0xf]
      %v594 = vld [vmem:[%s1 + $0x168] sm:$0xff]
      %v595 = vld [vmem:[%s1 + $0x170] sm:$0xf]
      %v596 = vld [vmem:[%s1 + $0x174] sm:$0xff]
      %v597 = vld [vmem:[%s1 + $0x17c] sm:$0xf]
      %v598 = vld [vmem:[%s2] sm:$0x7]
      %v600 = vlaneseq
      %v601 = vshrl.u32 %v600, 7
      %v602 = vsub.s32 0, %v601
      %v603 = vrot.slane %v598, %v602
      %v604 = vlaneseq
      %v605 = vshrl.u32 %v604, 7
      %v606 = vsub.s32 1, %v605
      %v607 = vrot.slane %v598, %v606
      %v608 = vlaneseq
      %v609 = vshrl.u32 %v608, 7
      %v610 = vsub.s32 2, %v609
      %v611 = vrot.slane %v598, %v610
      %v631 = vunpack.c.l.b16 %v502
      %v632 = vunpack.c.h.b16 %v502
      %v633 = vunpack.c.l.b16 %v504
      %v634 = vunpack.c.h.b16 %v504
      %v635 = vunpack.c.l.b16 %v506
      %v636 = vunpack.c.h.b16 %v506
      %v637 = vunpack.c.l.b16 %v508
      %v638 = vunpack.c.h.b16 %v508
      %v639 = vunpack.c.l.b16 %v510
      %v640 = vunpack.c.h.b16 %v510
      %v641 = vunpack.c.l.b16 %v512
      %v642 = vunpack.c.h.b16 %v512
      %v643 = vunpack.c.l.b16 %v514
      %v644 = vunpack.c.h.b16 %v514
      %v645 = vunpack.c.l.b16 %v516
      %v646 = vunpack.c.h.b16 %v516
      %v647 = vunpack.c.l.b16 %v518
      %v648 = vunpack.c.h.b16 %v518
      %v649 = vunpack.c.l.b16 %v520
      %v650 = vunpack.c.h.b16 %v520
      %v651 = vunpack.c.l.b16 %v522
      %v652 = vunpack.c.h.b16 %v522
      %v653 = vunpack.c.l.b16 %v524
      %v654 = vunpack.c.h.b16 %v524
      %v655 = vunpack.c.l.b16 %v526
      %v656 = vunpack.c.h.b16 %v526
      %v657 = vunpack.c.l.b16 %v528
      %v658 = vunpack.c.h.b16 %v528
      %v659 = vunpack.c.l.b16 %v530
      %v660 = vunpack.c.h.b16 %v530
      %v661 = vunpack.c.l.b16 %v532
      %v662 = vunpack.c.h.b16 %v532
      %v663 = vpack.c.b16 %v633, %v631
      %v664 = vpack.c.b16 %v634, %v632
      %v665 = vpack.c.b16 %v637, %v635
      %v666 = vpack.c.b16 %v638, %v636
      %v667 = vpack.c.b16 %v641, %v639
      %v668 = vpack.c.b16 %v642, %v640
      %v669 = vpack.c.b16 %v645, %v643
      %v670 = vpack.c.b16 %v646, %v644
      %v671 = vpack.c.b16 %v649, %v647
      %v672 = vpack.c.b16 %v650, %v648
      %v673 = vpack.c.b16 %v653, %v651
      %v674 = vpack.c.b16 %v654, %v652
      %v675 = vpack.c.b16 %v657, %v655
      %v676 = vpack.c.b16 %v658, %v656
      %v677 = vpack.c.b16 %v661, %v659
      %v678 = vpack.c.b16 %v662, %v660
      %v759 = vunpack.c.l.b16 %v534
      %v760 = vunpack.c.h.b16 %v534
      %v761 = vunpack.c.l.b16 %v535
      %v762 = vunpack.c.l.b16 %v536
      %v763 = vunpack.c.h.b16 %v536
      %v764 = vunpack.c.l.b16 %v537
      %v765 = vunpack.c.l.b16 %v538
      %v766 = vunpack.c.h.b16 %v538
      %v767 = vunpack.c.l.b16 %v539
      %v768 = vunpack.c.l.b16 %v540
      %v769 = vunpack.c.h.b16 %v540
      %v770 = vunpack.c.l.b16 %v541
      %v771 = vunpack.c.l.b16 %v542
      %v772 = vunpack.c.h.b16 %v542
      %v773 = vunpack.c.l.b16 %v543
      %v774 = vunpack.c.l.b16 %v544
      %v775 = vunpack.c.h.b16 %v544
      %v776 = vunpack.c.l.b16 %v545
      %v777 = vunpack.c.l.b16 %v546
      %v778 = vunpack.c.h.b16 %v546
      %v779 = vunpack.c.l.b16 %v547
      %v780 = vunpack.c.l.b16 %v548
      %v781 = vunpack.c.h.b16 %v548
      %v782 = vunpack.c.l.b16 %v549
      %v783 = vunpack.c.l.b16 %v550
      %v784 = vunpack.c.h.b16 %v550
      %v785 = vunpack.c.l.b16 %v551
      %v786 = vunpack.c.l.b16 %v552
      %v787 = vunpack.c.h.b16 %v552
      %v788 = vunpack.c.l.b16 %v553
      %v789 = vunpack.c.l.b16 %v554
      %v790 = vunpack.c.h.b16 %v554
      %v791 = vunpack.c.l.b16 %v555
      %v792 = vunpack.c.l.b16 %v556
      %v793 = vunpack.c.h.b16 %v556
      %v794 = vunpack.c.l.b16 %v557
      %v795 = vunpack.c.l.b16 %v558
      %v796 = vunpack.c.h.b16 %v558
      %v797 = vunpack.c.l.b16 %v559
      %v798 = vunpack.c.l.b16 %v560
      %v799 = vunpack.c.h.b16 %v560
      %v800 = vunpack.c.l.b16 %v561
      %v801 = vunpack.c.l.b16 %v562
      %v802 = vunpack.c.h.b16 %v562
      %v803 = vunpack.c.l.b16 %v563
      %v804 = vunpack.c.l.b16 %v564
      %v805 = vunpack.c.h.b16 %v564
      %v806 = vunpack.c.l.b16 %v565
      %v807 = vunpack.c.l.b16 %v566
      %v808 = vunpack.c.h.b16 %v566
      %v809 = vunpack.c.l.b16 %v567
      %v810 = vunpack.c.l.b16 %v568
      %v811 = vunpack.c.h.b16 %v568
      %v812 = vunpack.c.l.b16 %v569
      %v813 = vunpack.c.l.b16 %v570
      %v814 = vunpack.c.h.b16 %v570
      %v815 = vunpack.c.l.b16 %v571
      %v816 = vunpack.c.l.b16 %v572
      %v817 = vunpack.c.h.b16 %v572
      %v818 = vunpack.c.l.b16 %v573
      %v819 = vunpack.c.l.b16 %v574
      %v820 = vunpack.c.h.b16 %v574
      %v821 = vunpack.c.l.b16 %v575
      %v822 = vunpack.c.l.b16 %v576
      %v823 = vunpack.c.h.b16 %v576
      %v824 = vunpack.c.l.b16 %v577
      %v825 = vunpack.c.l.b16 %v578
      %v826 = vunpack.c.h.b16 %v578
      %v827 = vunpack.c.l.b16 %v579
      %v828 = vunpack.c.l.b16 %v580
      %v829 = vunpack.c.h.b16 %v580
      %v830 = vunpack.c.l.b16 %v581
      %v831 = vunpack.c.l.b16 %v582
      %v832 = vunpack.c.h.b16 %v582
      %v833 = vunpack.c.l.b16 %v583
      %v834 = vunpack.c.l.b16 %v584
      %v835 = vunpack.c.h.b16 %v584
      %v836 = vunpack.c.l.b16 %v585
      %v837 = vunpack.c.l.b16 %v586
      %v838 = vunpack.c.h.b16 %v586
      %v839 = vunpack.c.l.b16 %v587
      %v840 = vunpack.c.l.b16 %v588
      %v841 = vunpack.c.h.b16 %v588
      %v842 = vunpack.c.l.b16 %v589
      %v843 = vunpack.c.l.b16 %v590
      %v844 = vunpack.c.h.b16 %v590
      %v845 = vunpack.c.l.b16 %v591
      %v846 = vunpack.c.l.b16 %v592
      %v847 = vunpack.c.h.b16 %v592
      %v848 = vunpack.c.l.b16 %v593
      %v849 = vunpack.c.l.b16 %v594
      %v850 = vunpack.c.h.b16 %v594
      %v851 = vunpack.c.l.b16 %v595
      %v852 = vunpack.c.l.b16 %v596
      %v853 = vunpack.c.h.b16 %v596
      %v854 = vunpack.c.l.b16 %v597
      %v855 = vpack.c.b16 %v762, %v759
      %v856 = vpack.c.b16 %v763, %v760
      %v857 = vpack.c.b16 %v764, %v761
      %v858 = vpack.c.b16 %v768, %v765
      %v859 = vpack.c.b16 %v769, %v766
      %v860 = vpack.c.b16 %v770, %v767
      %v861 = vpack.c.b16 %v774, %v771
      %v862 = vpack.c.b16 %v775, %v772
      %v863 = vpack.c.b16 %v776, %v773
      %v864 = vpack.c.b16 %v780, %v777
      %v865 = vpack.c.b16 %v781, %v778
      %v866 = vpack.c.b16 %v782, %v779
      %v867 = vpack.c.b16 %v786, %v783
      %v868 = vpack.c.b16 %v787, %v784
      %v869 = vpack.c.b16 %v788, %v785
      %v870 = vpack.c.b16 %v792, %v789
      %v871 = vpack.c.b16 %v793, %v790
      %v872 = vpack.c.b16 %v794, %v791
      %v873 = vpack.c.b16 %v798, %v795
      %v874 = vpack.c.b16 %v799, %v796
      %v875 = vpack.c.b16 %v800, %v797
      %v876 = vpack.c.b16 %v804, %v801
      %v877 = vpack.c.b16 %v805, %v802
      %v878 = vpack.c.b16 %v806, %v803
      %v879 = vpack.c.b16 %v810, %v807
      %v880 = vpack.c.b16 %v811, %v808
      %v881 = vpack.c.b16 %v812, %v809
      %v882 = vpack.c.b16 %v816, %v813
      %v883 = vpack.c.b16 %v817, %v814
      %v884 = vpack.c.b16 %v818, %v815
      %v885 = vpack.c.b16 %v822, %v819
      %v886 = vpack.c.b16 %v823, %v820
      %v887 = vpack.c.b16 %v824, %v821
      %v888 = vpack.c.b16 %v828, %v825
      %v889 = vpack.c.b16 %v829, %v826
      %v890 = vpack.c.b16 %v830, %v827
      %v891 = vpack.c.b16 %v834, %v831
      %v892 = vpack.c.b16 %v835, %v832
      %v893 = vpack.c.b16 %v836, %v833
      %v894 = vpack.c.b16 %v840, %v837
      %v895 = vpack.c.b16 %v841, %v838
      %v896 = vpack.c.b16 %v842, %v839
      %v897 = vpack.c.b16 %v846, %v843
      %v898 = vpack.c.b16 %v847, %v844
      %v899 = vpack.c.b16 %v848, %v845
      %v900 = vpack.c.b16 %v852, %v849
      %v901 = vpack.c.b16 %v853, %v850
      %v902 = vpack.c.b16 %v854, %v851
      %951 = vmatprep.subr.bf16.mxu0 %v856
      %952 = vmatpush1.bf16.msra.mxu0 %v855
      %953 = vmatprep.subr.bf16.mxu0 %v859
      %954 = vmatpush1.bf16.msra.mxu0 %v858
      %955 = vmatprep.subr.bf16.mxu0 %v862
      %956 = vmatpush1.bf16.msra.mxu0 %v861
      %957 = vmatprep.subr.bf16.mxu0 %v865
      %958 = vmatpush1.bf16.msra.mxu0 %v864
      %959 = vmatprep.subr.bf16.mxu0 %v868
      %960 = vmatpush1.bf16.msra.mxu0 %v867
      %961 = vmatprep.subr.bf16.mxu0 %v871
      %962 = vmatpush1.bf16.msra.mxu0 %v870
      %963 = vmatprep.subr.bf16.mxu0 %v874
      %964 = vmatpush1.bf16.msra.mxu0 %v873
      %965 = vmatprep.subr.bf16.mxu0 %v877
      %966 = vmatpush1.bf16.msra.mxu0 %v876
      %967 = vmatprep.subr.bf16.mxu0 %v880
      %968 = vmatpush1.bf16.msra.mxu0 %v879
      %969 = vmatprep.subr.bf16.mxu0 %v883
      %970 = vmatpush1.bf16.msra.mxu0 %v882
      %971 = vmatprep.subr.bf16.mxu0 %v886
      %972 = vmatpush1.bf16.msra.mxu0 %v885
      %973 = vmatprep.subr.bf16.mxu0 %v889
      %974 = vmatpush1.bf16.msra.mxu0 %v888
      %975 = vmatprep.subr.bf16.mxu0 %v892
      %976 = vmatpush1.bf16.msra.mxu0 %v891
      %977 = vmatprep.subr.bf16.mxu0 %v895
      %978 = vmatpush1.bf16.msra.mxu0 %v894
      %979 = vmatprep.subr.bf16.mxu0 %v898
      %980 = vmatpush1.bf16.msra.mxu0 %v897
      %981 = vmatprep.subr.bf16.mxu0 %v901
      %982 = vmatpush1.bf16.msra.mxu0 %v900
      %983 = vmatprep.mubr.bf16.mxu0 %v664
      %984 = vmatmul.mubr.bf16.gmra.mrb[0].mxu0 %v663
      %v985 = vpop.f32.mrb[0].mxu0
      %v986 = vadd.f32 %v603, %v985
      %v987 = vpop.f32.mrb[0].mxu0
      %v988 = vadd.f32 %v607, %v987
      %v989 = vpop.f32.mrb[0].mxu0
      %v990 = vadd.f32 %v603, %v989
      %v991 = vpop.f32.mrb[0].mxu0
      %v992 = vadd.f32 %v607, %v991
      %993 = vmatprep.mubr.bf16.mxu0 %v666
      %994 = vmatmul.mubr.bf16.gmra.mrb[0].mxu0 %v665
      %v995 = vpop.f32.mrb[0].mxu0
      %v996 = vadd.f32 %v603, %v995
      %v997 = vpop.f32.mrb[0].mxu0
      %v998 = vadd.f32 %v607, %v997
      %v999 = vpop.f32.mrb[0].mxu0
      %v1000 = vadd.f32 %v603, %v999
      %v1001 = vpop.f32.mrb[0].mxu0
      %v1002 = vadd.f32 %v607, %v1001
      %1003 = vmatprep.mubr.bf16.mxu0 %v668
      %1004 = vmatmul.mubr.bf16.gmra.mrb[0].mxu0 %v667
      %v1005 = vpop.f32.mrb[0].mxu0
      %v1006 = vadd.f32 %v603, %v1005
      %v1007 = vpop.f32.mrb[0].mxu0
      %v1008 = vadd.f32 %v607, %v1007
      %v1009 = vpop.f32.mrb[0].mxu0
      %v1010 = vadd.f32 %v603, %v1009
      %v1011 = vpop.f32.mrb[0].mxu0
      %v1012 = vadd.f32 %v607, %v1011
      %1013 = vmatprep.mubr.bf16.mxu0 %v670
      %1014 = vmatmul.mubr.bf16.gmra.mrb[0].mxu0 %v669
      %v1015 = vpop.f32.mrb[0].mxu0
      %v1016 = vadd.f32 %v603, %v1015
      %v1017 = vpop.f32.mrb[0].mxu0
      %v1018 = vadd.f32 %v607, %v1017
      %v1019 = vpop.f32.mrb[0].mxu0
      %v1020 = vadd.f32 %v603, %v1019
      %v1021 = vpop.f32.mrb[0].mxu0
      %v1022 = vadd.f32 %v607, %v1021
      %1023 = vmatprep.mubr.bf16.mxu0 %v672
      %1024 = vmatmul.mubr.bf16.gmra.mrb[0].mxu0 %v671
      %v1025 = vpop.f32.mrb[0].mxu0
      %v1026 = vadd.f32 %v603, %v1025
      %v1027 = vpop.f32.mrb[0].mxu0
      %v1028 = vadd.f32 %v607, %v1027
      %v1029 = vpop.f32.mrb[0].mxu0
      %v1030 = vadd.f32 %v603, %v1029
      %v1031 = vpop.f32.mrb[0].mxu0
      %v1032 = vadd.f32 %v607, %v1031
      %1033 = vmatprep.mubr.bf16.mxu0 %v674
      %1034 = vmatmul.mubr.bf16.gmra.mrb[0].mxu0 %v673
      %v1035 = vpop.f32.mrb[0].mxu0
      %v1036 = vadd.f32 %v603, %v1035
      %v1037 = vpop.f32.mrb[0].mxu0
      %v1038 = vadd.f32 %v607, %v1037
      %v1039 = vpop.f32.mrb[0].mxu0
      %v1040 = vadd.f32 %v603, %v1039
      %v1041 = vpop.f32.mrb[0].mxu0
      %v1042 = vadd.f32 %v607, %v1041
      %1043 = vmatprep.mubr.bf16.mxu0 %v676
      %1044 = vmatmul.mubr.bf16.gmra.mrb[0].mxu0 %v675
      %v1045 = vpop.f32.mrb[0].mxu0
      %v1046 = vadd.f32 %v603, %v1045
      %v1047 = vpop.f32.mrb[0].mxu0
      %v1048 = vadd.f32 %v607, %v1047
      %v1049 = vpop.f32.mrb[0].mxu0
      %v1050 = vadd.f32 %v603, %v1049
      %v1051 = vpop.f32.mrb[0].mxu0
      %v1052 = vadd.f32 %v607, %v1051
      %1053 = vmatprep.mubr.bf16.mxu0 %v678
      %1054 = vmatmul.mubr.bf16.gmra.mrb[0].mxu0 %v677
      %v1055 = vpop.f32.mrb[0].mxu0
      %v1056 = vadd.f32 %v603, %v1055
      %v1057 = vpop.f32.mrb[0].mxu0
      %v1058 = vadd.f32 %v607, %v1057
      %v1059 = vpop.f32.mrb[0].mxu0
      %v1060 = vadd.f32 %v603, %v1059
      %v1061 = vpop.f32.mrb[0].mxu0
      %v1062 = vadd.f32 %v607, %v1061
      %1063 = vdwg.mxu0
      %1064 = vmatprep.subr.bf16.mxu0 0
      %1065 = vmatpush1.bf16.msra.mxu0 %v857
      %1066 = vmatprep.subr.bf16.mxu0 0
      %1067 = vmatpush1.bf16.msra.mxu0 %v860
      %1068 = vmatprep.subr.bf16.mxu0 0
      %1069 = vmatpush1.bf16.msra.mxu0 %v863
      %1070 = vmatprep.subr.bf16.mxu0 0
      %1071 = vmatpush1.bf16.msra.mxu0 %v866
      %1072 = vmatprep.subr.bf16.mxu0 0
      %1073 = vmatpush1.bf16.msra.mxu0 %v869
      %1074 = vmatprep.subr.bf16.mxu0 0
      %1075 = vmatpush1.bf16.msra.mxu0 %v872
      %1076 = vmatprep.subr.bf16.mxu0 0
      %1077 = vmatpush1.bf16.msra.mxu0 %v875
      %1078 = vmatprep.subr.bf16.mxu0 0
      %1079 = vmatpush1.bf16.msra.mxu0 %v878
      %1080 = vmatprep.subr.bf16.mxu0 0
      %1081 = vmatpush1.bf16.msra.mxu0 %v881
      %1082 = vmatprep.subr.bf16.mxu0 0
      %1083 = vmatpush1.bf16.msra.mxu0 %v884
      %1084 = vmatprep.subr.bf16.mxu0 0
      %1085 = vmatpush1.bf16.msra.mxu0 %v887
      %1086 = vmatprep.subr.bf16.mxu0 0
      %1087 = vmatpush1.bf16.msra.mxu0 %v890
      %1088 = vmatprep.subr.bf16.mxu0 0
      %1089 = vmatpush1.bf16.msra.mxu0 %v893
      %1090 = vmatprep.subr.bf16.mxu0 0
      %1091 = vmatpush1.bf16.msra.mxu0 %v896
      %1092 = vmatprep.subr.bf16.mxu0 0
      %1093 = vmatpush1.bf16.msra.mxu0 %v899
      %1094 = vmatprep.subr.bf16.mxu0 0
      %1095 = vmatpush1.bf16.msra.mxu0 %v902
      %1096 = vmatprep.mubr.bf16.mxu0 %v664
      %1097 = vmatmul.mubr.bf16.gmra.mrb[0].mxu0 %v663
      %v1098 = vpop.f32.mrb[0].mxu0
      %v1099 = vadd.f32 %v611, %v1098
      %v1100 = vpop.f32.mrb[0].mxu0
      %v1101 = vpop.f32.mrb[0].mxu0
      %v1102 = vadd.f32 %v611, %v1101
      %v1103 = vpop.f32.mrb[0].mxu0
      %1104 = vmatprep.mubr.bf16.mxu0 %v666
      %1105 = vmatmul.mubr.bf16.gmra.mrb[0].mxu0 %v665
      %v1106 = vpop.f32.mrb[0].mxu0
      %v1107 = vadd.f32 %v611, %v1106
      %v1108 = vpop.f32.mrb[0].mxu0
      %v1109 = vpop.f32.mrb[0].mxu0
      %v1110 = vadd.f32 %v611, %v1109
      %v1111 = vpop.f32.mrb[0].mxu0
      %1112 = vmatprep.mubr.bf16.mxu0 %v668
      %1113 = vmatmul.mubr.bf16.gmra.mrb[0].mxu0 %v667
      %v1114 = vpop.f32.mrb[0].mxu0
      %v1115 = vadd.f32 %v611, %v1114
      %v1116 = vpop.f32.mrb[0].mxu0
      %v1117 = vpop.f32.mrb[0].mxu0
      %v1118 = vadd.f32 %v611, %v1117
      %v1119 = vpop.f32.mrb[0].mxu0
      %1120 = vmatprep.mubr.bf16.mxu0 %v670
      %1121 = vmatmul.mubr.bf16.gmra.mrb[0].mxu0 %v669
      %v1122 = vpop.f32.mrb[0].mxu0
      %v1123 = vadd.f32 %v611, %v1122
      %v1124 = vpop.f32.mrb[0].mxu0
      %v1125 = vpop.f32.mrb[0].mxu0
      %v1126 = vadd.f32 %v611, %v1125
      %v1127 = vpop.f32.mrb[0].mxu0
      %1128 = vmatprep.mubr.bf16.mxu0 %v672
      %1129 = vmatmul.mubr.bf16.gmra.mrb[0].mxu0 %v671
      %v1130 = vpop.f32.mrb[0].mxu0
      %v1131 = vadd.f32 %v611, %v1130
      %v1132 = vpop.f32.mrb[0].mxu0
      %v1133 = vpop.f32.mrb[0].mxu0
      %v1134 = vadd.f32 %v611, %v1133
      %v1135 = vpop.f32.mrb[0].mxu0
      %1136 = vmatprep.mubr.bf16.mxu0 %v674
      %1137 = vmatmul.mubr.bf16.gmra.mrb[0].mxu0 %v673
      %v1138 = vpop.f32.mrb[0].mxu0
      %v1139 = vadd.f32 %v611, %v1138
      %v1140 = vpop.f32.mrb[0].mxu0
      %v1141 = vpop.f32.mrb[0].mxu0
      %v1142 = vadd.f32 %v611, %v1141
      %v1143 = vpop.f32.mrb[0].mxu0
      %1144 = vmatprep.mubr.bf16.mxu0 %v676
      %1145 = vmatmul.mubr.bf16.gmra.mrb[0].mxu0 %v675
      %v1146 = vpop.f32.mrb[0].mxu0
      %v1147 = vadd.f32 %v611, %v1146
      %v1148 = vpop.f32.mrb[0].mxu0
      %v1149 = vpop.f32.mrb[0].mxu0
      %v1150 = vadd.f32 %v611, %v1149
      %v1151 = vpop.f32.mrb[0].mxu0
      %1152 = vmatprep.mubr.bf16.mxu0 %v678
      %1153 = vmatmul.mubr.bf16.gmra.mrb[0].mxu0 %v677
      %v1154 = vpop.f32.mrb[0].mxu0
      %v1155 = vadd.f32 %v611, %v1154
      %v1156 = vpop.f32.mrb[0].mxu0
      %v1157 = vpop.f32.mrb[0].mxu0
      %v1158 = vadd.f32 %v611, %v1157
      %v1159 = vpop.f32.mrb[0].mxu0
      %1160 = vdwg.mxu0
      %v1161 = vmax.f32 %v986, 0.0
      %v1162 = vmax.f32 %v988, 0.0
      %v1163 = vmax.f32 %v1099, 0.0
      %v1164 = vmax.f32 %v990, 0.0
      %v1165 = vmax.f32 %v992, 0.0
      %v1166 = vmax.f32 %v1102, 0.0
      %v1167 = vmax.f32 %v996, 0.0
      %v1168 = vmax.f32 %v998, 0.0
      %v1169 = vmax.f32 %v1107, 0.0
      %v1170 = vmax.f32 %v1000, 0.0
      %v1171 = vmax.f32 %v1002, 0.0
      %v1172 = vmax.f32 %v1110, 0.0
      %v1173 = vmax.f32 %v1006, 0.0
      %v1174 = vmax.f32 %v1008, 0.0
      %v1175 = vmax.f32 %v1115, 0.0
      %v1176 = vmax.f32 %v1010, 0.0
      %v1177 = vmax.f32 %v1012, 0.0
      %v1178 = vmax.f32 %v1118, 0.0
      %v1179 = vmax.f32 %v1016, 0.0
      %v1180 = vmax.f32 %v1018, 0.0
      %v1181 = vmax.f32 %v1123, 0.0
      %v1182 = vmax.f32 %v1020, 0.0
      %v1183 = vmax.f32 %v1022, 0.0
      %v1184 = vmax.f32 %v1126, 0.0
      %v1185 = vmax.f32 %v1026, 0.0
      %v1186 = vmax.f32 %v1028, 0.0
      %v1187 = vmax.f32 %v1131, 0.0
      %v1188 = vmax.f32 %v1030, 0.0
      %v1189 = vmax.f32 %v1032, 0.0
      %v1190 = vmax.f32 %v1134, 0.0
      %v1191 = vmax.f32 %v1036, 0.0
      %v1192 = vmax.f32 %v1038, 0.0
      %v1193 = vmax.f32 %v1139, 0.0
      %v1194 = vmax.f32 %v1040, 0.0
      %v1195 = vmax.f32 %v1042, 0.0
      %v1196 = vmax.f32 %v1142, 0.0
      %v1197 = vmax.f32 %v1046, 0.0
      %v1198 = vmax.f32 %v1048, 0.0
      %v1199 = vmax.f32 %v1147, 0.0
      %v1200 = vmax.f32 %v1050, 0.0
      %v1201 = vmax.f32 %v1052, 0.0
      %v1202 = vmax.f32 %v1150, 0.0
      %v1203 = vmax.f32 %v1056, 0.0
      %v1204 = vmax.f32 %v1058, 0.0
      %v1205 = vmax.f32 %v1155, 0.0
      %v1206 = vmax.f32 %v1060, 0.0
      %v1207 = vmax.f32 %v1062, 0.0
      %v1208 = vmax.f32 %v1158, 0.0
      %v1209 = vpack.c.bf16 %v1164, %v1161
      %v1210 = vpack.c.bf16 %v1165, %v1162
      %v1211 = vpack.c.bf16 %v1166, %v1163
      %v1212 = vpack.c.bf16 %v1170, %v1167
      %v1213 = vpack.c.bf16 %v1171, %v1168
      %v1214 = vpack.c.bf16 %v1172, %v1169
      %v1215 = vpack.c.bf16 %v1176, %v1173
      %v1216 = vpack.c.bf16 %v1177, %v1174
      %v1217 = vpack.c.bf16 %v1178, %v1175
      %v1218 = vpack.c.bf16 %v1182, %v1179
      %v1219 = vpack.c.bf16 %v1183, %v1180
      %v1220 = vpack.c.bf16 %v1184, %v1181
      %v1221 = vpack.c.bf16 %v1188, %v1185
      %v1222 = vpack.c.bf16 %v1189, %v1186
      %v1223 = vpack.c.bf16 %v1190, %v1187
      %v1224 = vpack.c.bf16 %v1194, %v1191
      %v1225 = vpack.c.bf16 %v1195, %v1192
      %v1226 = vpack.c.bf16 %v1196, %v1193
      %v1227 = vpack.c.bf16 %v1200, %v1197
      %v1228 = vpack.c.bf16 %v1201, %v1198
      %v1229 = vpack.c.bf16 %v1202, %v1199
      %v1230 = vpack.c.bf16 %v1206, %v1203
      %v1231 = vpack.c.bf16 %v1207, %v1204
      %v1232 = vpack.c.bf16 %v1208, %v1205
      %v1233 = vld [vmem:[%s3] sm:$0xf]
      %v1234 = vld [vmem:[%s3 + $0x4] sm:$0xf]
      %v1235 = vld [vmem:[%s3 + $0x8] sm:$0xf]
      %v1236 = vld [vmem:[%s3 + $0xc] sm:$0xf]
      %v1237 = vld [vmem:[%s3 + $0x10] sm:$0xf]
      %v1238 = vld [vmem:[%s3 + $0x14] sm:$0xf]
      %v1239 = vld [vmem:[%s3 + $0x18] sm:$0xf]
      %v1240 = vld [vmem:[%s3 + $0x1c] sm:$0xf]
      %v1241 = vld [vmem:[%s3 + $0x20] sm:$0xf]
      %v1242 = vld [vmem:[%s3 + $0x24] sm:$0xf]
      %v1243 = vld [vmem:[%s3 + $0x28] sm:$0xf]
      %v1244 = vld [vmem:[%s3 + $0x2c] sm:$0xf]
      %v1245 = vld [vmem:[%s3 + $0x30] sm:$0xf]
      %v1246 = vld [vmem:[%s3 + $0x34] sm:$0xf]
      %v1247 = vld [vmem:[%s3 + $0x38] sm:$0xf]
      %v1248 = vld [vmem:[%s3 + $0x3c] sm:$0xf]
      %v1249 = vld [vmem:[%s3 + $0x40] sm:$0xf]
      %v1250 = vld [vmem:[%s3 + $0x44] sm:$0xf]
      %v1251 = vld [vmem:[%s3 + $0x48] sm:$0xf]
      %v1252 = vld [vmem:[%s3 + $0x4c] sm:$0xf]
      %v1253 = vld [vmem:[%s3 + $0x50] sm:$0xf]
      %v1254 = vld [vmem:[%s3 + $0x54] sm:$0xf]
      %v1255 = vld [vmem:[%s3 + $0x58] sm:$0xf]
      %v1256 = vld [vmem:[%s3 + $0x5c] sm:$0xf]
      %v1257 = vld [vmem:[%s3 + $0x60] sm:$0xf]
      %v1258 = vld [vmem:[%s3 + $0x64] sm:$0xf]
      %v1259 = vld [vmem:[%s3 + $0x68] sm:$0xf]
      %v1260 = vld [vmem:[%s3 + $0x6c] sm:$0xf]
      %v1261 = vld [vmem:[%s3 + $0x70] sm:$0xf]
      %v1262 = vld [vmem:[%s3 + $0x74] sm:$0xf]
      %v1263 = vld [vmem:[%s3 + $0x78] sm:$0xf]
      %v1264 = vld [vmem:[%s3 + $0x7c] sm:$0xf]
      %v1265 = vld [vmem:[%s3 + $0x80] sm:$0xf]
      %v1266 = vld [vmem:[%s3 + $0x84] sm:$0xf]
      %v1267 = vld [vmem:[%s3 + $0x88] sm:$0xf]
      %v1268 = vld [vmem:[%s3 + $0x8c] sm:$0xf]
      %v1269 = vld [vmem:[%s4] sm:$0x1]
      %v1271 = vlaneseq
      %v1272 = vshrl.u32 %v1271, 7
      %v1273 = vsub.s32 0, %v1272
      %v1274 = vrot.slane %v1269, %v1273
      %v1312 = vunpack.c.l.b16 %v1233
      %v1313 = vunpack.c.l.b16 %v1234
      %v1314 = vunpack.c.l.b16 %v1235
      %v1315 = vunpack.c.l.b16 %v1236
      %v1316 = vunpack.c.l.b16 %v1237
      %v1317 = vunpack.c.l.b16 %v1238
      %v1318 = vunpack.c.l.b16 %v1239
      %v1319 = vunpack.c.l.b16 %v1240
      %v1320 = vunpack.c.l.b16 %v1241
      %v1321 = vunpack.c.l.b16 %v1242
      %v1322 = vunpack.c.l.b16 %v1243
      %v1323 = vunpack.c.l.b16 %v1244
      %v1324 = vunpack.c.l.b16 %v1245
      %v1325 = vunpack.c.l.b16 %v1246
      %v1326 = vunpack.c.l.b16 %v1247
      %v1327 = vunpack.c.l.b16 %v1248
      %v1328 = vunpack.c.l.b16 %v1249
      %v1329 = vunpack.c.l.b16 %v1250
      %v1330 = vunpack.c.l.b16 %v1251
      %v1331 = vunpack.c.l.b16 %v1252
      %v1332 = vunpack.c.l.b16 %v1253
      %v1333 = vunpack.c.l.b16 %v1254
      %v1334 = vunpack.c.l.b16 %v1255
      %v1335 = vunpack.c.l.b16 %v1256
      %v1336 = vunpack.c.l.b16 %v1257
      %v1337 = vunpack.c.l.b16 %v1258
      %v1338 = vunpack.c.l.b16 %v1259
      %v1339 = vunpack.c.l.b16 %v1260
      %v1340 = vunpack.c.l.b16 %v1261
      %v1341 = vunpack.c.l.b16 %v1262
      %v1342 = vunpack.c.l.b16 %v1263
      %v1343 = vunpack.c.l.b16 %v1264
      %v1344 = vunpack.c.l.b16 %v1265
      %v1345 = vunpack.c.l.b16 %v1266
      %v1346 = vunpack.c.l.b16 %v1267
      %v1347 = vunpack.c.l.b16 %v1268
      %v1348 = vpack.c.b16 %v1313, %v1312
      %v1349 = vpack.c.b16 %v1315, %v1314
      %v1350 = vpack.c.b16 %v1317, %v1316
      %v1351 = vpack.c.b16 %v1319, %v1318
      %v1352 = vpack.c.b16 %v1321, %v1320
      %v1353 = vpack.c.b16 %v1323, %v1322
      %v1354 = vpack.c.b16 %v1325, %v1324
      %v1355 = vpack.c.b16 %v1327, %v1326
      %v1356 = vpack.c.b16 %v1329, %v1328
      %v1357 = vpack.c.b16 %v1331, %v1330
      %v1358 = vpack.c.b16 %v1333, %v1332
      %v1359 = vpack.c.b16 %v1335, %v1334
      %v1360 = vpack.c.b16 %v1337, %v1336
      %v1361 = vpack.c.b16 %v1339, %v1338
      %v1362 = vpack.c.b16 %v1341, %v1340
      %v1363 = vpack.c.b16 %v1343, %v1342
      %v1364 = vpack.c.b16 %v1345, %v1344
      %v1365 = vpack.c.b16 %v1347, %v1346
      %vm1384 = vcmask 261120
      %v1386 = vsel %vm1384, %v1211, 0
      %v1389 = vsel %vm1384, %v1214, 0
      %v1392 = vsel %vm1384, %v1217, 0
      %v1395 = vsel %vm1384, %v1220, 0
      %v1398 = vsel %vm1384, %v1223, 0
      %v1401 = vsel %vm1384, %v1226, 0
      %v1404 = vsel %vm1384, %v1229, 0
      %v1407 = vsel %vm1384, %v1232, 0
      %1409 = vmatprep.subr.bf16.mxu0 0
      %1410 = vmatpush1.bf16.msra.mxu0 %v1348
      %1411 = vmatprep.subr.bf16.mxu0 0
      %1412 = vmatpush1.bf16.msra.mxu0 %v1349
      %1413 = vmatprep.subr.bf16.mxu0 0
      %1414 = vmatpush1.bf16.msra.mxu0 %v1350
      %1415 = vmatprep.subr.bf16.mxu0 0
      %1416 = vmatpush1.bf16.msra.mxu0 %v1351
      %1417 = vmatprep.subr.bf16.mxu0 0
      %1418 = vmatpush1.bf16.msra.mxu0 %v1352
      %1419 = vmatprep.subr.bf16.mxu0 0
      %1420 = vmatpush1.bf16.msra.mxu0 %v1353
      %1421 = vmatprep.subr.bf16.mxu0 0
      %1422 = vmatpush1.bf16.msra.mxu0 %v1354
      %1423 = vmatprep.subr.bf16.mxu0 0
      %1424 = vmatpush1.bf16.msra.mxu0 %v1355
      %1425 = vmatprep.subr.bf16.mxu0 0
      %1426 = vmatpush1.bf16.msra.mxu0 %v1356
      %1427 = vmatprep.subr.bf16.mxu0 0
      %1428 = vmatpush1.bf16.msra.mxu0 %v1357
      %1429 = vmatprep.subr.bf16.mxu0 0
      %1430 = vmatpush1.bf16.msra.mxu0 %v1358
      %1431 = vmatprep.subr.bf16.mxu0 0
      %1432 = vmatpush1.bf16.msra.mxu0 %v1359
      %1433 = vmatprep.subr.bf16.mxu0 0
      %1434 = vmatpush1.bf16.msra.mxu0 %v1360
      %1435 = vmatprep.subr.bf16.mxu0 0
      %1436 = vmatpush1.bf16.msra.mxu0 %v1361
      %1437 = vmatprep.subr.bf16.mxu0 0
      %1438 = vmatpush1.bf16.msra.mxu0 %v1362
      %1439 = vmatprep.subr.bf16.mxu0 0
      %1440 = vmatpush1.bf16.msra.mxu0 %v1363
      %1441 = vmatprep.mubr.bf16.mxu0 %v1210
      %1442 = vmatmul.mubr.bf16.gmra.mrb[0].mxu0 %v1209
      %v1443 = vpop.f32.mrb[0].mxu0
      %v1444 = vadd.f32 %v1274, %v1443
      %v1445 = vpop.f32.mrb[0].mxu0
      %v1446 = vpop.f32.mrb[0].mxu0
      %v1447 = vadd.f32 %v1274, %v1446
      %v1448 = vpop.f32.mrb[0].mxu0
      %1449 = vmatprep.mubr.bf16.mxu0 %v1213
      %1450 = vmatmul.mubr.bf16.gmra.mrb[0].mxu0 %v1212
      %v1451 = vpop.f32.mrb[0].mxu0
      %v1452 = vadd.f32 %v1274, %v1451
      %v1453 = vpop.f32.mrb[0].mxu0
      %v1454 = vpop.f32.mrb[0].mxu0
      %v1455 = vadd.f32 %v1274, %v1454
      %v1456 = vpop.f32.mrb[0].mxu0
      %1457 = vmatprep.mubr.bf16.mxu0 %v1216
      %1458 = vmatmul.mubr.bf16.gmra.mrb[0].mxu0 %v1215
      %v1459 = vpop.f32.mrb[0].mxu0
      %v1460 = vadd.f32 %v1274, %v1459
      %v1461 = vpop.f32.mrb[0].mxu0
      %v1462 = vpop.f32.mrb[0].mxu0
      %v1463 = vadd.f32 %v1274, %v1462
      %v1464 = vpop.f32.mrb[0].mxu0
      %1465 = vmatprep.mubr.bf16.mxu0 %v1219
      %1466 = vmatmul.mubr.bf16.gmra.mrb[0].mxu0 %v1218
      %v1467 = vpop.f32.mrb[0].mxu0
      %v1468 = vadd.f32 %v1274, %v1467
      %v1469 = vpop.f32.mrb[0].mxu0
      %v1470 = vpop.f32.mrb[0].mxu0
      %v1471 = vadd.f32 %v1274, %v1470
      %v1472 = vpop.f32.mrb[0].mxu0
      %1473 = vmatprep.mubr.bf16.mxu0 %v1222
      %1474 = vmatmul.mubr.bf16.gmra.mrb[0].mxu0 %v1221
      %v1475 = vpop.f32.mrb[0].mxu0
      %v1476 = vadd.f32 %v1274, %v1475
      %v1477 = vpop.f32.mrb[0].mxu0
      %v1478 = vpop.f32.mrb[0].mxu0
      %v1479 = vadd.f32 %v1274, %v1478
      %v1480 = vpop.f32.mrb[0].mxu0
      %1481 = vmatprep.mubr.bf16.mxu0 %v1225
      %1482 = vmatmul.mubr.bf16.gmra.mrb[0].mxu0 %v1224
      %v1483 = vpop.f32.mrb[0].mxu0
      %v1484 = vadd.f32 %v1274, %v1483
      %v1485 = vpop.f32.mrb[0].mxu0
      %v1486 = vpop.f32.mrb[0].mxu0
      %v1487 = vadd.f32 %v1274, %v1486
      %v1488 = vpop.f32.mrb[0].mxu0
      %1489 = vmatprep.mubr.bf16.mxu0 %v1228
      %1490 = vmatmul.mubr.bf16.gmra.mrb[0].mxu0 %v1227
      %v1491 = vpop.f32.mrb[0].mxu0
      %v1492 = vadd.f32 %v1274, %v1491
      %v1493 = vpop.f32.mrb[0].mxu0
      %v1494 = vpop.f32.mrb[0].mxu0
      %v1495 = vadd.f32 %v1274, %v1494
      %v1496 = vpop.f32.mrb[0].mxu0
      %1497 = vmatprep.mubr.bf16.mxu0 %v1231
      %1498 = vmatmul.mubr.bf16.gmra.mrb[0].mxu0 %v1230
      %v1499 = vpop.f32.mrb[0].mxu0
      %v1500 = vadd.f32 %v1274, %v1499
      %v1501 = vpop.f32.mrb[0].mxu0
      %v1502 = vpop.f32.mrb[0].mxu0
      %v1503 = vadd.f32 %v1274, %v1502
      %v1504 = vpop.f32.mrb[0].mxu0
      %1505 = vdwg.mxu0
      %1506 = vmatprep.subr.bf16.mxu0 0
      %1507 = vmatpush1.bf16.msra.mxu0 %v1364
      %1508 = vmatprep.subr.bf16.mxu0 0
      %1509 = vmatpush1.bf16.msra.mxu0 %v1365
      %1510 = vmatprep.subr.bf16.mxu0 0
      %1511 = vmatpush1.bf16.msra.mxu0 0
      %1512 = vmatprep.subr.bf16.mxu0 0
      %1513 = vmatpush1.bf16.msra.mxu0 0
      %1514 = vmatprep.subr.bf16.mxu0 0
      %1515 = vmatpush1.bf16.msra.mxu0 0
      %1516 = vmatprep.subr.bf16.mxu0 0
      %1517 = vmatpush1.bf16.msra.mxu0 0
      %1518 = vmatprep.subr.bf16.mxu0 0
      %1519 = vmatpush1.bf16.msra.mxu0 0
      %1520 = vmatprep.subr.bf16.mxu0 0
      %1521 = vmatpush1.bf16.msra.mxu0 0
      %1522 = vmatprep.subr.bf16.mxu0 0
      %1523 = vmatpush1.bf16.msra.mxu0 0
      %1524 = vmatprep.subr.bf16.mxu0 0
      %1525 = vmatpush1.bf16.msra.mxu0 0
      %1526 = vmatprep.subr.bf16.mxu0 0
      %1527 = vmatpush1.bf16.msra.mxu0 0
      %1528 = vmatprep.subr.bf16.mxu0 0
      %1529 = vmatpush1.bf16.msra.mxu0 0
      %1530 = vmatprep.subr.bf16.mxu0 0
      %1531 = vmatpush1.bf16.msra.mxu0 0
      %1532 = vmatprep.subr.bf16.mxu0 0
      %1533 = vmatpush1.bf16.msra.mxu0 0
      %1534 = vmatprep.subr.bf16.mxu0 0
      %1535 = vmatpush1.bf16.msra.mxu0 0
      %1536 = vmatprep.subr.bf16.mxu0 0
      %1537 = vmatpush1.bf16.msra.mxu0 0
      %1538 = vmatprep.mubr.bf16.mxu0 0
      %1539 = vmatmul.mubr.bf16.gmra.mrb[0].mxu0 %v1386
      %v1540 = vpop.f32.mrb[0].mxu0
      %v1541 = vadd.f32 %v1444, %v1540
      %v1542 = vpop.f32.mrb[0].mxu0
      %v1543 = vpop.f32.mrb[0].mxu0
      %v1544 = vadd.f32 %v1447, %v1543
      %v1545 = vpop.f32.mrb[0].mxu0
      %1546 = vmatprep.mubr.bf16.mxu0 0
      %1547 = vmatmul.mubr.bf16.gmra.mrb[0].mxu0 %v1389
      %v1548 = vpop.f32.mrb[0].mxu0
      %v1549 = vadd.f32 %v1452, %v1548
      %v1550 = vpop.f32.mrb[0].mxu0
      %v1551 = vpop.f32.mrb[0].mxu0
      %v1552 = vadd.f32 %v1455, %v1551
      %v1553 = vpop.f32.mrb[0].mxu0
      %1554 = vmatprep.mubr.bf16.mxu0 0
      %1555 = vmatmul.mubr.bf16.gmra.mrb[0].mxu0 %v1392
      %v1556 = vpop.f32.mrb[0].mxu0
      %v1557 = vadd.f32 %v1460, %v1556
      %v1558 = vpop.f32.mrb[0].mxu0
      %v1559 = vpop.f32.mrb[0].mxu0
      %v1560 = vadd.f32 %v1463, %v1559
      %v1561 = vpop.f32.mrb[0].mxu0
      %1562 = vmatprep.mubr.bf16.mxu0 0
      %1563 = vmatmul.mubr.bf16.gmra.mrb[0].mxu0 %v1395
      %v1564 = vpop.f32.mrb[0].mxu0
      %v1565 = vadd.f32 %v1468, %v1564
      %v1566 = vpop.f32.mrb[0].mxu0
      %v1567 = vpop.f32.mrb[0].mxu0
      %v1568 = vadd.f32 %v1471, %v1567
      %v1569 = vpop.f32.mrb[0].mxu0
      %1570 = vmatprep.mubr.bf16.mxu0 0
      %1571 = vmatmul.mubr.bf16.gmra.mrb[0].mxu0 %v1398
      %v1572 = vpop.f32.mrb[0].mxu0
      %v1573 = vadd.f32 %v1476, %v1572
      %v1574 = vpop.f32.mrb[0].mxu0
      %v1575 = vpop.f32.mrb[0].mxu0
      %v1576 = vadd.f32 %v1479, %v1575
      %v1577 = vpop.f32.mrb[0].mxu0
      %1578 = vmatprep.mubr.bf16.mxu0 0
      %1579 = vmatmul.mubr.bf16.gmra.mrb[0].mxu0 %v1401
      %v1580 = vpop.f32.mrb[0].mxu0
      %v1581 = vadd.f32 %v1484, %v1580
      %v1582 = vpop.f32.mrb[0].mxu0
      %v1583 = vpop.f32.mrb[0].mxu0
      %v1584 = vadd.f32 %v1487, %v1583
      %v1585 = vpop.f32.mrb[0].mxu0
      %1586 = vmatprep.mubr.bf16.mxu0 0
      %1587 = vmatmul.mubr.bf16.gmra.mrb[0].mxu0 %v1404
      %v1588 = vpop.f32.mrb[0].mxu0
      %v1589 = vadd.f32 %v1492, %v1588
      %v1590 = vpop.f32.mrb[0].mxu0
      %v1591 = vpop.f32.mrb[0].mxu0
      %v1592 = vadd.f32 %v1495, %v1591
      %v1593 = vpop.f32.mrb[0].mxu0
      %1594 = vmatprep.mubr.bf16.mxu0 0
      %1595 = vmatmul.mubr.bf16.gmra.mrb[0].mxu0 %v1407
      %v1596 = vpop.f32.mrb[0].mxu0
      %v1597 = vadd.f32 %v1500, %v1596
      %v1598 = vpop.f32.mrb[0].mxu0
      %v1599 = vpop.f32.mrb[0].mxu0
      %v1600 = vadd.f32 %v1503, %v1599
      %v1601 = vpop.f32.mrb[0].mxu0
      %1602 = vdwg.mxu0
      %v1603 = vmax.f32 %v1541, 0.0
      %v1604 = vmax.f32 %v1544, 0.0
      %v1605 = vmax.f32 %v1549, 0.0
      %v1606 = vmax.f32 %v1552, 0.0
      %v1607 = vmax.f32 %v1557, 0.0
      %v1608 = vmax.f32 %v1560, 0.0
      %v1609 = vmax.f32 %v1565, 0.0
      %v1610 = vmax.f32 %v1568, 0.0
      %v1611 = vmax.f32 %v1573, 0.0
      %v1612 = vmax.f32 %v1576, 0.0
      %v1613 = vmax.f32 %v1581, 0.0
      %v1614 = vmax.f32 %v1584, 0.0
      %v1615 = vmax.f32 %v1589, 0.0
      %v1616 = vmax.f32 %v1592, 0.0
      %v1617 = vmax.f32 %v1597, 0.0
      %v1618 = vmax.f32 %v1600, 0.0
      %v1619 = vpack.c.bf16 %v1604, %v1603
      %v1620 = vpack.c.bf16 %v1606, %v1605
      %v1621 = vpack.c.bf16 %v1608, %v1607
      %v1622 = vpack.c.bf16 %v1610, %v1609
      %v1623 = vpack.c.bf16 %v1612, %v1611
      %v1624 = vpack.c.bf16 %v1614, %v1613
      %v1625 = vpack.c.bf16 %v1616, %v1615
      %v1626 = vpack.c.bf16 %v1618, %v1617
      %v1627 = vld [vmem:[%s5] sm:$0xff]
      %v1628 = vld [vmem:[%s5 + $0x8] sm:$0xff]
      %v1629 = vld [vmem:[%s5 + $0x10] sm:$0xff]
      %v1630 = vld [vmem:[%s5 + $0x18] sm:$0xff]
      %v1631 = vld [vmem:[%s5 + $0x20] sm:$0xff]
      %v1632 = vld [vmem:[%s5 + $0x28] sm:$0xff]
      %v1633 = vld [vmem:[%s5 + $0x30] sm:$0xff]
      %v1634 = vld [vmem:[%s5 + $0x38] sm:$0xff]
      %v1635 = vld [vmem:[%s5 + $0x40] sm:$0xff]
      %v1636 = vld [vmem:[%s5 + $0x48] sm:$0xff]
      %v1637 = vld [vmem:[%s5 + $0x50] sm:$0xff]
      %v1638 = vld [vmem:[%s5 + $0x58] sm:$0xff]
      %v1639 = vld [vmem:[%s5 + $0x60] sm:$0xff]
      %v1640 = vld [vmem:[%s5 + $0x68] sm:$0xff]
      %v1641 = vld [vmem:[%s5 + $0x70] sm:$0xff]
      %v1642 = vld [vmem:[%s5 + $0x78] sm:$0xff]
      %v1643 = vld [vmem:[%s5 + $0x80] sm:$0xff]
      %v1644 = vld [vmem:[%s5 + $0x88] sm:$0xff]
      %v1645 = vld [vmem:[%s5 + $0x90] sm:$0xff]
      %v1646 = vld [vmem:[%s5 + $0x98] sm:$0xff]
      %v1647 = vld [vmem:[%s5 + $0xa0] sm:$0xff]
      %v1648 = vld [vmem:[%s5 + $0xa8] sm:$0xff]
      %v1649 = vld [vmem:[%s5 + $0xb0] sm:$0xff]
      %v1650 = vld [vmem:[%s5 + $0xb8] sm:$0xff]
      %v1651 = vld [vmem:[%s5 + $0xc0] sm:$0xff]
      %v1652 = vld [vmem:[%s5 + $0xc8] sm:$0xff]
      %v1653 = vld [vmem:[%s5 + $0xd0] sm:$0xff]
      %v1654 = vld [vmem:[%s5 + $0xd8] sm:$0xff]
      %v1655 = vld [vmem:[%s5 + $0xe0] sm:$0xff]
      %v1656 = vld [vmem:[%s5 + $0xe8] sm:$0xff]
      %v1657 = vld [vmem:[%s5 + $0xf0] sm:$0xff]
      %v1658 = vld [vmem:[%s5 + $0xf8] sm:$0xff]
      %v1659 = vld [vmem:[%s6] sm:$0xf]
      %v1661 = vlaneseq
      %v1662 = vshrl.u32 %v1661, 7
      %v1663 = vsub.s32 0, %v1662
      %v1664 = vrot.slane %v1659, %v1663
      %v1665 = vlaneseq
      %v1666 = vshrl.u32 %v1665, 7
      %v1667 = vsub.s32 1, %v1666
      %v1668 = vrot.slane %v1659, %v1667
      %v1669 = vlaneseq
      %v1670 = vshrl.u32 %v1669, 7
      %v1671 = vsub.s32 2, %v1670
      %v1672 = vrot.slane %v1659, %v1671
      %v1673 = vlaneseq
      %v1674 = vshrl.u32 %v1673, 7
      %v1675 = vsub.s32 3, %v1674
      %v1676 = vrot.slane %v1659, %v1675
      %v1697 = vunpack.c.l.b16 %v503
      %v1698 = vunpack.c.l.b16 %v505
      %v1699 = vunpack.c.l.b16 %v507
      %v1700 = vunpack.c.l.b16 %v509
      %v1701 = vunpack.c.l.b16 %v511
      %v1702 = vunpack.c.l.b16 %v513
      %v1703 = vunpack.c.l.b16 %v515
      %v1704 = vunpack.c.l.b16 %v517
      %v1705 = vunpack.c.l.b16 %v519
      %v1706 = vunpack.c.l.b16 %v521
      %v1707 = vunpack.c.l.b16 %v523
      %v1708 = vunpack.c.l.b16 %v525
      %v1709 = vunpack.c.l.b16 %v527
      %v1710 = vunpack.c.l.b16 %v529
      %v1711 = vunpack.c.l.b16 %v531
      %v1712 = vunpack.c.l.b16 %v533
      %v1713 = vpack.c.b16 %v1698, %v1697
      %v1714 = vpack.c.b16 %v1700, %v1699
      %v1715 = vpack.c.b16 %v1702, %v1701
      %v1716 = vpack.c.b16 %v1704, %v1703
      %v1717 = vpack.c.b16 %v1706, %v1705
      %v1718 = vpack.c.b16 %v1708, %v1707
      %v1719 = vpack.c.b16 %v1710, %v1709
      %v1720 = vpack.c.b16 %v1712, %v1711
      %v1761 = vunpack.c.l.b16 %v1627
      %v1762 = vunpack.c.h.b16 %v1627
      %v1763 = vunpack.c.l.b16 %v1628
      %v1764 = vunpack.c.h.b16 %v1628
      %v1765 = vunpack.c.l.b16 %v1629
      %v1766 = vunpack.c.h.b16 %v1629
      %v1767 = vunpack.c.l.b16 %v1630
      %v1768 = vunpack.c.h.b16 %v1630
      %v1769 = vunpack.c.l.b16 %v1631
      %v1770 = vunpack.c.h.b16 %v1631
      %v1771 = vunpack.c.l.b16 %v1632
      %v1772 = vunpack.c.h.b16 %v1632
      %v1773 = vunpack.c.l.b16 %v1633
      %v1774 = vunpack.c.h.b16 %v1633
      %v1775 = vunpack.c.l.b16 %v1634
      %v1776 = vunpack.c.h.b16 %v1634
      %v1777 = vunpack.c.l.b16 %v1635
      %v1778 = vunpack.c.h.b16 %v1635
      %v1779 = vunpack.c.l.b16 %v1636
      %v1780 = vunpack.c.h.b16 %v1636
      %v1781 = vunpack.c.l.b16 %v1637
      %v1782 = vunpack.c.h.b16 %v1637
      %v1783 = vunpack.c.l.b16 %v1638
      %v1784 = vunpack.c.h.b16 %v1638
      %v1785 = vunpack.c.l.b16 %v1639
      %v1786 = vunpack.c.h.b16 %v1639
      %v1787 = vunpack.c.l.b16 %v1640
      %v1788 = vunpack.c.h.b16 %v1640
      %v1789 = vunpack.c.l.b16 %v1641
      %v1790 = vunpack.c.h.b16 %v1641
      %v1791 = vunpack.c.l.b16 %v1642
      %v1792 = vunpack.c.h.b16 %v1642
      %v1793 = vunpack.c.l.b16 %v1643
      %v1794 = vunpack.c.h.b16 %v1643
      %v1795 = vunpack.c.l.b16 %v1644
      %v1796 = vunpack.c.h.b16 %v1644
      %v1797 = vunpack.c.l.b16 %v1645
      %v1798 = vunpack.c.h.b16 %v1645
      %v1799 = vunpack.c.l.b16 %v1646
      %v1800 = vunpack.c.h.b16 %v1646
      %v1801 = vunpack.c.l.b16 %v1647
      %v1802 = vunpack.c.h.b16 %v1647
      %v1803 = vunpack.c.l.b16 %v1648
      %v1804 = vunpack.c.h.b16 %v1648
      %v1805 = vunpack.c.l.b16 %v1649
      %v1806 = vunpack.c.h.b16 %v1649
      %v1807 = vunpack.c.l.b16 %v1650
      %v1808 = vunpack.c.h.b16 %v1650
      %v1809 = vunpack.c.l.b16 %v1651
      %v1810 = vunpack.c.h.b16 %v1651
      %v1811 = vunpack.c.l.b16 %v1652
      %v1812 = vunpack.c.h.b16 %v1652
      %v1813 = vunpack.c.l.b16 %v1653
      %v1814 = vunpack.c.h.b16 %v1653
      %v1815 = vunpack.c.l.b16 %v1654
      %v1816 = vunpack.c.h.b16 %v1654
      %v1817 = vunpack.c.l.b16 %v1655
      %v1818 = vunpack.c.h.b16 %v1655
      %v1819 = vunpack.c.l.b16 %v1656
      %v1820 = vunpack.c.h.b16 %v1656
      %v1821 = vunpack.c.l.b16 %v1657
      %v1822 = vunpack.c.h.b16 %v1657
      %v1823 = vunpack.c.l.b16 %v1658
      %v1824 = vunpack.c.h.b16 %v1658
      %v1825 = vpack.c.b16 %v1765, %v1761
      %v1826 = vpack.c.b16 %v1766, %v1762
      %v1827 = vpack.c.b16 %v1767, %v1763
      %v1828 = vpack.c.b16 %v1768, %v1764
      %v1829 = vpack.c.b16 %v1773, %v1769
      %v1830 = vpack.c.b16 %v1774, %v1770
      %v1831 = vpack.c.b16 %v1775, %v1771
      %v1832 = vpack.c.b16 %v1776, %v1772
      %v1833 = vpack.c.b16 %v1781, %v1777
      %v1834 = vpack.c.b16 %v1782, %v1778
      %v1835 = vpack.c.b16 %v1783, %v1779
      %v1836 = vpack.c.b16 %v1784, %v1780
      %v1837 = vpack.c.b16 %v1789, %v1785
      %v1838 = vpack.c.b16 %v1790, %v1786
      %v1839 = vpack.c.b16 %v1791, %v1787
      %v1840 = vpack.c.b16 %v1792, %v1788
      %v1841 = vpack.c.b16 %v1797, %v1793
      %v1842 = vpack.c.b16 %v1798, %v1794
      %v1843 = vpack.c.b16 %v1799, %v1795
      %v1844 = vpack.c.b16 %v1800, %v1796
      %v1845 = vpack.c.b16 %v1805, %v1801
      %v1846 = vpack.c.b16 %v1806, %v1802
      %v1847 = vpack.c.b16 %v1807, %v1803
      %v1848 = vpack.c.b16 %v1808, %v1804
      %v1849 = vpack.c.b16 %v1813, %v1809
      %v1850 = vpack.c.b16 %v1814, %v1810
      %v1851 = vpack.c.b16 %v1815, %v1811
      %v1852 = vpack.c.b16 %v1816, %v1812
      %v1853 = vpack.c.b16 %v1821, %v1817
      %v1854 = vpack.c.b16 %v1822, %v1818
      %v1855 = vpack.c.b16 %v1823, %v1819
      %v1856 = vpack.c.b16 %v1824, %v1820
      %1889 = vmatprep.subr.bf16.mxu0 %v1826
      %1890 = vmatpush1.bf16.msra.mxu0 %v1825
      %1891 = vmatprep.subr.bf16.mxu0 %v1830
      %1892 = vmatpush1.bf16.msra.mxu0 %v1829
      %1893 = vmatprep.subr.bf16.mxu0 %v1834
      %1894 = vmatpush1.bf16.msra.mxu0 %v1833
      %1895 = vmatprep.subr.bf16.mxu0 %v1838
      %1896 = vmatpush1.bf16.msra.mxu0 %v1837
      %1897 = vmatprep.subr.bf16.mxu0 %v1842
      %1898 = vmatpush1.bf16.msra.mxu0 %v1841
      %1899 = vmatprep.subr.bf16.mxu0 %v1846
      %1900 = vmatpush1.bf16.msra.mxu0 %v1845
      %1901 = vmatprep.subr.bf16.mxu0 %v1850
      %1902 = vmatpush1.bf16.msra.mxu0 %v1849
      %1903 = vmatprep.subr.bf16.mxu0 %v1854
      %1904 = vmatpush1.bf16.msra.mxu0 %v1853
      %1905 = vmatprep.subr.bf16.mxu0 0
      %1906 = vmatpush1.bf16.msra.mxu0 0
      %1907 = vmatprep.subr.bf16.mxu0 0
      %1908 = vmatpush1.bf16.msra.mxu0 0
      %1909 = vmatprep.subr.bf16.mxu0 0
      %1910 = vmatpush1.bf16.msra.mxu0 0
      %1911 = vmatprep.subr.bf16.mxu0 0
      %1912 = vmatpush1.bf16.msra.mxu0 0
      %1913 = vmatprep.subr.bf16.mxu0 0
      %1914 = vmatpush1.bf16.msra.mxu0 0
      %1915 = vmatprep.subr.bf16.mxu0 0
      %1916 = vmatpush1.bf16.msra.mxu0 0
      %1917 = vmatprep.subr.bf16.mxu0 0
      %1918 = vmatpush1.bf16.msra.mxu0 0
      %1919 = vmatprep.subr.bf16.mxu0 0
      %1920 = vmatpush1.bf16.msra.mxu0 0
      %1921 = vmatprep.mubr.bf16.mxu0 0
      %1922 = vmatmul.mubr.bf16.gmra.mrb[0].mxu0 %v1713
      %v1923 = vpop.f32.mrb[0].mxu0
      %v1924 = vadd.f32 %v1664, %v1923
      %v1925 = vpop.f32.mrb[0].mxu0
      %v1926 = vadd.f32 %v1668, %v1925
      %v1927 = vpop.f32.mrb[0].mxu0
      %v1928 = vadd.f32 %v1664, %v1927
      %v1929 = vpop.f32.mrb[0].mxu0
      %v1930 = vadd.f32 %v1668, %v1929
      %1931 = vmatprep.mubr.bf16.mxu0 0
      %1932 = vmatmul.mubr.bf16.gmra.mrb[0].mxu0 %v1714
      %v1933 = vpop.f32.mrb[0].mxu0
      %v1934 = vadd.f32 %v1664, %v1933
      %v1935 = vpop.f32.mrb[0].mxu0
      %v1936 = vadd.f32 %v1668, %v1935
      %v1937 = vpop.f32.mrb[0].mxu0
      %v1938 = vadd.f32 %v1664, %v1937
      %v1939 = vpop.f32.mrb[0].mxu0
      %v1940 = vadd.f32 %v1668, %v1939
      %1941 = vmatprep.mubr.bf16.mxu0 0
      %1942 = vmatmul.mubr.bf16.gmra.mrb[0].mxu0 %v1715
      %v1943 = vpop.f32.mrb[0].mxu0
      %v1944 = vadd.f32 %v1664, %v1943
      %v1945 = vpop.f32.mrb[0].mxu0
      %v1946 = vadd.f32 %v1668, %v1945
      %v1947 = vpop.f32.mrb[0].mxu0
      %v1948 = vadd.f32 %v1664, %v1947
      %v1949 = vpop.f32.mrb[0].mxu0
      %v1950 = vadd.f32 %v1668, %v1949
      %1951 = vmatprep.mubr.bf16.mxu0 0
      %1952 = vmatmul.mubr.bf16.gmra.mrb[0].mxu0 %v1716
      %v1953 = vpop.f32.mrb[0].mxu0
      %v1954 = vadd.f32 %v1664, %v1953
      %v1955 = vpop.f32.mrb[0].mxu0
      %v1956 = vadd.f32 %v1668, %v1955
      %v1957 = vpop.f32.mrb[0].mxu0
      %v1958 = vadd.f32 %v1664, %v1957
      %v1959 = vpop.f32.mrb[0].mxu0
      %v1960 = vadd.f32 %v1668, %v1959
      %1961 = vmatprep.mubr.bf16.mxu0 0
      %1962 = vmatmul.mubr.bf16.gmra.mrb[0].mxu0 %v1717
      %v1963 = vpop.f32.mrb[0].mxu0
      %v1964 = vadd.f32 %v1664, %v1963
      %v1965 = vpop.f32.mrb[0].mxu0
      %v1966 = vadd.f32 %v1668, %v1965
      %v1967 = vpop.f32.mrb[0].mxu0
      %v1968 = vadd.f32 %v1664, %v1967
      %v1969 = vpop.f32.mrb[0].mxu0
      %v1970 = vadd.f32 %v1668, %v1969
      %1971 = vmatprep.mubr.bf16.mxu0 0
      %1972 = vmatmul.mubr.bf16.gmra.mrb[0].mxu0 %v1718
      %v1973 = vpop.f32.mrb[0].mxu0
      %v1974 = vadd.f32 %v1664, %v1973
      %v1975 = vpop.f32.mrb[0].mxu0
      %v1976 = vadd.f32 %v1668, %v1975
      %v1977 = vpop.f32.mrb[0].mxu0
      %v1978 = vadd.f32 %v1664, %v1977
      %v1979 = vpop.f32.mrb[0].mxu0
      %v1980 = vadd.f32 %v1668, %v1979
      %1981 = vmatprep.mubr.bf16.mxu0 0
      %1982 = vmatmul.mubr.bf16.gmra.mrb[0].mxu0 %v1719
      %v1983 = vpop.f32.mrb[0].mxu0
      %v1984 = vadd.f32 %v1664, %v1983
      %v1985 = vpop.f32.mrb[0].mxu0
      %v1986 = vadd.f32 %v1668, %v1985
      %v1987 = vpop.f32.mrb[0].mxu0
      %v1988 = vadd.f32 %v1664, %v1987
      %v1989 = vpop.f32.mrb[0].mxu0
      %v1990 = vadd.f32 %v1668, %v1989
      %1991 = vmatprep.mubr.bf16.mxu0 0
      %1992 = vmatmul.mubr.bf16.gmra.mrb[0].mxu0 %v1720
      %v1993 = vpop.f32.mrb[0].mxu0
      %v1994 = vadd.f32 %v1664, %v1993
      %v1995 = vpop.f32.mrb[0].mxu0
      %v1996 = vadd.f32 %v1668, %v1995
      %v1997 = vpop.f32.mrb[0].mxu0
      %v1998 = vadd.f32 %v1664, %v1997
      %v1999 = vpop.f32.mrb[0].mxu0
      %v2000 = vadd.f32 %v1668, %v1999
      %2001 = vdwg.mxu0
      %2002 = vmatprep.subr.bf16.mxu0 %v1828
      %2003 = vmatpush1.bf16.msra.mxu0 %v1827
      %2004 = vmatprep.subr.bf16.mxu0 %v1832
      %2005 = vmatpush1.bf16.msra.mxu0 %v1831
      %2006 = vmatprep.subr.bf16.mxu0 %v1836
      %2007 = vmatpush1.bf16.msra.mxu0 %v1835
      %2008 = vmatprep.subr.bf16.mxu0 %v1840
      %2009 = vmatpush1.bf16.msra.mxu0 %v1839
      %2010 = vmatprep.subr.bf16.mxu0 %v1844
      %2011 = vmatpush1.bf16.msra.mxu0 %v1843
      %2012 = vmatprep.subr.bf16.mxu0 %v1848
      %2013 = vmatpush1.bf16.msra.mxu0 %v1847
      %2014 = vmatprep.subr.bf16.mxu0 %v1852
      %2015 = vmatpush1.bf16.msra.mxu0 %v1851
      %2016 = vmatprep.subr.bf16.mxu0 %v1856
      %2017 = vmatpush1.bf16.msra.mxu0 %v1855
      %2018 = vmatprep.subr.bf16.mxu0 0
      %2019 = vmatpush1.bf16.msra.mxu0 0
      %2020 = vmatprep.subr.bf16.mxu0 0
      %2021 = vmatpush1.bf16.msra.mxu0 0
      %2022 = vmatprep.subr.bf16.mxu0 0
      %2023 = vmatpush1.bf16.msra.mxu0 0
      %2024 = vmatprep.subr.bf16.mxu0 0
      %2025 = vmatpush1.bf16.msra.mxu0 0
      %2026 = vmatprep.subr.bf16.mxu0 0
      %2027 = vmatpush1.bf16.msra.mxu0 0
      %2028 = vmatprep.subr.bf16.mxu0 0
      %2029 = vmatpush1.bf16.msra.mxu0 0
      %2030 = vmatprep.subr.bf16.mxu0 0
      %2031 = vmatpush1.bf16.msra.mxu0 0
      %2032 = vmatprep.subr.bf16.mxu0 0
      %2033 = vmatpush1.bf16.msra.mxu0 0
      %2034 = vmatprep.mubr.bf16.mxu0 0
      %2035 = vmatmul.mubr.bf16.gmra.mrb[0].mxu0 %v1713
      %v2036 = vpop.f32.mrb[0].mxu0
      %v2037 = vadd.f32 %v1672, %v2036
      %v2038 = vpop.f32.mrb[0].mxu0
      %v2039 = vadd.f32 %v1676, %v2038
      %v2040 = vpop.f32.mrb[0].mxu0
      %v2041 = vadd.f32 %v1672, %v2040
      %v2042 = vpop.f32.mrb[0].mxu0
      %v2043 = vadd.f32 %v1676, %v2042
      %2044 = vmatprep.mubr.bf16.mxu0 0
      %2045 = vmatmul.mubr.bf16.gmra.mrb[0].mxu0 %v1714
      %v2046 = vpop.f32.mrb[0].mxu0
      %v2047 = vadd.f32 %v1672, %v2046
      %v2048 = vpop.f32.mrb[0].mxu0
      %v2049 = vadd.f32 %v1676, %v2048
      %v2050 = vpop.f32.mrb[0].mxu0
      %v2051 = vadd.f32 %v1672, %v2050
      %v2052 = vpop.f32.mrb[0].mxu0
      %v2053 = vadd.f32 %v1676, %v2052
      %2054 = vmatprep.mubr.bf16.mxu0 0
      %2055 = vmatmul.mubr.bf16.gmra.mrb[0].mxu0 %v1715
      %v2056 = vpop.f32.mrb[0].mxu0
      %v2057 = vadd.f32 %v1672, %v2056
      %v2058 = vpop.f32.mrb[0].mxu0
      %v2059 = vadd.f32 %v1676, %v2058
      %v2060 = vpop.f32.mrb[0].mxu0
      %v2061 = vadd.f32 %v1672, %v2060
      %v2062 = vpop.f32.mrb[0].mxu0
      %v2063 = vadd.f32 %v1676, %v2062
      %2064 = vmatprep.mubr.bf16.mxu0 0
      %2065 = vmatmul.mubr.bf16.gmra.mrb[0].mxu0 %v1716
      %v2066 = vpop.f32.mrb[0].mxu0
      %v2067 = vadd.f32 %v1672, %v2066
      %v2068 = vpop.f32.mrb[0].mxu0
      %v2069 = vadd.f32 %v1676, %v2068
      %v2070 = vpop.f32.mrb[0].mxu0
      %v2071 = vadd.f32 %v1672, %v2070
      %v2072 = vpop.f32.mrb[0].mxu0
      %v2073 = vadd.f32 %v1676, %v2072
      %2074 = vmatprep.mubr.bf16.mxu0 0
      %2075 = vmatmul.mubr.bf16.gmra.mrb[0].mxu0 %v1717
      %v2076 = vpop.f32.mrb[0].mxu0
      %v2077 = vadd.f32 %v1672, %v2076
      %v2078 = vpop.f32.mrb[0].mxu0
      %v2079 = vadd.f32 %v1676, %v2078
      %v2080 = vpop.f32.mrb[0].mxu0
      %v2081 = vadd.f32 %v1672, %v2080
      %v2082 = vpop.f32.mrb[0].mxu0
      %v2083 = vadd.f32 %v1676, %v2082
      %2084 = vmatprep.mubr.bf16.mxu0 0
      %2085 = vmatmul.mubr.bf16.gmra.mrb[0].mxu0 %v1718
      %v2086 = vpop.f32.mrb[0].mxu0
      %v2087 = vadd.f32 %v1672, %v2086
      %v2088 = vpop.f32.mrb[0].mxu0
      %v2089 = vadd.f32 %v1676, %v2088
      %v2090 = vpop.f32.mrb[0].mxu0
      %v2091 = vadd.f32 %v1672, %v2090
      %v2092 = vpop.f32.mrb[0].mxu0
      %v2093 = vadd.f32 %v1676, %v2092
      %2094 = vmatprep.mubr.bf16.mxu0 0
      %2095 = vmatmul.mubr.bf16.gmra.mrb[0].mxu0 %v1719
      %v2096 = vpop.f32.mrb[0].mxu0
      %v2097 = vadd.f32 %v1672, %v2096
      %v2098 = vpop.f32.mrb[0].mxu0
      %v2099 = vadd.f32 %v1676, %v2098
      %v2100 = vpop.f32.mrb[0].mxu0
      %v2101 = vadd.f32 %v1672, %v2100
      %v2102 = vpop.f32.mrb[0].mxu0
      %v2103 = vadd.f32 %v1676, %v2102
      %2104 = vmatprep.mubr.bf16.mxu0 0
      %2105 = vmatmul.mubr.bf16.gmra.mrb[0].mxu0 %v1720
      %v2106 = vpop.f32.mrb[0].mxu0
      %v2107 = vadd.f32 %v1672, %v2106
      %v2108 = vpop.f32.mrb[0].mxu0
      %v2109 = vadd.f32 %v1676, %v2108
      %v2110 = vpop.f32.mrb[0].mxu0
      %v2111 = vadd.f32 %v1672, %v2110
      %v2112 = vpop.f32.mrb[0].mxu0
      %v2113 = vadd.f32 %v1676, %v2112
      %2114 = vdwg.mxu0
      %v2115 = vmax.f32 %v1924, 0.0
      %v2116 = vmax.f32 %v1926, 0.0
      %v2117 = vmax.f32 %v2037, 0.0
      %v2118 = vmax.f32 %v2039, 0.0
      %v2119 = vmax.f32 %v1928, 0.0
      %v2120 = vmax.f32 %v1930, 0.0
      %v2121 = vmax.f32 %v2041, 0.0
      %v2122 = vmax.f32 %v2043, 0.0
      %v2123 = vmax.f32 %v1934, 0.0
      %v2124 = vmax.f32 %v1936, 0.0
      %v2125 = vmax.f32 %v2047, 0.0
      %v2126 = vmax.f32 %v2049, 0.0
      %v2127 = vmax.f32 %v1938, 0.0
      %v2128 = vmax.f32 %v1940, 0.0
      %v2129 = vmax.f32 %v2051, 0.0
      %v2130 = vmax.f32 %v2053, 0.0
      %v2131 = vmax.f32 %v1944, 0.0
      %v2132 = vmax.f32 %v1946, 0.0
      %v2133 = vmax.f32 %v2057, 0.0
      %v2134 = vmax.f32 %v2059, 0.0
      %v2135 = vmax.f32 %v1948, 0.0
      %v2136 = vmax.f32 %v1950, 0.0
      %v2137 = vmax.f32 %v2061, 0.0
      %v2138 = vmax.f32 %v2063, 0.0
      %v2139 = vmax.f32 %v1954, 0.0
      %v2140 = vmax.f32 %v1956, 0.0
      %v2141 = vmax.f32 %v2067, 0.0
      %v2142 = vmax.f32 %v2069, 0.0
      %v2143 = vmax.f32 %v1958, 0.0
      %v2144 = vmax.f32 %v1960, 0.0
      %v2145 = vmax.f32 %v2071, 0.0
      %v2146 = vmax.f32 %v2073, 0.0
      %v2147 = vmax.f32 %v1964, 0.0
      %v2148 = vmax.f32 %v1966, 0.0
      %v2149 = vmax.f32 %v2077, 0.0
      %v2150 = vmax.f32 %v2079, 0.0
      %v2151 = vmax.f32 %v1968, 0.0
      %v2152 = vmax.f32 %v1970, 0.0
      %v2153 = vmax.f32 %v2081, 0.0
      %v2154 = vmax.f32 %v2083, 0.0
      %v2155 = vmax.f32 %v1974, 0.0
      %v2156 = vmax.f32 %v1976, 0.0
      %v2157 = vmax.f32 %v2087, 0.0
      %v2158 = vmax.f32 %v2089, 0.0
      %v2159 = vmax.f32 %v1978, 0.0
      %v2160 = vmax.f32 %v1980, 0.0
      %v2161 = vmax.f32 %v2091, 0.0
      %v2162 = vmax.f32 %v2093, 0.0
      %v2163 = vmax.f32 %v1984, 0.0
      %v2164 = vmax.f32 %v1986, 0.0
      %v2165 = vmax.f32 %v2097, 0.0
      %v2166 = vmax.f32 %v2099, 0.0
      %v2167 = vmax.f32 %v1988, 0.0
      %v2168 = vmax.f32 %v1990, 0.0
      %v2169 = vmax.f32 %v2101, 0.0
      %v2170 = vmax.f32 %v2103, 0.0
      %v2171 = vmax.f32 %v1994, 0.0
      %v2172 = vmax.f32 %v1996, 0.0
      %v2173 = vmax.f32 %v2107, 0.0
      %v2174 = vmax.f32 %v2109, 0.0
      %v2175 = vmax.f32 %v1998, 0.0
      %v2176 = vmax.f32 %v2000, 0.0
      %v2177 = vmax.f32 %v2111, 0.0
      %v2178 = vmax.f32 %v2113, 0.0
      %v2179 = vpack.c.bf16 %v2119, %v2115
      %v2180 = vpack.c.bf16 %v2120, %v2116
      %v2181 = vpack.c.bf16 %v2121, %v2117
      %v2182 = vpack.c.bf16 %v2122, %v2118
      %v2183 = vpack.c.bf16 %v2127, %v2123
      %v2184 = vpack.c.bf16 %v2128, %v2124
      %v2185 = vpack.c.bf16 %v2129, %v2125
      %v2186 = vpack.c.bf16 %v2130, %v2126
      %v2187 = vpack.c.bf16 %v2135, %v2131
      %v2188 = vpack.c.bf16 %v2136, %v2132
      %v2189 = vpack.c.bf16 %v2137, %v2133
      %v2190 = vpack.c.bf16 %v2138, %v2134
      %v2191 = vpack.c.bf16 %v2143, %v2139
      %v2192 = vpack.c.bf16 %v2144, %v2140
      %v2193 = vpack.c.bf16 %v2145, %v2141
      %v2194 = vpack.c.bf16 %v2146, %v2142
      %v2195 = vpack.c.bf16 %v2151, %v2147
      %v2196 = vpack.c.bf16 %v2152, %v2148
      %v2197 = vpack.c.bf16 %v2153, %v2149
      %v2198 = vpack.c.bf16 %v2154, %v2150
      %v2199 = vpack.c.bf16 %v2159, %v2155
      %v2200 = vpack.c.bf16 %v2160, %v2156
      %v2201 = vpack.c.bf16 %v2161, %v2157
      %v2202 = vpack.c.bf16 %v2162, %v2158
      %v2203 = vpack.c.bf16 %v2167, %v2163
      %v2204 = vpack.c.bf16 %v2168, %v2164
      %v2205 = vpack.c.bf16 %v2169, %v2165
      %v2206 = vpack.c.bf16 %v2170, %v2166
      %v2207 = vpack.c.bf16 %v2175, %v2171
      %v2208 = vpack.c.bf16 %v2176, %v2172
      %v2209 = vpack.c.bf16 %v2177, %v2173
      %v2210 = vpack.c.bf16 %v2178, %v2174
      %v2211 = vld [vmem:[%s7] sm:$0xf]
      %v2212 = vld [vmem:[%s7 + $0x4] sm:$0xf]
      %v2213 = vld [vmem:[%s7 + $0x8] sm:$0xf]
      %v2214 = vld [vmem:[%s7 + $0xc] sm:$0xf]
      %v2215 = vld [vmem:[%s7 + $0x10] sm:$0xf]
      %v2216 = vld [vmem:[%s7 + $0x14] sm:$0xf]
      %v2217 = vld [vmem:[%s7 + $0x18] sm:$0xf]
      %v2218 = vld [vmem:[%s7 + $0x1c] sm:$0xf]
      %v2219 = vld [vmem:[%s7 + $0x20] sm:$0xf]
      %v2220 = vld [vmem:[%s7 + $0x24] sm:$0xf]
      %v2221 = vld [vmem:[%s7 + $0x28] sm:$0xf]
      %v2222 = vld [vmem:[%s7 + $0x2c] sm:$0xf]
      %v2223 = vld [vmem:[%s7 + $0x30] sm:$0xf]
      %v2224 = vld [vmem:[%s7 + $0x34] sm:$0xf]
      %v2225 = vld [vmem:[%s7 + $0x38] sm:$0xf]
      %v2226 = vld [vmem:[%s7 + $0x3c] sm:$0xf]
      %v2227 = vld [vmem:[%s7 + $0x40] sm:$0xf]
      %v2228 = vld [vmem:[%s7 + $0x44] sm:$0xf]
      %v2229 = vld [vmem:[%s7 + $0x48] sm:$0xf]
      %v2230 = vld [vmem:[%s7 + $0x4c] sm:$0xf]
      %v2231 = vld [vmem:[%s7 + $0x50] sm:$0xf]
      %v2232 = vld [vmem:[%s7 + $0x54] sm:$0xf]
      %v2233 = vld [vmem:[%s7 + $0x58] sm:$0xf]
      %v2234 = vld [vmem:[%s7 + $0x5c] sm:$0xf]
      %v2235 = vld [vmem:[%s7 + $0x60] sm:$0xf]
      %v2236 = vld [vmem:[%s7 + $0x64] sm:$0xf]
      %v2237 = vld [vmem:[%s7 + $0x68] sm:$0xf]
      %v2238 = vld [vmem:[%s7 + $0x6c] sm:$0xf]
      %v2239 = vld [vmem:[%s7 + $0x70] sm:$0xf]
      %v2240 = vld [vmem:[%s7 + $0x74] sm:$0xf]
      %v2241 = vld [vmem:[%s7 + $0x78] sm:$0xf]
      %v2242 = vld [vmem:[%s7 + $0x7c] sm:$0xf]
      %v2243 = vld [vmem:[%s7 + $0x80] sm:$0xf]
      %v2244 = vld [vmem:[%s7 + $0x84] sm:$0xf]
      %v2245 = vld [vmem:[%s7 + $0x88] sm:$0xf]
      %v2246 = vld [vmem:[%s7 + $0x8c] sm:$0xf]
      %v2247 = vld [vmem:[%s7 + $0x90] sm:$0xf]
      %v2248 = vld [vmem:[%s7 + $0x94] sm:$0xf]
      %v2249 = vld [vmem:[%s7 + $0x98] sm:$0xf]
      %v2250 = vld [vmem:[%s7 + $0x9c] sm:$0xf]
      %v2251 = vld [vmem:[%s7 + $0xa0] sm:$0xf]
      %v2252 = vld [vmem:[%s7 + $0xa4] sm:$0xf]
      %v2253 = vld [vmem:[%s7 + $0xa8] sm:$0xf]
      %v2254 = vld [vmem:[%s7 + $0xac] sm:$0xf]
      %v2255 = vld [vmem:[%s7 + $0xb0] sm:$0xf]
      %v2256 = vld [vmem:[%s7 + $0xb4] sm:$0xf]
      %v2257 = vld [vmem:[%s7 + $0xb8] sm:$0xf]
      %v2258 = vld [vmem:[%s7 + $0xbc] sm:$0xf]
      %v2259 = vld [vmem:[%s7 + $0xc0] sm:$0xf]
      %v2260 = vld [vmem:[%s7 + $0xc4] sm:$0xf]
      %v2261 = vld [vmem:[%s7 + $0xc8] sm:$0xf]
      %v2262 = vld [vmem:[%s7 + $0xcc] sm:$0xf]
      %v2263 = vld [vmem:[%s7 + $0xd0] sm:$0xf]
      %v2264 = vld [vmem:[%s7 + $0xd4] sm:$0xf]
      %v2265 = vld [vmem:[%s7 + $0xd8] sm:$0xf]
      %v2266 = vld [vmem:[%s7 + $0xdc] sm:$0xf]
      %v2267 = vld [vmem:[%s7 + $0xe0] sm:$0xf]
      %v2268 = vld [vmem:[%s7 + $0xe4] sm:$0xf]
      %v2269 = vld [vmem:[%s7 + $0xe8] sm:$0xf]
      %v2270 = vld [vmem:[%s7 + $0xec] sm:$0xf]
      %v2271 = vld [vmem:[%s7 + $0xf0] sm:$0xf]
      %v2272 = vld [vmem:[%s7 + $0xf4] sm:$0xf]
      %v2273 = vld [vmem:[%s7 + $0xf8] sm:$0xf]
      %v2274 = vld [vmem:[%s7 + $0xfc] sm:$0xf]
      %v2275 = vld [vmem:[%s8] sm:$0x1]
      %v2277 = vlaneseq
      %v2278 = vshrl.u32 %v2277, 7
      %v2279 = vsub.s32 0, %v2278
      %v2280 = vrot.slane %v2275, %v2279
      %v2346 = vunpack.c.l.b16 %v2211
      %v2347 = vunpack.c.l.b16 %v2212
      %v2348 = vunpack.c.l.b16 %v2213
      %v2349 = vunpack.c.l.b16 %v2214
      %v2350 = vunpack.c.l.b16 %v2215
      %v2351 = vunpack.c.l.b16 %v2216
      %v2352 = vunpack.c.l.b16 %v2217
      %v2353 = vunpack.c.l.b16 %v2218
      %v2354 = vunpack.c.l.b16 %v2219
      %v2355 = vunpack.c.l.b16 %v2220
      %v2356 = vunpack.c.l.b16 %v2221
      %v2357 = vunpack.c.l.b16 %v2222
      %v2358 = vunpack.c.l.b16 %v2223
      %v2359 = vunpack.c.l.b16 %v2224
      %v2360 = vunpack.c.l.b16 %v2225
      %v2361 = vunpack.c.l.b16 %v2226
      %v2362 = vunpack.c.l.b16 %v2227
      %v2363 = vunpack.c.l.b16 %v2228
      %v2364 = vunpack.c.l.b16 %v2229
      %v2365 = vunpack.c.l.b16 %v2230
      %v2366 = vunpack.c.l.b16 %v2231
      %v2367 = vunpack.c.l.b16 %v2232
      %v2368 = vunpack.c.l.b16 %v2233
      %v2369 = vunpack.c.l.b16 %v2234
      %v2370 = vunpack.c.l.b16 %v2235
      %v2371 = vunpack.c.l.b16 %v2236
      %v2372 = vunpack.c.l.b16 %v2237
      %v2373 = vunpack.c.l.b16 %v2238
      %v2374 = vunpack.c.l.b16 %v2239
      %v2375 = vunpack.c.l.b16 %v2240
      %v2376 = vunpack.c.l.b16 %v2241
      %v2377 = vunpack.c.l.b16 %v2242
      %v2378 = vunpack.c.l.b16 %v2243
      %v2379 = vunpack.c.l.b16 %v2244
      %v2380 = vunpack.c.l.b16 %v2245
      %v2381 = vunpack.c.l.b16 %v2246
      %v2382 = vunpack.c.l.b16 %v2247
      %v2383 = vunpack.c.l.b16 %v2248
      %v2384 = vunpack.c.l.b16 %v2249
      %v2385 = vunpack.c.l.b16 %v2250
      %v2386 = vunpack.c.l.b16 %v2251
      %v2387 = vunpack.c.l.b16 %v2252
      %v2388 = vunpack.c.l.b16 %v2253
      %v2389 = vunpack.c.l.b16 %v2254
      %v2390 = vunpack.c.l.b16 %v2255
      %v2391 = vunpack.c.l.b16 %v2256
      %v2392 = vunpack.c.l.b16 %v2257
      %v2393 = vunpack.c.l.b16 %v2258
      %v2394 = vunpack.c.l.b16 %v2259
      %v2395 = vunpack.c.l.b16 %v2260
      %v2396 = vunpack.c.l.b16 %v2261
      %v2397 = vunpack.c.l.b16 %v2262
      %v2398 = vunpack.c.l.b16 %v2263
      %v2399 = vunpack.c.l.b16 %v2264
      %v2400 = vunpack.c.l.b16 %v2265
      %v2401 = vunpack.c.l.b16 %v2266
      %v2402 = vunpack.c.l.b16 %v2267
      %v2403 = vunpack.c.l.b16 %v2268
      %v2404 = vunpack.c.l.b16 %v2269
      %v2405 = vunpack.c.l.b16 %v2270
      %v2406 = vunpack.c.l.b16 %v2271
      %v2407 = vunpack.c.l.b16 %v2272
      %v2408 = vunpack.c.l.b16 %v2273
      %v2409 = vunpack.c.l.b16 %v2274
      %v2410 = vpack.c.b16 %v2347, %v2346
      %v2411 = vpack.c.b16 %v2349, %v2348
      %v2412 = vpack.c.b16 %v2351, %v2350
      %v2413 = vpack.c.b16 %v2353, %v2352
      %v2414 = vpack.c.b16 %v2355, %v2354
      %v2415 = vpack.c.b16 %v2357, %v2356
      %v2416 = vpack.c.b16 %v2359, %v2358
      %v2417 = vpack.c.b16 %v2361, %v2360
      %v2418 = vpack.c.b16 %v2363, %v2362
      %v2419 = vpack.c.b16 %v2365, %v2364
      %v2420 = vpack.c.b16 %v2367, %v2366
      %v2421 = vpack.c.b16 %v2369, %v2368
      %v2422 = vpack.c.b16 %v2371, %v2370
      %v2423 = vpack.c.b16 %v2373, %v2372
      %v2424 = vpack.c.b16 %v2375, %v2374
      %v2425 = vpack.c.b16 %v2377, %v2376
      %v2426 = vpack.c.b16 %v2379, %v2378
      %v2427 = vpack.c.b16 %v2381, %v2380
      %v2428 = vpack.c.b16 %v2383, %v2382
      %v2429 = vpack.c.b16 %v2385, %v2384
      %v2430 = vpack.c.b16 %v2387, %v2386
      %v2431 = vpack.c.b16 %v2389, %v2388
      %v2432 = vpack.c.b16 %v2391, %v2390
      %v2433 = vpack.c.b16 %v2393, %v2392
      %v2434 = vpack.c.b16 %v2395, %v2394
      %v2435 = vpack.c.b16 %v2397, %v2396
      %v2436 = vpack.c.b16 %v2399, %v2398
      %v2437 = vpack.c.b16 %v2401, %v2400
      %v2438 = vpack.c.b16 %v2403, %v2402
      %v2439 = vpack.c.b16 %v2405, %v2404
      %v2440 = vpack.c.b16 %v2407, %v2406
      %v2441 = vpack.c.b16 %v2409, %v2408
      %2474 = vmatprep.subr.bf16.mxu0 0
      %2475 = vmatpush1.bf16.msra.mxu0 %v2410
      %2476 = vmatprep.subr.bf16.mxu0 0
      %2477 = vmatpush1.bf16.msra.mxu0 %v2411
      %2478 = vmatprep.subr.bf16.mxu0 0
      %2479 = vmatpush1.bf16.msra.mxu0 %v2412
      %2480 = vmatprep.subr.bf16.mxu0 0
      %2481 = vmatpush1.bf16.msra.mxu0 %v2413
      %2482 = vmatprep.subr.bf16.mxu0 0
      %2483 = vmatpush1.bf16.msra.mxu0 %v2414
      %2484 = vmatprep.subr.bf16.mxu0 0
      %2485 = vmatpush1.bf16.msra.mxu0 %v2415
      %2486 = vmatprep.subr.bf16.mxu0 0
      %2487 = vmatpush1.bf16.msra.mxu0 %v2416
      %2488 = vmatprep.subr.bf16.mxu0 0
      %2489 = vmatpush1.bf16.msra.mxu0 %v2417
      %2490 = vmatprep.subr.bf16.mxu0 0
      %2491 = vmatpush1.bf16.msra.mxu0 %v2418
      %2492 = vmatprep.subr.bf16.mxu0 0
      %2493 = vmatpush1.bf16.msra.mxu0 %v2419
      %2494 = vmatprep.subr.bf16.mxu0 0
      %2495 = vmatpush1.bf16.msra.mxu0 %v2420
      %2496 = vmatprep.subr.bf16.mxu0 0
      %2497 = vmatpush1.bf16.msra.mxu0 %v2421
      %2498 = vmatprep.subr.bf16.mxu0 0
      %2499 = vmatpush1.bf16.msra.mxu0 %v2422
      %2500 = vmatprep.subr.bf16.mxu0 0
      %2501 = vmatpush1.bf16.msra.mxu0 %v2423
      %2502 = vmatprep.subr.bf16.mxu0 0
      %2503 = vmatpush1.bf16.msra.mxu0 %v2424
      %2504 = vmatprep.subr.bf16.mxu0 0
      %2505 = vmatpush1.bf16.msra.mxu0 %v2425
      %2506 = vmatprep.mubr.bf16.mxu0 %v2180
      %2507 = vmatmul.mubr.bf16.gmra.mrb[0].mxu0 %v2179
      %v2508 = vpop.f32.mrb[0].mxu0
      %v2509 = vadd.f32 %v2280, %v2508
      %v2510 = vpop.f32.mrb[0].mxu0
      %v2511 = vpop.f32.mrb[0].mxu0
      %v2512 = vadd.f32 %v2280, %v2511
      %v2513 = vpop.f32.mrb[0].mxu0
      %2514 = vmatprep.mubr.bf16.mxu0 %v2184
      %2515 = vmatmul.mubr.bf16.gmra.mrb[0].mxu0 %v2183
      %v2516 = vpop.f32.mrb[0].mxu0
      %v2517 = vadd.f32 %v2280, %v2516
      %v2518 = vpop.f32.mrb[0].mxu0
      %v2519 = vpop.f32.mrb[0].mxu0
      %v2520 = vadd.f32 %v2280, %v2519
      %v2521 = vpop.f32.mrb[0].mxu0
      %2522 = vmatprep.mubr.bf16.mxu0 %v2188
      %2523 = vmatmul.mubr.bf16.gmra.mrb[0].mxu0 %v2187
      %v2524 = vpop.f32.mrb[0].mxu0
      %v2525 = vadd.f32 %v2280, %v2524
      %v2526 = vpop.f32.mrb[0].mxu0
      %v2527 = vpop.f32.mrb[0].mxu0
      %v2528 = vadd.f32 %v2280, %v2527
      %v2529 = vpop.f32.mrb[0].mxu0
      %2530 = vmatprep.mubr.bf16.mxu0 %v2192
      %2531 = vmatmul.mubr.bf16.gmra.mrb[0].mxu0 %v2191
      %v2532 = vpop.f32.mrb[0].mxu0
      %v2533 = vadd.f32 %v2280, %v2532
      %v2534 = vpop.f32.mrb[0].mxu0
      %v2535 = vpop.f32.mrb[0].mxu0
      %v2536 = vadd.f32 %v2280, %v2535
      %v2537 = vpop.f32.mrb[0].mxu0
      %2538 = vmatprep.mubr.bf16.mxu0 %v2196
      %2539 = vmatmul.mubr.bf16.gmra.mrb[0].mxu0 %v2195
      %v2540 = vpop.f32.mrb[0].mxu0
      %v2541 = vadd.f32 %v2280, %v2540
      %v2542 = vpop.f32.mrb[0].mxu0
      %v2543 = vpop.f32.mrb[0].mxu0
      %v2544 = vadd.f32 %v2280, %v2543
      %v2545 = vpop.f32.mrb[0].mxu0
      %2546 = vmatprep.mubr.bf16.mxu0 %v2200
      %2547 = vmatmul.mubr.bf16.gmra.mrb[0].mxu0 %v2199
      %v2548 = vpop.f32.mrb[0].mxu0
      %v2549 = vadd.f32 %v2280, %v2548
      %v2550 = vpop.f32.mrb[0].mxu0
      %v2551 = vpop.f32.mrb[0].mxu0
      %v2552 = vadd.f32 %v2280, %v2551
      %v2553 = vpop.f32.mrb[0].mxu0
      %2554 = vmatprep.mubr.bf16.mxu0 %v2204
      %2555 = vmatmul.mubr.bf16.gmra.mrb[0].mxu0 %v2203
      %v2556 = vpop.f32.mrb[0].mxu0
      %v2557 = vadd.f32 %v2280, %v2556
      %v2558 = vpop.f32.mrb[0].mxu0
      %v2559 = vpop.f32.mrb[0].mxu0
      %v2560 = vadd.f32 %v2280, %v2559
      %v2561 = vpop.f32.mrb[0].mxu0
      %2562 = vmatprep.mubr.bf16.mxu0 %v2208
      %2563 = vmatmul.mubr.bf16.gmra.mrb[0].mxu0 %v2207
      %v2564 = vpop.f32.mrb[0].mxu0
      %v2565 = vadd.f32 %v2280, %v2564
      %v2566 = vpop.f32.mrb[0].mxu0
      %v2567 = vpop.f32.mrb[0].mxu0
      %v2568 = vadd.f32 %v2280, %v2567
      %v2569 = vpop.f32.mrb[0].mxu0
      %2570 = vdwg.mxu0
      %2571 = vmatprep.subr.bf16.mxu0 0
      %2572 = vmatpush1.bf16.msra.mxu0 %v2426
      %2573 = vmatprep.subr.bf16.mxu0 0
      %2574 = vmatpush1.bf16.msra.mxu0 %v2427
      %2575 = vmatprep.subr.bf16.mxu0 0
      %2576 = vmatpush1.bf16.msra.mxu0 %v2428
      %2577 = vmatprep.subr.bf16.mxu0 0
      %2578 = vmatpush1.bf16.msra.mxu0 %v2429
      %2579 = vmatprep.subr.bf16.mxu0 0
      %2580 = vmatpush1.bf16.msra.mxu0 %v2430
      %2581 = vmatprep.subr.bf16.mxu0 0
      %2582 = vmatpush1.bf16.msra.mxu0 %v2431
      %2583 = vmatprep.subr.bf16.mxu0 0
      %2584 = vmatpush1.bf16.msra.mxu0 %v2432
      %2585 = vmatprep.subr.bf16.mxu0 0
      %2586 = vmatpush1.bf16.msra.mxu0 %v2433
      %2587 = vmatprep.subr.bf16.mxu0 0
      %2588 = vmatpush1.bf16.msra.mxu0 %v2434
      %2589 = vmatprep.subr.bf16.mxu0 0
      %2590 = vmatpush1.bf16.msra.mxu0 %v2435
      %2591 = vmatprep.subr.bf16.mxu0 0
      %2592 = vmatpush1.bf16.msra.mxu0 %v2436
      %2593 = vmatprep.subr.bf16.mxu0 0
      %2594 = vmatpush1.bf16.msra.mxu0 %v2437
      %2595 = vmatprep.subr.bf16.mxu0 0
      %2596 = vmatpush1.bf16.msra.mxu0 %v2438
      %2597 = vmatprep.subr.bf16.mxu0 0
      %2598 = vmatpush1.bf16.msra.mxu0 %v2439
      %2599 = vmatprep.subr.bf16.mxu0 0
      %2600 = vmatpush1.bf16.msra.mxu0 %v2440
      %2601 = vmatprep.subr.bf16.mxu0 0
      %2602 = vmatpush1.bf16.msra.mxu0 %v2441
      %2603 = vmatprep.mubr.bf16.mxu0 %v2182
      %2604 = vmatmul.mubr.bf16.gmra.mrb[0].mxu0 %v2181
      %v2605 = vpop.f32.mrb[0].mxu0
      %v2606 = vadd.f32 %v2509, %v2605
      %v2607 = vpop.f32.mrb[0].mxu0
      %v2608 = vpop.f32.mrb[0].mxu0
      %v2609 = vadd.f32 %v2512, %v2608
      %v2610 = vpop.f32.mrb[0].mxu0
      %2611 = vmatprep.mubr.bf16.mxu0 %v2186
      %2612 = vmatmul.mubr.bf16.gmra.mrb[0].mxu0 %v2185
      %v2613 = vpop.f32.mrb[0].mxu0
      %v2614 = vadd.f32 %v2517, %v2613
      %v2615 = vpop.f32.mrb[0].mxu0
      %v2616 = vpop.f32.mrb[0].mxu0
      %v2617 = vadd.f32 %v2520, %v2616
      %v2618 = vpop.f32.mrb[0].mxu0
      %2619 = vmatprep.mubr.bf16.mxu0 %v2190
      %2620 = vmatmul.mubr.bf16.gmra.mrb[0].mxu0 %v2189
      %v2621 = vpop.f32.mrb[0].mxu0
      %v2622 = vadd.f32 %v2525, %v2621
      %v2623 = vpop.f32.mrb[0].mxu0
      %v2624 = vpop.f32.mrb[0].mxu0
      %v2625 = vadd.f32 %v2528, %v2624
      %v2626 = vpop.f32.mrb[0].mxu0
      %2627 = vmatprep.mubr.bf16.mxu0 %v2194
      %2628 = vmatmul.mubr.bf16.gmra.mrb[0].mxu0 %v2193
      %v2629 = vpop.f32.mrb[0].mxu0
      %v2630 = vadd.f32 %v2533, %v2629
      %v2631 = vpop.f32.mrb[0].mxu0
      %v2632 = vpop.f32.mrb[0].mxu0
      %v2633 = vadd.f32 %v2536, %v2632
      %v2634 = vpop.f32.mrb[0].mxu0
      %2635 = vmatprep.mubr.bf16.mxu0 %v2198
      %2636 = vmatmul.mubr.bf16.gmra.mrb[0].mxu0 %v2197
      %v2637 = vpop.f32.mrb[0].mxu0
      %v2638 = vadd.f32 %v2541, %v2637
      %v2639 = vpop.f32.mrb[0].mxu0
      %v2640 = vpop.f32.mrb[0].mxu0
      %v2641 = vadd.f32 %v2544, %v2640
      %v2642 = vpop.f32.mrb[0].mxu0
      %2643 = vmatprep.mubr.bf16.mxu0 %v2202
      %2644 = vmatmul.mubr.bf16.gmra.mrb[0].mxu0 %v2201
      %v2645 = vpop.f32.mrb[0].mxu0
      %v2646 = vadd.f32 %v2549, %v2645
      %v2647 = vpop.f32.mrb[0].mxu0
      %v2648 = vpop.f32.mrb[0].mxu0
      %v2649 = vadd.f32 %v2552, %v2648
      %v2650 = vpop.f32.mrb[0].mxu0
      %2651 = vmatprep.mubr.bf16.mxu0 %v2206
      %2652 = vmatmul.mubr.bf16.gmra.mrb[0].mxu0 %v2205
      %v2653 = vpop.f32.mrb[0].mxu0
      %v2654 = vadd.f32 %v2557, %v2653
      %v2655 = vpop.f32.mrb[0].mxu0
      %v2656 = vpop.f32.mrb[0].mxu0
      %v2657 = vadd.f32 %v2560, %v2656
      %v2658 = vpop.f32.mrb[0].mxu0
      %2659 = vmatprep.mubr.bf16.mxu0 %v2210
      %2660 = vmatmul.mubr.bf16.gmra.mrb[0].mxu0 %v2209
      %v2661 = vpop.f32.mrb[0].mxu0
      %v2662 = vadd.f32 %v2565, %v2661
      %v2663 = vpop.f32.mrb[0].mxu0
      %v2664 = vpop.f32.mrb[0].mxu0
      %v2665 = vadd.f32 %v2568, %v2664
      %v2666 = vpop.f32.mrb[0].mxu0
      %2667 = vdwg.mxu0
      %v2668 = vmax.f32 %v2606, 0.0
      %v2669 = vmax.f32 %v2609, 0.0
      %v2670 = vmax.f32 %v2614, 0.0
      %v2671 = vmax.f32 %v2617, 0.0
      %v2672 = vmax.f32 %v2622, 0.0
      %v2673 = vmax.f32 %v2625, 0.0
      %v2674 = vmax.f32 %v2630, 0.0
      %v2675 = vmax.f32 %v2633, 0.0
      %v2676 = vmax.f32 %v2638, 0.0
      %v2677 = vmax.f32 %v2641, 0.0
      %v2678 = vmax.f32 %v2646, 0.0
      %v2679 = vmax.f32 %v2649, 0.0
      %v2680 = vmax.f32 %v2654, 0.0
      %v2681 = vmax.f32 %v2657, 0.0
      %v2682 = vmax.f32 %v2662, 0.0
      %v2683 = vmax.f32 %v2665, 0.0
      %v2684 = vpack.c.bf16 %v2669, %v2668
      %v2685 = vpack.c.bf16 %v2671, %v2670
      %v2686 = vpack.c.bf16 %v2673, %v2672
      %v2687 = vpack.c.bf16 %v2675, %v2674
      %v2688 = vpack.c.bf16 %v2677, %v2676
      %v2689 = vpack.c.bf16 %v2679, %v2678
      %v2690 = vpack.c.bf16 %v2681, %v2680
      %v2691 = vpack.c.bf16 %v2683, %v2682
      %v2692 = vld [vmem:[%s9] sm:$0xf]
      %v2693 = vld [vmem:[%s9 + $0x4] sm:$0xf]
      %v2694 = vld [vmem:[%s9 + $0x8] sm:$0xf]
      %v2695 = vld [vmem:[%s9 + $0xc] sm:$0xf]
      %v2696 = vld [vmem:[%s10] sm:$0xf]
      %v2697 = vld [vmem:[%s10 + $0x4] sm:$0xf]
      %v2698 = vld [vmem:[%s10 + $0x8] sm:$0xf]
      %v2699 = vld [vmem:[%s10 + $0xc] sm:$0xf]
      %v2700 = vld [vmem:[%s10 + $0x10] sm:$0xf]
      %v2701 = vld [vmem:[%s10 + $0x14] sm:$0xf]
      %v2702 = vld [vmem:[%s10 + $0x18] sm:$0xf]
      %v2703 = vld [vmem:[%s10 + $0x1c] sm:$0xf]
      %v2704 = vld [vmem:[%s10 + $0x20] sm:$0xf]
      %v2705 = vld [vmem:[%s10 + $0x24] sm:$0xf]
      %v2706 = vld [vmem:[%s10 + $0x28] sm:$0xf]
      %v2707 = vld [vmem:[%s10 + $0x2c] sm:$0xf]
      %v2708 = vld [vmem:[%s10 + $0x30] sm:$0xf]
      %v2709 = vld [vmem:[%s10 + $0x34] sm:$0xf]
      %v2710 = vld [vmem:[%s10 + $0x38] sm:$0xf]
      %v2711 = vld [vmem:[%s10 + $0x3c] sm:$0xf]
      %v2728 = vunpack.c.l.b16 %v2696
      %v2729 = vunpack.c.l.b16 %v2697
      %v2730 = vunpack.c.l.b16 %v2698
      %v2731 = vunpack.c.l.b16 %v2699
      %v2732 = vunpack.c.l.b16 %v2700
      %v2733 = vunpack.c.l.b16 %v2701
      %v2734 = vunpack.c.l.b16 %v2702
      %v2735 = vunpack.c.l.b16 %v2703
      %v2736 = vunpack.c.l.b16 %v2704
      %v2737 = vunpack.c.l.b16 %v2705
      %v2738 = vunpack.c.l.b16 %v2706
      %v2739 = vunpack.c.l.b16 %v2707
      %v2740 = vunpack.c.l.b16 %v2708
      %v2741 = vunpack.c.l.b16 %v2709
      %v2742 = vunpack.c.l.b16 %v2710
      %v2743 = vunpack.c.l.b16 %v2711
      %v2744 = vpack.c.b16 %v2729, %v2728
      %v2745 = vpack.c.b16 %v2731, %v2730
      %v2746 = vpack.c.b16 %v2733, %v2732
      %v2747 = vpack.c.b16 %v2735, %v2734
      %v2748 = vpack.c.b16 %v2737, %v2736
      %v2749 = vpack.c.b16 %v2739, %v2738
      %v2750 = vpack.c.b16 %v2741, %v2740
      %v2751 = vpack.c.b16 %v2743, %v2742
      %2760 = vmatprep.subr.bf16.mxu0 0
      %2761 = vmatpush1.bf16.msra.mxu0 %v2744
      %2762 = vmatprep.subr.bf16.mxu0 0
      %2763 = vmatpush1.bf16.msra.mxu0 %v2745
      %2764 = vmatprep.subr.bf16.mxu0 0
      %2765 = vmatpush1.bf16.msra.mxu0 %v2746
      %2766 = vmatprep.subr.bf16.mxu0 0
      %2767 = vmatpush1.bf16.msra.mxu0 %v2747
      %2768 = vmatprep.subr.bf16.mxu0 0
      %2769 = vmatpush1.bf16.msra.mxu0 %v2748
      %2770 = vmatprep.subr.bf16.mxu0 0
      %2771 = vmatpush1.bf16.msra.mxu0 %v2749
      %2772 = vmatprep.subr.bf16.mxu0 0
      %2773 = vmatpush1.bf16.msra.mxu0 %v2750
      %2774 = vmatprep.subr.bf16.mxu0 0
      %2775 = vmatpush1.bf16.msra.mxu0 %v2751
      %2776 = vmatprep.subr.bf16.mxu0 0
      %2777 = vmatpush1.bf16.msra.mxu0 0
      %2778 = vmatprep.subr.bf16.mxu0 0
      %2779 = vmatpush1.bf16.msra.mxu0 0
      %2780 = vmatprep.subr.bf16.mxu0 0
      %2781 = vmatpush1.bf16.msra.mxu0 0
      %2782 = vmatprep.subr.bf16.mxu0 0
      %2783 = vmatpush1.bf16.msra.mxu0 0
      %2784 = vmatprep.subr.bf16.mxu0 0
      %2785 = vmatpush1.bf16.msra.mxu0 0
      %2786 = vmatprep.subr.bf16.mxu0 0
      %2787 = vmatpush1.bf16.msra.mxu0 0
      %2788 = vmatprep.subr.bf16.mxu0 0
      %2789 = vmatpush1.bf16.msra.mxu0 0
      %2790 = vmatprep.subr.bf16.mxu0 0
      %2791 = vmatpush1.bf16.msra.mxu0 0
      %2792 = vmatprep.mubr.bf16.mxu0 0
      %2793 = vmatmul.mubr.bf16.gmra.mrb[0].mxu0 %v2684
      %v2794 = vpop.f32.mrb[0].mxu0
      %v2795 = vadd.f32 0.0, %v2794
      %v2796 = vpop.f32.mrb[0].mxu0
      %v2797 = vpop.f32.mrb[0].mxu0
      %v2798 = vadd.f32 0.0, %v2797
      %v2799 = vpop.f32.mrb[0].mxu0
      %2800 = vmatprep.mubr.bf16.mxu0 0
      %2801 = vmatmul.mubr.bf16.gmra.mrb[0].mxu0 %v2685
      %v2802 = vpop.f32.mrb[0].mxu0
      %v2803 = vadd.f32 0.0, %v2802
      %v2804 = vpop.f32.mrb[0].mxu0
      %v2805 = vpop.f32.mrb[0].mxu0
      %v2806 = vadd.f32 0.0, %v2805
      %v2807 = vpop.f32.mrb[0].mxu0
      %2808 = vmatprep.mubr.bf16.mxu0 0
      %2809 = vmatmul.mubr.bf16.gmra.mrb[0].mxu0 %v2686
      %v2810 = vpop.f32.mrb[0].mxu0
      %v2811 = vadd.f32 0.0, %v2810
      %v2812 = vpop.f32.mrb[0].mxu0
      %v2813 = vpop.f32.mrb[0].mxu0
      %v2814 = vadd.f32 0.0, %v2813
      %v2815 = vpop.f32.mrb[0].mxu0
      %2816 = vmatprep.mubr.bf16.mxu0 0
      %2817 = vmatmul.mubr.bf16.gmra.mrb[0].mxu0 %v2687
      %v2818 = vpop.f32.mrb[0].mxu0
      %v2819 = vadd.f32 0.0, %v2818
      %v2820 = vpop.f32.mrb[0].mxu0
      %v2821 = vpop.f32.mrb[0].mxu0
      %v2822 = vadd.f32 0.0, %v2821
      %v2823 = vpop.f32.mrb[0].mxu0
      %2824 = vmatprep.mubr.bf16.mxu0 0
      %2825 = vmatmul.mubr.bf16.gmra.mrb[0].mxu0 %v2688
      %v2826 = vpop.f32.mrb[0].mxu0
      %v2827 = vadd.f32 0.0, %v2826
      %v2828 = vpop.f32.mrb[0].mxu0
      %v2829 = vpop.f32.mrb[0].mxu0
      %v2830 = vadd.f32 0.0, %v2829
      %v2831 = vpop.f32.mrb[0].mxu0
      %2832 = vmatprep.mubr.bf16.mxu0 0
      %2833 = vmatmul.mubr.bf16.gmra.mrb[0].mxu0 %v2689
      %v2834 = vpop.f32.mrb[0].mxu0
      %v2835 = vadd.f32 0.0, %v2834
      %v2836 = vpop.f32.mrb[0].mxu0
      %v2837 = vpop.f32.mrb[0].mxu0
      %v2838 = vadd.f32 0.0, %v2837
      %v2839 = vpop.f32.mrb[0].mxu0
      %2840 = vmatprep.mubr.bf16.mxu0 0
      %2841 = vmatmul.mubr.bf16.gmra.mrb[0].mxu0 %v2690
      %v2842 = vpop.f32.mrb[0].mxu0
      %v2843 = vadd.f32 0.0, %v2842
      %v2844 = vpop.f32.mrb[0].mxu0
      %v2845 = vpop.f32.mrb[0].mxu0
      %v2846 = vadd.f32 0.0, %v2845
      %v2847 = vpop.f32.mrb[0].mxu0
      %2848 = vmatprep.mubr.bf16.mxu0 0
      %2849 = vmatmul.mubr.bf16.gmra.mrb[0].mxu0 %v2691
      %v2850 = vpop.f32.mrb[0].mxu0
      %v2851 = vadd.f32 0.0, %v2850
      %v2852 = vpop.f32.mrb[0].mxu0
      %v2853 = vpop.f32.mrb[0].mxu0
      %v2854 = vadd.f32 0.0, %v2853
      %v2855 = vpop.f32.mrb[0].mxu0
      %2856 = vdwg.mxu0
      %v2861 = vunpack.c.l.b16 %v2692
      %v2862 = vunpack.c.l.b16 %v2693
      %v2863 = vunpack.c.l.b16 %v2694
      %v2864 = vunpack.c.l.b16 %v2695
      %v2865 = vpack.c.b16 %v2862, %v2861
      %v2866 = vpack.c.b16 %v2864, %v2863
      %v2870 = vsel %vm1384, %v1619, 0
      %v2873 = vsel %vm1384, %v1620, 0
      %v2876 = vsel %vm1384, %v1621, 0
      %v2879 = vsel %vm1384, %v1622, 0
      %v2882 = vsel %vm1384, %v1623, 0
      %v2885 = vsel %vm1384, %v1624, 0
      %v2888 = vsel %vm1384, %v1625, 0
      %v2891 = vsel %vm1384, %v1626, 0
      %2893 = vmatprep.subr.bf16.mxu0 0
      %2894 = vmatpush1.bf16.msra.mxu0 %v2865
      %2895 = vmatprep.subr.bf16.mxu0 0
      %2896 = vmatpush1.bf16.msra.mxu0 %v2866
      %2897 = vmatprep.subr.bf16.mxu0 0
      %2898 = vmatpush1.bf16.msra.mxu0 0
      %2899 = vmatprep.subr.bf16.mxu0 0
      %2900 = vmatpush1.bf16.msra.mxu0 0
      %2901 = vmatprep.subr.bf16.mxu0 0
      %2902 = vmatpush1.bf16.msra.mxu0 0
      %2903 = vmatprep.subr.bf16.mxu0 0
      %2904 = vmatpush1.bf16.msra.mxu0 0
      %2905 = vmatprep.subr.bf16.mxu0 0
      %2906 = vmatpush1.bf16.msra.mxu0 0
      %2907 = vmatprep.subr.bf16.mxu0 0
      %2908 = vmatpush1.bf16.msra.mxu0 0
      %2909 = vmatprep.subr.bf16.mxu0 0
      %2910 = vmatpush1.bf16.msra.mxu0 0
      %2911 = vmatprep.subr.bf16.mxu0 0
      %2912 = vmatpush1.bf16.msra.mxu0 0
      %2913 = vmatprep.subr.bf16.mxu0 0
      %2914 = vmatpush1.bf16.msra.mxu0 0
      %2915 = vmatprep.subr.bf16.mxu0 0
      %2916 = vmatpush1.bf16.msra.mxu0 0
      %2917 = vmatprep.subr.bf16.mxu0 0
      %2918 = vmatpush1.bf16.msra.mxu0 0
      %2919 = vmatprep.subr.bf16.mxu0 0
      %2920 = vmatpush1.bf16.msra.mxu0 0
      %2921 = vmatprep.subr.bf16.mxu0 0
      %2922 = vmatpush1.bf16.msra.mxu0 0
      %2923 = vmatprep.subr.bf16.mxu0 0
      %2924 = vmatpush1.bf16.msra.mxu0 0
      %2925 = vmatprep.mubr.bf16.mxu0 0
      %2926 = vmatmul.mubr.bf16.gmra.mrb[0].mxu0 %v2870
      %v2927 = vpop.f32.mrb[0].mxu0
      %v2928 = vadd.f32 %v2795, %v2927
      %v2929 = vpop.f32.mrb[0].mxu0
      %v2930 = vpop.f32.mrb[0].mxu0
      %v2931 = vadd.f32 %v2798, %v2930
      %v2932 = vpop.f32.mrb[0].mxu0
      %2933 = vmatprep.mubr.bf16.mxu0 0
      %2934 = vmatmul.mubr.bf16.gmra.mrb[0].mxu0 %v2873
      %v2935 = vpop.f32.mrb[0].mxu0
      %v2936 = vadd.f32 %v2803, %v2935
      %v2937 = vpop.f32.mrb[0].mxu0
      %v2938 = vpop.f32.mrb[0].mxu0
      %v2939 = vadd.f32 %v2806, %v2938
      %v2940 = vpop.f32.mrb[0].mxu0
      %2941 = vmatprep.mubr.bf16.mxu0 0
      %2942 = vmatmul.mubr.bf16.gmra.mrb[0].mxu0 %v2876
      %v2943 = vpop.f32.mrb[0].mxu0
      %v2944 = vadd.f32 %v2811, %v2943
      %v2945 = vpop.f32.mrb[0].mxu0
      %v2946 = vpop.f32.mrb[0].mxu0
      %v2947 = vadd.f32 %v2814, %v2946
      %v2948 = vpop.f32.mrb[0].mxu0
      %2949 = vmatprep.mubr.bf16.mxu0 0
      %2950 = vmatmul.mubr.bf16.gmra.mrb[0].mxu0 %v2879
      %v2951 = vpop.f32.mrb[0].mxu0
      %v2952 = vadd.f32 %v2819, %v2951
      %v2953 = vpop.f32.mrb[0].mxu0
      %v2954 = vpop.f32.mrb[0].mxu0
      %v2955 = vadd.f32 %v2822, %v2954
      %v2956 = vpop.f32.mrb[0].mxu0
      %2957 = vmatprep.mubr.bf16.mxu0 0
      %2958 = vmatmul.mubr.bf16.gmra.mrb[0].mxu0 %v2882
      %v2959 = vpop.f32.mrb[0].mxu0
      %v2960 = vadd.f32 %v2827, %v2959
      %v2961 = vpop.f32.mrb[0].mxu0
      %v2962 = vpop.f32.mrb[0].mxu0
      %v2963 = vadd.f32 %v2830, %v2962
      %v2964 = vpop.f32.mrb[0].mxu0
      %2965 = vmatprep.mubr.bf16.mxu0 0
      %2966 = vmatmul.mubr.bf16.gmra.mrb[0].mxu0 %v2885
      %v2967 = vpop.f32.mrb[0].mxu0
      %v2968 = vadd.f32 %v2835, %v2967
      %v2969 = vpop.f32.mrb[0].mxu0
      %v2970 = vpop.f32.mrb[0].mxu0
      %v2971 = vadd.f32 %v2838, %v2970
      %v2972 = vpop.f32.mrb[0].mxu0
      %2973 = vmatprep.mubr.bf16.mxu0 0
      %2974 = vmatmul.mubr.bf16.gmra.mrb[0].mxu0 %v2888
      %v2975 = vpop.f32.mrb[0].mxu0
      %v2976 = vadd.f32 %v2843, %v2975
      %v2977 = vpop.f32.mrb[0].mxu0
      %v2978 = vpop.f32.mrb[0].mxu0
      %v2979 = vadd.f32 %v2846, %v2978
      %v2980 = vpop.f32.mrb[0].mxu0
      %2981 = vmatprep.mubr.bf16.mxu0 0
      %2982 = vmatmul.mubr.bf16.gmra.mrb[0].mxu0 %v2891
      %v2983 = vpop.f32.mrb[0].mxu0
      %v2984 = vadd.f32 %v2851, %v2983
      %v2985 = vpop.f32.mrb[0].mxu0
      %v2986 = vpop.f32.mrb[0].mxu0
      %v2987 = vadd.f32 %v2854, %v2986
      %v2988 = vpop.f32.mrb[0].mxu0
      %2989 = vdwg.mxu0
      %v2990 = vld [vmem:[%s11] sm:$0xf]
      %v2991 = vld [vmem:[%s11 + $0x4] sm:$0xf]
      %v2992 = vld [vmem:[%s11 + $0x8] sm:$0xf]
      %v2993 = vld [vmem:[%s11 + $0xc] sm:$0xf]
      %v2994 = vld [vmem:[%s11 + $0x10] sm:$0xf]
      %v2995 = vld [vmem:[%s11 + $0x14] sm:$0xf]
      %v2996 = vld [vmem:[%s11 + $0x18] sm:$0xf]
      %v2997 = vld [vmem:[%s11 + $0x1c] sm:$0xf]
      %v2998 = vld [vmem:[%s11 + $0x20] sm:$0xf]
      %v2999 = vld [vmem:[%s11 + $0x24] sm:$0xf]
      %v3000 = vld [vmem:[%s11 + $0x28] sm:$0xf]
      %v3001 = vld [vmem:[%s11 + $0x2c] sm:$0xf]
      %v3002 = vld [vmem:[%s11 + $0x30] sm:$0xf]
      %v3003 = vld [vmem:[%s11 + $0x34] sm:$0xf]
      %v3004 = vld [vmem:[%s11 + $0x38] sm:$0xf]
      %v3005 = vld [vmem:[%s11 + $0x3c] sm:$0xf]
      %v3006 = vunpack.c.h.b16 %v503
      %v3007 = vunpack.c.h.b16 %v505
      %v3008 = vunpack.c.h.b16 %v507
      %v3009 = vunpack.c.h.b16 %v509
      %v3010 = vunpack.c.h.b16 %v511
      %v3011 = vunpack.c.h.b16 %v513
      %v3012 = vunpack.c.h.b16 %v515
      %v3013 = vunpack.c.h.b16 %v517
      %v3014 = vunpack.c.h.b16 %v519
      %v3015 = vunpack.c.h.b16 %v521
      %v3016 = vunpack.c.h.b16 %v523
      %v3017 = vunpack.c.h.b16 %v525
      %v3018 = vunpack.c.h.b16 %v527
      %v3019 = vunpack.c.h.b16 %v529
      %v3020 = vunpack.c.h.b16 %v531
      %v3021 = vunpack.c.h.b16 %v533
      %v3022 = vpack.c.b16 %v3007, %v3006
      %v3023 = vpack.c.b16 %v3009, %v3008
      %v3024 = vpack.c.b16 %v3011, %v3010
      %v3025 = vpack.c.b16 %v3013, %v3012
      %v3026 = vpack.c.b16 %v3015, %v3014
      %v3027 = vpack.c.b16 %v3017, %v3016
      %v3028 = vpack.c.b16 %v3019, %v3018
      %v3029 = vpack.c.b16 %v3021, %v3020
      %v3054 = vunpack.c.l.b16 %v2990
      %v3055 = vunpack.c.l.b16 %v2991
      %v3056 = vunpack.c.l.b16 %v2992
      %v3057 = vunpack.c.l.b16 %v2993
      %v3058 = vunpack.c.l.b16 %v2994
      %v3059 = vunpack.c.l.b16 %v2995
      %v3060 = vunpack.c.l.b16 %v2996
      %v3061 = vunpack.c.l.b16 %v2997
      %v3062 = vunpack.c.l.b16 %v2998
      %v3063 = vunpack.c.l.b16 %v2999
      %v3064 = vunpack.c.l.b16 %v3000
      %v3065 = vunpack.c.l.b16 %v3001
      %v3066 = vunpack.c.l.b16 %v3002
      %v3067 = vunpack.c.l.b16 %v3003
      %v3068 = vunpack.c.l.b16 %v3004
      %v3069 = vunpack.c.l.b16 %v3005
      %v3070 = vpack.c.b16 %v3055, %v3054
      %v3071 = vpack.c.b16 %v3057, %v3056
      %v3072 = vpack.c.b16 %v3059, %v3058
      %v3073 = vpack.c.b16 %v3061, %v3060
      %v3074 = vpack.c.b16 %v3063, %v3062
      %v3075 = vpack.c.b16 %v3065, %v3064
      %v3076 = vpack.c.b16 %v3067, %v3066
      %v3077 = vpack.c.b16 %v3069, %v3068
      %3086 = vmatprep.subr.bf16.mxu0 0
      %3087 = vmatpush1.bf16.msra.mxu0 %v3070
      %3088 = vmatprep.subr.bf16.mxu0 0
      %3089 = vmatpush1.bf16.msra.mxu0 %v3071
      %3090 = vmatprep.subr.bf16.mxu0 0
      %3091 = vmatpush1.bf16.msra.mxu0 %v3072
      %3092 = vmatprep.subr.bf16.mxu0 0
      %3093 = vmatpush1.bf16.msra.mxu0 %v3073
      %3094 = vmatprep.subr.bf16.mxu0 0
      %3095 = vmatpush1.bf16.msra.mxu0 %v3074
      %3096 = vmatprep.subr.bf16.mxu0 0
      %3097 = vmatpush1.bf16.msra.mxu0 %v3075
      %3098 = vmatprep.subr.bf16.mxu0 0
      %3099 = vmatpush1.bf16.msra.mxu0 %v3076
      %3100 = vmatprep.subr.bf16.mxu0 0
      %3101 = vmatpush1.bf16.msra.mxu0 %v3077
      %3102 = vmatprep.subr.bf16.mxu0 0
      %3103 = vmatpush1.bf16.msra.mxu0 0
      %3104 = vmatprep.subr.bf16.mxu0 0
      %3105 = vmatpush1.bf16.msra.mxu0 0
      %3106 = vmatprep.subr.bf16.mxu0 0
      %3107 = vmatpush1.bf16.msra.mxu0 0
      %3108 = vmatprep.subr.bf16.mxu0 0
      %3109 = vmatpush1.bf16.msra.mxu0 0
      %3110 = vmatprep.subr.bf16.mxu0 0
      %3111 = vmatpush1.bf16.msra.mxu0 0
      %3112 = vmatprep.subr.bf16.mxu0 0
      %3113 = vmatpush1.bf16.msra.mxu0 0
      %3114 = vmatprep.subr.bf16.mxu0 0
      %3115 = vmatpush1.bf16.msra.mxu0 0
      %3116 = vmatprep.subr.bf16.mxu0 0
      %3117 = vmatpush1.bf16.msra.mxu0 0
      %3118 = vmatprep.mubr.bf16.mxu0 0
      %3119 = vmatmul.mubr.bf16.gmra.mrb[0].mxu0 %v3022
      %v3120 = vpop.f32.mrb[0].mxu0
      %v3121 = vadd.f32 0.0, %v3120
      %v3122 = vpop.f32.mrb[0].mxu0
      %v3123 = vpop.f32.mrb[0].mxu0
      %v3124 = vadd.f32 0.0, %v3123
      %v3125 = vpop.f32.mrb[0].mxu0
      %3126 = vmatprep.mubr.bf16.mxu0 0
      %3127 = vmatmul.mubr.bf16.gmra.mrb[0].mxu0 %v3023
      %v3128 = vpop.f32.mrb[0].mxu0
      %v3129 = vadd.f32 0.0, %v3128
      %v3130 = vpop.f32.mrb[0].mxu0
      %v3131 = vpop.f32.mrb[0].mxu0
      %v3132 = vadd.f32 0.0, %v3131
      %v3133 = vpop.f32.mrb[0].mxu0
      %3134 = vmatprep.mubr.bf16.mxu0 0
      %3135 = vmatmul.mubr.bf16.gmra.mrb[0].mxu0 %v3024
      %v3136 = vpop.f32.mrb[0].mxu0
      %v3137 = vadd.f32 0.0, %v3136
      %v3138 = vpop.f32.mrb[0].mxu0
      %v3139 = vpop.f32.mrb[0].mxu0
      %v3140 = vadd.f32 0.0, %v3139
      %v3141 = vpop.f32.mrb[0].mxu0
      %3142 = vmatprep.mubr.bf16.mxu0 0
      %3143 = vmatmul.mubr.bf16.gmra.mrb[0].mxu0 %v3025
      %v3144 = vpop.f32.mrb[0].mxu0
      %v3145 = vadd.f32 0.0, %v3144
      %v3146 = vpop.f32.mrb[0].mxu0
      %v3147 = vpop.f32.mrb[0].mxu0
      %v3148 = vadd.f32 0.0, %v3147
      %v3149 = vpop.f32.mrb[0].mxu0
      %3150 = vmatprep.mubr.bf16.mxu0 0
      %3151 = vmatmul.mubr.bf16.gmra.mrb[0].mxu0 %v3026
      %v3152 = vpop.f32.mrb[0].mxu0
      %v3153 = vadd.f32 0.0, %v3152
      %v3154 = vpop.f32.mrb[0].mxu0
      %v3155 = vpop.f32.mrb[0].mxu0
      %v3156 = vadd.f32 0.0, %v3155
      %v3157 = vpop.f32.mrb[0].mxu0
      %3158 = vmatprep.mubr.bf16.mxu0 0
      %3159 = vmatmul.mubr.bf16.gmra.mrb[0].mxu0 %v3027
      %v3160 = vpop.f32.mrb[0].mxu0
      %v3161 = vadd.f32 0.0, %v3160
      %v3162 = vpop.f32.mrb[0].mxu0
      %v3163 = vpop.f32.mrb[0].mxu0
      %v3164 = vadd.f32 0.0, %v3163
      %v3165 = vpop.f32.mrb[0].mxu0
      %3166 = vmatprep.mubr.bf16.mxu0 0
      %3167 = vmatmul.mubr.bf16.gmra.mrb[0].mxu0 %v3028
      %v3168 = vpop.f32.mrb[0].mxu0
      %v3169 = vadd.f32 0.0, %v3168
      %v3170 = vpop.f32.mrb[0].mxu0
      %v3171 = vpop.f32.mrb[0].mxu0
      %v3172 = vadd.f32 0.0, %v3171
      %v3173 = vpop.f32.mrb[0].mxu0
      %3174 = vmatprep.mubr.bf16.mxu0 0
      %3175 = vmatmul.mubr.bf16.gmra.mrb[0].mxu0 %v3029
      %v3176 = vpop.f32.mrb[0].mxu0
      %v3177 = vadd.f32 0.0, %v3176
      %v3178 = vpop.f32.mrb[0].mxu0
      %v3179 = vpop.f32.mrb[0].mxu0
      %v3180 = vadd.f32 0.0, %v3179
      %v3181 = vpop.f32.mrb[0].mxu0
      %3182 = vdwg.mxu0
      %v3183 = vadd.f32 %v2928, %v3121
      %v3184 = vadd.f32 %v2931, %v3124
      %v3185 = vadd.f32 %v2936, %v3129
      %v3186 = vadd.f32 %v2939, %v3132
      %v3187 = vadd.f32 %v2944, %v3137
      %v3188 = vadd.f32 %v2947, %v3140
      %v3189 = vadd.f32 %v2952, %v3145
      %v3190 = vadd.f32 %v2955, %v3148
      %v3191 = vadd.f32 %v2960, %v3153
      %v3192 = vadd.f32 %v2963, %v3156
      %v3193 = vadd.f32 %v2968, %v3161
      %v3194 = vadd.f32 %v2971, %v3164
      %v3195 = vadd.f32 %v2976, %v3169
      %v3196 = vadd.f32 %v2979, %v3172
      %v3197 = vadd.f32 %v2984, %v3177
      %v3198 = vadd.f32 %v2987, %v3180
      %v3199 = vld [vmem:[%s12] sm:$0x1]
      %v3201 = vlaneseq
      %v3202 = vshrl.u32 %v3201, 7
      %v3203 = vsub.s32 0, %v3202
      %v3204 = vrot.slane %v3199, %v3203
      %v3206 = vadd.f32 %v3183, %v3204
      %v3207 = vadd.f32 %v3184, %v3204
      %v3208 = vadd.f32 %v3185, %v3204
      %v3209 = vadd.f32 %v3186, %v3204
      %v3210 = vadd.f32 %v3187, %v3204
      %v3211 = vadd.f32 %v3188, %v3204
      %v3212 = vadd.f32 %v3189, %v3204
      %v3213 = vadd.f32 %v3190, %v3204
      %v3214 = vadd.f32 %v3191, %v3204
      %v3215 = vadd.f32 %v3192, %v3204
      %v3216 = vadd.f32 %v3193, %v3204
      %v3217 = vadd.f32 %v3194, %v3204
      %v3218 = vadd.f32 %v3195, %v3204
      %v3219 = vadd.f32 %v3196, %v3204
      %v3220 = vadd.f32 %v3197, %v3204
      %v3221 = vadd.f32 %v3198, %v3204
      %v3222 = vmax.f32 %v3206, 0.0
      %v3223 = vmax.f32 %v3207, 0.0
      %v3224 = vmax.f32 %v3208, 0.0
      %v3225 = vmax.f32 %v3209, 0.0
      %v3226 = vmax.f32 %v3210, 0.0
      %v3227 = vmax.f32 %v3211, 0.0
      %v3228 = vmax.f32 %v3212, 0.0
      %v3229 = vmax.f32 %v3213, 0.0
      %v3230 = vmax.f32 %v3214, 0.0
      %v3231 = vmax.f32 %v3215, 0.0
      %v3232 = vmax.f32 %v3216, 0.0
      %v3233 = vmax.f32 %v3217, 0.0
      %v3234 = vmax.f32 %v3218, 0.0
      %v3235 = vmax.f32 %v3219, 0.0
      %v3236 = vmax.f32 %v3220, 0.0
      %v3237 = vmax.f32 %v3221, 0.0
      %v3238 = vpack.c.bf16 %v3223, %v3222
      %v3239 = vpack.c.bf16 %v3225, %v3224
      %v3240 = vpack.c.bf16 %v3227, %v3226
      %v3241 = vpack.c.bf16 %v3229, %v3228
      %v3242 = vpack.c.bf16 %v3231, %v3230
      %v3243 = vpack.c.bf16 %v3233, %v3232
      %v3244 = vpack.c.bf16 %v3235, %v3234
      %v3245 = vpack.c.bf16 %v3237, %v3236
      %v3246 = vld [vmem:[%s13] sm:$0xf]
      %v3247 = vld [vmem:[%s13 + $0x4] sm:$0xf]
      %v3248 = vld [vmem:[%s13 + $0x8] sm:$0xf]
      %v3249 = vld [vmem:[%s13 + $0xc] sm:$0xf]
      %v3250 = vld [vmem:[%s13 + $0x10] sm:$0xf]
      %v3251 = vld [vmem:[%s13 + $0x14] sm:$0xf]
      %v3252 = vld [vmem:[%s13 + $0x18] sm:$0xf]
      %v3253 = vld [vmem:[%s13 + $0x1c] sm:$0xf]
      %v3254 = vld [vmem:[%s13 + $0x20] sm:$0xf]
      %v3255 = vld [vmem:[%s13 + $0x24] sm:$0xf]
      %v3256 = vld [vmem:[%s13 + $0x28] sm:$0xf]
      %v3257 = vld [vmem:[%s13 + $0x2c] sm:$0xf]
      %v3258 = vld [vmem:[%s13 + $0x30] sm:$0xf]
      %v3259 = vld [vmem:[%s13 + $0x34] sm:$0xf]
      %v3260 = vld [vmem:[%s13 + $0x38] sm:$0xf]
      %v3261 = vld [vmem:[%s13 + $0x3c] sm:$0xf]
      %v3262 = vld [vmem:[%s14] sm:$0x1]
      %v3264 = vlaneseq
      %v3265 = vshrl.u32 %v3264, 7
      %v3266 = vsub.s32 0, %v3265
      %v3267 = vrot.slane %v3262, %v3266
      %v3285 = vunpack.c.l.b16 %v3246
      %v3286 = vunpack.c.l.b16 %v3247
      %v3287 = vunpack.c.l.b16 %v3248
      %v3288 = vunpack.c.l.b16 %v3249
      %v3289 = vunpack.c.l.b16 %v3250
      %v3290 = vunpack.c.l.b16 %v3251
      %v3291 = vunpack.c.l.b16 %v3252
      %v3292 = vunpack.c.l.b16 %v3253
      %v3293 = vunpack.c.l.b16 %v3254
      %v3294 = vunpack.c.l.b16 %v3255
      %v3295 = vunpack.c.l.b16 %v3256
      %v3296 = vunpack.c.l.b16 %v3257
      %v3297 = vunpack.c.l.b16 %v3258
      %v3298 = vunpack.c.l.b16 %v3259
      %v3299 = vunpack.c.l.b16 %v3260
      %v3300 = vunpack.c.l.b16 %v3261
      %v3301 = vpack.c.b16 %v3286, %v3285
      %v3302 = vpack.c.b16 %v3288, %v3287
      %v3303 = vpack.c.b16 %v3290, %v3289
      %v3304 = vpack.c.b16 %v3292, %v3291
      %v3305 = vpack.c.b16 %v3294, %v3293
      %v3306 = vpack.c.b16 %v3296, %v3295
      %v3307 = vpack.c.b16 %v3298, %v3297
      %v3308 = vpack.c.b16 %v3300, %v3299
      %3317 = vmatprep.subr.bf16.mxu0 0
      %3318 = vmatpush1.bf16.msra.mxu0 %v3301
      %3319 = vmatprep.subr.bf16.mxu0 0
      %3320 = vmatpush1.bf16.msra.mxu0 %v3302
      %3321 = vmatprep.subr.bf16.mxu0 0
      %3322 = vmatpush1.bf16.msra.mxu0 %v3303
      %3323 = vmatprep.subr.bf16.mxu0 0
      %3324 = vmatpush1.bf16.msra.mxu0 %v3304
      %3325 = vmatprep.subr.bf16.mxu0 0
      %3326 = vmatpush1.bf16.msra.mxu0 %v3305
      %3327 = vmatprep.subr.bf16.mxu0 0
      %3328 = vmatpush1.bf16.msra.mxu0 %v3306
      %3329 = vmatprep.subr.bf16.mxu0 0
      %3330 = vmatpush1.bf16.msra.mxu0 %v3307
      %3331 = vmatprep.subr.bf16.mxu0 0
      %3332 = vmatpush1.bf16.msra.mxu0 %v3308
      %3333 = vmatprep.subr.bf16.mxu0 0
      %3334 = vmatpush1.bf16.msra.mxu0 0
      %3335 = vmatprep.subr.bf16.mxu0 0
      %3336 = vmatpush1.bf16.msra.mxu0 0
      %3337 = vmatprep.subr.bf16.mxu0 0
      %3338 = vmatpush1.bf16.msra.mxu0 0
      %3339 = vmatprep.subr.bf16.mxu0 0
      %3340 = vmatpush1.bf16.msra.mxu0 0
      %3341 = vmatprep.subr.bf16.mxu0 0
      %3342 = vmatpush1.bf16.msra.mxu0 0
      %3343 = vmatprep.subr.bf16.mxu0 0
      %3344 = vmatpush1.bf16.msra.mxu0 0
      %3345 = vmatprep.subr.bf16.mxu0 0
      %3346 = vmatpush1.bf16.msra.mxu0 0
      %3347 = vmatprep.subr.bf16.mxu0 0
      %3348 = vmatpush1.bf16.msra.mxu0 0
      %3349 = vmatprep.mubr.bf16.mxu0 0
      %3350 = vmatmul.mubr.bf16.gmra.mrb[0].mxu0 %v3238
      %v3351 = vpop.f32.mrb[0].mxu0
      %v3352 = vadd.f32 %v3267, %v3351
      %v3353 = vpop.f32.mrb[0].mxu0
      %v3354 = vpop.f32.mrb[0].mxu0
      %v3355 = vadd.f32 %v3267, %v3354
      %v3356 = vpop.f32.mrb[0].mxu0
      %3357 = vmatprep.mubr.bf16.mxu0 0
      %3358 = vmatmul.mubr.bf16.gmra.mrb[0].mxu0 %v3239
      %v3359 = vpop.f32.mrb[0].mxu0
      %v3360 = vadd.f32 %v3267, %v3359
      %v3361 = vpop.f32.mrb[0].mxu0
      %v3362 = vpop.f32.mrb[0].mxu0
      %v3363 = vadd.f32 %v3267, %v3362
      %v3364 = vpop.f32.mrb[0].mxu0
      %3365 = vmatprep.mubr.bf16.mxu0 0
      %3366 = vmatmul.mubr.bf16.gmra.mrb[0].mxu0 %v3240
      %v3367 = vpop.f32.mrb[0].mxu0
      %v3368 = vadd.f32 %v3267, %v3367
      %v3369 = vpop.f32.mrb[0].mxu0
      %v3370 = vpop.f32.mrb[0].mxu0
      %v3371 = vadd.f32 %v3267, %v3370
      %v3372 = vpop.f32.mrb[0].mxu0
      %3373 = vmatprep.mubr.bf16.mxu0 0
      %3374 = vmatmul.mubr.bf16.gmra.mrb[0].mxu0 %v3241
      %v3375 = vpop.f32.mrb[0].mxu0
      %v3376 = vadd.f32 %v3267, %v3375
      %v3377 = vpop.f32.mrb[0].mxu0
      %v3378 = vpop.f32.mrb[0].mxu0
      %v3379 = vadd.f32 %v3267, %v3378
      %v3380 = vpop.f32.mrb[0].mxu0
      %3381 = vmatprep.mubr.bf16.mxu0 0
      %3382 = vmatmul.mubr.bf16.gmra.mrb[0].mxu0 %v3242
      %v3383 = vpop.f32.mrb[0].mxu0
      %v3384 = vadd.f32 %v3267, %v3383
      %v3385 = vpop.f32.mrb[0].mxu0
      %v3386 = vpop.f32.mrb[0].mxu0
      %v3387 = vadd.f32 %v3267, %v3386
      %v3388 = vpop.f32.mrb[0].mxu0
      %3389 = vmatprep.mubr.bf16.mxu0 0
      %3390 = vmatmul.mubr.bf16.gmra.mrb[0].mxu0 %v3243
      %v3391 = vpop.f32.mrb[0].mxu0
      %v3392 = vadd.f32 %v3267, %v3391
      %v3393 = vpop.f32.mrb[0].mxu0
      %v3394 = vpop.f32.mrb[0].mxu0
      %v3395 = vadd.f32 %v3267, %v3394
      %v3396 = vpop.f32.mrb[0].mxu0
      %3397 = vmatprep.mubr.bf16.mxu0 0
      %3398 = vmatmul.mubr.bf16.gmra.mrb[0].mxu0 %v3244
      %v3399 = vpop.f32.mrb[0].mxu0
      %v3400 = vadd.f32 %v3267, %v3399
      %v3401 = vpop.f32.mrb[0].mxu0
      %v3402 = vpop.f32.mrb[0].mxu0
      %v3403 = vadd.f32 %v3267, %v3402
      %v3404 = vpop.f32.mrb[0].mxu0
      %3405 = vmatprep.mubr.bf16.mxu0 0
      %3406 = vmatmul.mubr.bf16.gmra.mrb[0].mxu0 %v3245
      %v3407 = vpop.f32.mrb[0].mxu0
      %v3408 = vadd.f32 %v3267, %v3407
      %v3409 = vpop.f32.mrb[0].mxu0
      %v3410 = vpop.f32.mrb[0].mxu0
      %v3411 = vadd.f32 %v3267, %v3410
      %v3412 = vpop.f32.mrb[0].mxu0
      %3413 = vdwg.mxu0
      %3414 = vst [vmem:[%s499] sm:$0xff] %v3352
      %3415 = vst [vmem:[%s499 + $0x8] sm:$0xff] %v3355
      %3416 = vst [vmem:[%s499 + $0x10] sm:$0xff] %v3360
      %3417 = vst [vmem:[%s499 + $0x18] sm:$0xff] %v3363
      %3418 = vst [vmem:[%s499 + $0x20] sm:$0xff] %v3368
      %3419 = vst [vmem:[%s499 + $0x28] sm:$0xff] %v3371
      %3420 = vst [vmem:[%s499 + $0x30] sm:$0xff] %v3376
      %3421 = vst [vmem:[%s499 + $0x38] sm:$0xff] %v3379
      %3422 = vst [vmem:[%s499 + $0x40] sm:$0xff] %v3384
      %3423 = vst [vmem:[%s499 + $0x48] sm:$0xff] %v3387
      %3424 = vst [vmem:[%s499 + $0x50] sm:$0xff] %v3392
      %3425 = vst [vmem:[%s499 + $0x58] sm:$0xff] %v3395
      %3426 = vst [vmem:[%s499 + $0x60] sm:$0xff] %v3400
      %3427 = vst [vmem:[%s499 + $0x68] sm:$0xff] %v3403
      %3428 = vst [vmem:[%s499 + $0x70] sm:$0xff] %v3408
      %3429 = vst [vmem:[%s499 + $0x78] sm:$0xff] %v3411
      %s3430 = smul.u32 16, %s26
      %p3431 = scmp.lt.s32.totalorder %s3430, 63
      %s3432 = scalar_select %p3431, %s3430, 63
      %s3433 = smul.addr %s3432, 8
      %s3434 = scalar_lea.vmem %s15, %s3433
      // Predicated region
      $region81: #{_lambda_.1} parent=79 // pred_check
        %p3435 = pneg %p364
      $region82: #{_lambda_.1} parent=79 // pred_check_branch
        %3437 = sbr.rel (%p3435) target = $region84
      $region83: #{_lambda_.1} parent=79 // pred_region
        %s3438 = smul.u32 16, %s26
      $region84: #{_lambda_.1} parent=79 // pred_fallthru
        _
    $region80: #{_lambda_.1} parent=5 // pred_fallthru
      _
    %p3439 = scmp.le.s32.totalorder 2, %s21
    // Predicated region
    $region85: #{_lambda_.1} parent=5 // pred_check
      %p3440 = pneg %p3439
    $region86: #{_lambda_.1} parent=5 // pred_check_branch
      %3442 = sbr.rel (%p3440) target = $region88
    $region87: #{_lambda_.1} parent=5 // pred_region
      %s3443 = ssub.s32 %s21, 2
      // Predicated region
      $region89: #{_lambda_.1} parent=87 // pred_check
        %p3444 = pneg %p370
      $region90: #{_lambda_.1} parent=87 // pred_check_branch
        %3446 = sbr.rel (%p3444) target = $region92
      $region91: #{_lambda_.1} parent=87 // pred_region
        %s3447 = smul.u32 16, %s27
        %p3448 = scmp.lt.s32.totalorder %s3447, 63
        %s3449 = scalar_select %p3448, %s3447, 63
        %s3450 = smul.addr %s3449, 8
        %s3451 = scalar_lea.vmem %s15, %s3450
      $region92: #{_lambda_.1} parent=87 // pred_fallthru
        _
    $region88: #{_lambda_.1} parent=5 // pred_fallthru
      _
  $region6: #{_lambda_.1} parent=0 // loop_footer
    %s25 = sadd.s32 1, %s21
  $region7: #{_lambda_.1} parent=0 // loop_footer_branch
    %20 = sbr.rel target = $region3
  $region8: #{_lambda_.1} parent=0 // loop_exit
    _

</llo_original>
